<compile_context>
chip_gen: v7x
topology: tpu7x:2x2x1
jax: 0.10.0
libtpu: 0.0.40
codegen_flags: <defaults>
</compile_context>

<pallas_src>
import jax
import jax.numpy as jnp
from jax import lax
from jax.experimental import pallas as pl
from jax.experimental.pallas import tpu as pltpu

POOL_SIZES = (4, 8, 16, 32)
SMALL_POOLS = (4, 8, 16)                     # s == 32 branch handled as identity
IN_CH = 3                                    # forced by Conv2d(7, 3, 1): 7 = 3 + 4*1
OUT_CH = 1
FINAL_IN = IN_CH + len(POOL_SIZES) * OUT_CH  # 7
FINAL_OUT = 3
H = W = 32
EPS = 1e-5

LANE_PACK = 4                                # images packed along lanes: 4 * 32 = 128
PW = LANE_PACK * W                           # 128
MAX_GROUPS = 8                               # lane-groups per grid step (v7x-safe; can be
                                             # raised on v5e/v6e with their larger VMEM)


# ---------------------------------------------------------------------------
# Host-side construction of the (static) pooling / upsampling matrices.
# ---------------------------------------------------------------------------
def _avg_pool_matrix(out_size, in_size):
    """Exact-division adaptive average pooling as a linear map: (out, in)."""
    assert in_size % out_size == 0, "exact-division assumption (H % s == 0) violated"
    k = in_size // out_size
    rows = jnp.repeat(jnp.arange(out_size), k)
    cols = jnp.arange(in_size)
    return jnp.zeros((out_size, in_size), jnp.float32).at[rows, cols].set(1.0 / k)


def _bilinear_matrix(out_size, in_size):
    """Bilinear interpolation (align_corners=True) as a linear map: (out, in)."""
    if in_size == 1:
        return jnp.ones((out_size, 1), jnp.float32)
    src = jnp.arange(out_size, dtype=jnp.float32) * (in_size - 1) / (out_size - 1)
    i0 = jnp.clip(jnp.floor(src).astype(jnp.int32), 0, in_size - 2)
    frac = src - i0.astype(jnp.float32)
    r = jnp.arange(out_size)
    m = jnp.zeros((out_size, in_size), jnp.float32)
    m = m.at[r, i0].add(1.0 - frac)
    m = m.at[r, i0 + 1].add(frac)
    return m


# ---------------------------------------------------------------------------
# Pallas kernel.
# ---------------------------------------------------------------------------
def _mm(a, b):      # a @ b
    return lax.dot_general(a, b, (((1,), (0,)), ((), ())),
                           preferred_element_type=jnp.float32)


def _mm_bt(a, b):   # a @ b.T
    return lax.dot_general(a, b, (((1,), (1,)), ((), ())),
                           preferred_element_type=jnp.float32)


def pyramid_kernel(x_ref,
                   ka4_ref, ka8_ref, ka16_ref,
                   kl4_ref, kl8_ref, kl16_ref,
                   wfbig_ref, bfrep_ref,
                   weff_ref, shift_ref,
                   o_ref, f_ref):
    ka_refs = (ka4_ref, ka8_ref, ka16_ref)
    kl_refs = (kl4_ref, kl8_ref, kl16_ref)
    gpb = x_ref.shape[0]                              # lane-groups in this block (static)

    for g in range(gpb):                              # static unroll over lane-groups
        xc = [x_ref[g, c] for c in range(IN_CH)]      # each (H, PW) = (32, 128)

        # Original input channels occupy concat slots 0..2 of the feature stack.
        for c in range(IN_CH):
            f_ref[c * H:(c + 1) * H, :] = xc[c]

        # Pyramid branches s in (4, 8, 16): fold the 1x1 conv (BN-scaled) BEFORE the
        # (linear) pooling -> one A @ Y @ A^T per branch instead of per channel.
        for b, s in enumerate(SMALL_POOLS):
            y = (weff_ref[b, 0] * xc[0] + weff_ref[b, 1] * xc[1]
                 + weff_ref[b, 2] * xc[2])            # (32, 128) weighted channel sum
            KA = ka_refs[b][...]                      # (P*s, P*W) = kron(I_P, A_s)
            KL = kl_refs[b][...]                      # (P*W, P*s) = kron(I_P, L_s)
            A = KA[:s, :W]                            # (s, 32)  first diagonal block
            L = KL[:W, :s]                            # (32, s)
            pooled = _mm_bt(_mm(A, y), KA)            # (s, P*s): per-image A y A^T
            q = jnp.maximum(pooled + shift_ref[b], 0.0)   # folded BN shift + ReLU
            up = _mm_bt(_mm(L, q), KL)                # (32, 128): per-image L q L^T
            f_ref[(IN_CH + b) * H:(IN_CH + b + 1) * H, :] = up

        # s == 32 branch: avg-pool(32->32) and align_corners upsample(32->32) are
        # identities (only valid because H == W == 32); VPU-only.
        b32 = len(SMALL_POOLS)
        y32 = (weff_ref[b32, 0] * xc[0] + weff_ref[b32, 1] * xc[1]
               + weff_ref[b32, 2] * xc[2])
        f_ref[(IN_CH + b32) * H:(IN_CH + b32 + 1) * H, :] = jnp.maximum(
            y32 + shift_ref[b32], 0.0)

        # Final 1x1 conv over the 7 concatenated channels as ONE MXU matmul:
        # out_stacked = kron(wf, I_H) @ F + repeat(bias, H).
        out = _mm(wfbig_ref[...], f_ref[...]) + bfrep_ref[...]   # (3*H, 128)
        o_ref[g] = out.reshape(FINAL_OUT, H, PW)


def pyramid_pooling(x, pool_mats, up_mats, weff, shift, wf, bf, *,
                    max_groups=MAX_GROUPS):
    B, C, h, w = x.shape
    assert (C, h, w) == (IN_CH, H, W)
    P = LANE_PACK

    # --- batch-blocking / lane-packing geometry --------------------------------
    nb_raw = -(-B // P)                          # lane-groups needed
    gpb = max(1, min(max_groups, nb_raw))        # lane-groups per grid step
    blk = P * gpb                                # images per grid step
    b_pad = -(-B // blk) * blk
    if b_pad != B:
        x = jnp.pad(x, ((0, b_pad - B), (0, 0), (0, 0), (0, 0)))
    nb = b_pad // P                              # total lane-groups
    # (B, C, H, W) -> (nb, C, H, P*W): lane index = p*W + w (image p of the group).
    xp = x.reshape(nb, P, IN_CH, H, W).transpose(0, 2, 3, 1, 4).reshape(nb, IN_CH, H, PW)

    # --- host-side constant matrices -------------------------------------------
    eye_p = jnp.eye(P, dtype=jnp.float32)
    ka = [jnp.kron(eye_p, pool_mats[i]) for i in range(len(SMALL_POOLS))]   # (P*s, P*W)
    kl = [jnp.kron(eye_p, up_mats[i]) for i in range(len(SMALL_POOLS))]     # (P*W, P*s)
    wf_big = jnp.kron(wf, jnp.eye(H, dtype=jnp.float32))                    # (3*H, 7*H)
    bf_rep = jnp.repeat(bf, H)[:, None]                                     # (3*H, 1)

    smem = pl.BlockSpec(memory_space=pltpu.MemorySpace.SMEM)

    def const(arr):
        return pl.BlockSpec(arr.shape, lambda i: (0, 0))

    in_specs = ([pl.BlockSpec((gpb, IN_CH, H, PW), lambda i: (i, 0, 0, 0))]
                + [const(m) for m in ka] + [const(m) for m in kl]
                + [const(wf_big), const(bf_rep), smem, smem])

    # Rough cost hint so XLA schedules this tiny custom call sensibly.
    fl = 0
    for s in SMALL_POOLS:
        ps = P * s
        fl += 2 * (s * H * PW + s * PW * ps + H * s * ps + H * ps * PW)
    fl += 2 * (FINAL_OUT * H) * (FINAL_IN * H) * PW        # final conv matmul
    fl += 2 * len(POOL_SIZES) * IN_CH * H * PW             # VPU weighted sums
    cost = pl.CostEstimate(
        flops=int(fl * nb), transcendentals=0,
        bytes_accessed=int(b_pad * (IN_CH + FINAL_OUT) * H * W * 4))

    out = pl.pallas_call(
        pyramid_kernel,
        out_shape=jax.ShapeDtypeStruct((nb, FINAL_OUT, H, PW), jnp.float32),
        grid=(nb // gpb,),
        in_specs=in_specs,
        out_specs=pl.BlockSpec((gpb, FINAL_OUT, H, PW), lambda i: (i, 0, 0, 0)),
        scratch_shapes=[pltpu.VMEM((FINAL_IN * H, PW), jnp.float32)],
        compiler_params=pltpu.CompilerParams(dimension_semantics=("parallel",)),
        cost_estimate=cost,
    )(xp, *ka, *kl, wf_big, bf_rep, weff, shift)

    # Unpack lanes back to (B, 3, H, W).
    out = out.reshape(nb, FINAL_OUT, H, P, W).transpose(0, 3, 1, 2, 4)
    return out.reshape(b_pad, FINAL_OUT, H, W)[:B]


# ---------------------------------------------------------------------------
# Deterministic synthetic parameters (shapes dictated by the module __init__).
# ---------------------------------------------------------------------------
def init_params(key):
    ks = jax.random.split(key, 7)
    n = len(POOL_SIZES)
    # Per-branch Conv2d(in_channels, out_channels, 1, bias=False) weights.
    w_branch = 0.3 * jax.random.normal(ks[0], (n, OUT_CH, IN_CH), jnp.float32)
    # Per-branch BatchNorm2d(out_channels) parameters + running stats (eval mode).
    gamma = 1.0 + 0.1 * jax.random.normal(ks[1], (n, OUT_CH), jnp.float32)
    beta = 0.1 * jax.random.normal(ks[2], (n, OUT_CH), jnp.float32)
    run_mean = 0.1 * jax.random.normal(ks[3], (n, OUT_CH), jnp.float32)
    run_var = 1.0 + 0.1 * jax.random.uniform(ks[4], (n, OUT_CH), jnp.float32)
    inv_std = gamma / jnp.sqrt(run_var + EPS)                     # (n, 1)
    weff = (inv_std[:, :, None] * w_branch)[:, 0, :]              # (n, IN_CH)
    shift = (beta - inv_std * run_mean)[:, 0]                     # (n,)
    # Final Conv2d(7, 3, 1) weights + bias.
    wf = 0.3 * jax.random.normal(ks[5], (FINAL_OUT, FINAL_IN), jnp.float32)
    bf = 0.1 * jax.random.normal(ks[6], (FINAL_OUT,), jnp.float32)
    return weff, shift, wf, bf


# ---------------------------------------------------------------------------
# Pure-JAX reference (same math, no Pallas, no identity shortcut) for validation.
# ---------------------------------------------------------------------------
def reference(x, pool_mats, up_mats, weff, shift, wf, bf):
    feats = [x[:, c] for c in range(IN_CH)]
    for s_idx in range(len(POOL_SIZES)):
        A, L = pool_mats[s_idx], up_mats[s_idx]
        pooled = jnp.einsum('oh,bchw,pw->bcop', A, x, A)
        q = jnp.einsum('c,bcop->bop', weff[s_idx], pooled) + shift[s_idx]
        q = jnp.maximum(q, 0.0)
        feats.append(jnp.einsum('ho,bop,wp->bhw', L, q, L))
    stacked = jnp.stack(feats, axis=1)                            # (B, 7, H, W)
    return jnp.einsum('ok,bkhw->bohw', wf, stacked) + bf[None, :, None, None]


if __name__ == "__main__":
    key = jax.random.PRNGKey(0)
    kx, kp = jax.random.split(key)

    B = 6
    x = jax.random.normal(kx, (B, IN_CH, H, W), jnp.float32)
    weff, shift, wf, bf = init_params(kp)

    pool_mats = tuple(_avg_pool_matrix(s, H) for s in POOL_SIZES)
    up_mats = tuple(_bilinear_matrix(H, s) for s in POOL_SIZES)
    # The in-kernel s == 32 shortcut relies on these being exact identities.
    assert bool(jnp.allclose(pool_mats[-1], jnp.eye(H))), "s=32 avg-pool not identity"
    assert bool(jnp.allclose(up_mats[-1], jnp.eye(H))), "s=32 bilinear not identity"

    out = pyramid_pooling(x, pool_mats, up_mats, weff, shift, wf, bf)
    out = jax.block_until_ready(out)

    ref = reference(x, pool_mats, up_mats, weff, shift, wf, bf)
    assert out.shape == (B, FINAL_OUT, H, W), out.shape
    err = float(jnp.max(jnp.abs(out - ref)))
    assert jnp.allclose(out, ref, atol=1e-4, rtol=1e-4), err

    print("KERNEL_OK")
</pallas_src>

<mosaic_0001>
module attributes {stable_mosaic.version = 11 : i64} {
  func.func @pyramid_kernel(%arg0: i32, %arg1: memref<2x3x32x128xf32, #tpu.memory_space<vmem>>, %arg2: memref<16x128xf32, #tpu.memory_space<vmem>>, %arg3: memref<32x128xf32, #tpu.memory_space<vmem>>, %arg4: memref<64x128xf32, #tpu.memory_space<vmem>>, %arg5: memref<128x16xf32, #tpu.memory_space<vmem>>, %arg6: memref<128x32xf32, #tpu.memory_space<vmem>>, %arg7: memref<128x64xf32, #tpu.memory_space<vmem>>, %arg8: memref<96x224xf32, #tpu.memory_space<vmem>>, %arg9: memref<96x1xf32, #tpu.memory_space<vmem>>, %arg10: memref<4x3xf32, #tpu.memory_space<smem>>, %arg11: memref<4xf32, #tpu.memory_space<smem>>, %arg12: memref<2x3x32x128xf32, #tpu.memory_space<vmem>>, %arg13: memref<224x128xf32, #tpu.memory_space<vmem>>) attributes {dimension_semantics = [#tpu.dimension_semantics<parallel>], iteration_bounds = array<i64: 1>, scalar_prefetch = 0 : i64, scratch_operands = 1 : i64, tpu.core_type = #tpu.core_type<tc>, window_params = [{transform_indices = @transform_0, window_bounds = array<i64: 2, 3, 32, 128>}, {pipeline_mode = #tpu.pipeline_mode<synchronous>, transform_indices = @transform_1, window_bounds = array<i64: 16, 128>}, {pipeline_mode = #tpu.pipeline_mode<synchronous>, transform_indices = @transform_2, window_bounds = array<i64: 32, 128>}, {pipeline_mode = #tpu.pipeline_mode<synchronous>, transform_indices = @transform_3, window_bounds = array<i64: 64, 128>}, {pipeline_mode = #tpu.pipeline_mode<synchronous>, transform_indices = @transform_4, window_bounds = array<i64: 128, 16>}, {pipeline_mode = #tpu.pipeline_mode<synchronous>, transform_indices = @transform_5, window_bounds = array<i64: 128, 32>}, {pipeline_mode = #tpu.pipeline_mode<synchronous>, transform_indices = @transform_6, window_bounds = array<i64: 128, 64>}, {pipeline_mode = #tpu.pipeline_mode<synchronous>, transform_indices = @transform_7, window_bounds = array<i64: 96, 224>}, {pipeline_mode = #tpu.pipeline_mode<synchronous>, transform_indices = @transform_8, window_bounds = array<i64: 96, 1>}, {transform_indices = @transform_9, window_bounds = array<i64: 4, 3>}, {transform_indices = @transform_10, window_bounds = array<i64: 4>}, {transform_indices = @transform_11, window_bounds = array<i64: 2, 3, 32, 128>}]} {
    %c0 = arith.constant 0 : index
    %c0_0 = arith.constant 0 : index
    %c0_1 = arith.constant 0 : index
    %c0_2 = arith.constant 0 : index
    %0 = vector.load %arg1[%c0, %c0_0, %c0_1, %c0_2] : memref<2x3x32x128xf32, #tpu.memory_space<vmem>>, vector<1x1x32x128xf32>
    %1 = vector.shape_cast %0 : vector<1x1x32x128xf32> to vector<32x128xf32>
    %c0_3 = arith.constant 0 : index
    %c1 = arith.constant 1 : index
    %c0_4 = arith.constant 0 : index
    %c0_5 = arith.constant 0 : index
    %2 = vector.load %arg1[%c0_3, %c1, %c0_4, %c0_5] : memref<2x3x32x128xf32, #tpu.memory_space<vmem>>, vector<1x1x32x128xf32>
    %3 = vector.shape_cast %2 : vector<1x1x32x128xf32> to vector<32x128xf32>
    %c0_6 = arith.constant 0 : index
    %c2 = arith.constant 2 : index
    %c0_7 = arith.constant 0 : index
    %c0_8 = arith.constant 0 : index
    %4 = vector.load %arg1[%c0_6, %c2, %c0_7, %c0_8] : memref<2x3x32x128xf32, #tpu.memory_space<vmem>>, vector<1x1x32x128xf32>
    %5 = vector.shape_cast %4 : vector<1x1x32x128xf32> to vector<32x128xf32>
    %c0_9 = arith.constant 0 : index
    %c0_10 = arith.constant 0 : index
    %6 = vector.load %arg13[%c0_9, %c0_10] : memref<224x128xf32, #tpu.memory_space<vmem>>, vector<32x128xf32>
    tpu.vector_store %arg13[%c0_9, %c0_10], %1 {strides = array<i32>} : memref<224x128xf32, #tpu.memory_space<vmem>>, vector<32x128xf32>,
    %c32 = arith.constant 32 : index
    %c0_11 = arith.constant 0 : index
    %7 = vector.load %arg13[%c32, %c0_11] : memref<224x128xf32, #tpu.memory_space<vmem>>, vector<32x128xf32>
    tpu.vector_store %arg13[%c32, %c0_11], %3 {strides = array<i32>} : memref<224x128xf32, #tpu.memory_space<vmem>>, vector<32x128xf32>,
    %c64 = arith.constant 64 : index
    %c0_12 = arith.constant 0 : index
    %8 = vector.load %arg13[%c64, %c0_12] : memref<224x128xf32, #tpu.memory_space<vmem>>, vector<32x128xf32>
    tpu.vector_store %arg13[%c64, %c0_12], %5 {strides = array<i32>} : memref<224x128xf32, #tpu.memory_space<vmem>>, vector<32x128xf32>,
    %c0_13 = arith.constant 0 : index
    %c0_14 = arith.constant 0 : index
    %9 = memref.load %arg10[%c0_13, %c0_14] : memref<4x3xf32, #tpu.memory_space<smem>>
    %10 = vector.broadcast %9 : f32 to vector<32x128xf32>
    %11 = arith.mulf %10, %1 : vector<32x128xf32>
    %c0_15 = arith.constant 0 : index
    %c1_16 = arith.constant 1 : index
    %12 = memref.load %arg10[%c0_15, %c1_16] : memref<4x3xf32, #tpu.memory_space<smem>>
    %13 = vector.broadcast %12 : f32 to vector<32x128xf32>
    %14 = arith.mulf %13, %3 : vector<32x128xf32>
    %15 = arith.addf %11, %14 : vector<32x128xf32>
    %c0_17 = arith.constant 0 : index
    %c2_18 = arith.constant 2 : index
    %16 = memref.load %arg10[%c0_17, %c2_18] : memref<4x3xf32, #tpu.memory_space<smem>>
    %17 = vector.broadcast %16 : f32 to vector<32x128xf32>
    %18 = arith.mulf %17, %5 : vector<32x128xf32>
    %19 = arith.addf %15, %18 : vector<32x128xf32>
    %c0_19 = arith.constant 0 : index
    %c0_20 = arith.constant 0 : index
    %20 = vector.load %arg2[%c0_19, %c0_20] : memref<16x128xf32, #tpu.memory_space<vmem>>, vector<16x128xf32>
    %c0_21 = arith.constant 0 : index
    %c0_22 = arith.constant 0 : index
    %21 = vector.load %arg5[%c0_21, %c0_22] : memref<128x16xf32, #tpu.memory_space<vmem>>, vector<128x16xf32>
    %22 = vector.extract_strided_slice %20 {offsets = [0, 0], sizes = [4, 32], strides = [1, 1]} : vector<16x128xf32> to vector<4x32xf32>
    %23 = vector.extract_strided_slice %21 {offsets = [0, 0], sizes = [32, 4], strides = [1, 1]} : vector<128x16xf32> to vector<32x4xf32>
    %cst = arith.constant dense<0.000000e+00> : vector<4x128xf32>
    %24 = tpu.matmul %22, %19, %cst {dimension_numbers = #tpu.dot_dimension_numbers<[1], [0], [0], [1], [0, 0, 1, 1], [], []>} : vector<4x32xf32>, vector<32x128xf32>, vector<4x128xf32> -> vector<4x128xf32>
    %cst_23 = arith.constant dense<0.000000e+00> : vector<4x16xf32>
    %25 = tpu.matmul %24, %20, %cst_23 {dimension_numbers = #tpu.dot_dimension_numbers<[1], [1], [0], [0], [0, 0, 1, 0], [], []>} : vector<4x128xf32>, vector<16x128xf32>, vector<4x16xf32> -> vector<4x16xf32>
    %c0_24 = arith.constant 0 : index
    %26 = memref.load %arg11[%c0_24] : memref<4xf32, #tpu.memory_space<smem>>
    %27 = vector.broadcast %26 : f32 to vector<4x16xf32>
    %28 = arith.addf %25, %27 : vector<4x16xf32>
    %cst_25 = arith.constant 0.000000e+00 : f32
    %29 = vector.broadcast %cst_25 : f32 to vector<4x16xf32>
    %30 = arith.maximumf %28, %29 : vector<4x16xf32>
    %cst_26 = arith.constant dense<0.000000e+00> : vector<32x16xf32>
    %31 = tpu.matmul %23, %30, %cst_26 {dimension_numbers = #tpu.dot_dimension_numbers<[1], [0], [0], [1], [0, 0, 1, 1], [], []>} : vector<32x4xf32>, vector<4x16xf32>, vector<32x16xf32> -> vector<32x16xf32>
    %cst_27 = arith.constant dense<0.000000e+00> : vector<32x128xf32>
    %32 = tpu.matmul %31, %21, %cst_27 {dimension_numbers = #tpu.dot_dimension_numbers<[1], [1], [0], [0], [0, 0, 1, 0], [], []>} : vector<32x16xf32>, vector<128x16xf32>, vector<32x128xf32> -> vector<32x128xf32>
    %c96 = arith.constant 96 : index
    %c0_28 = arith.constant 0 : index
    %33 = vector.load %arg13[%c96, %c0_28] : memref<224x128xf32, #tpu.memory_space<vmem>>, vector<32x128xf32>
    tpu.vector_store %arg13[%c96, %c0_28], %32 {strides = array<i32>} : memref<224x128xf32, #tpu.memory_space<vmem>>, vector<32x128xf32>,
    %c1_29 = arith.constant 1 : index
    %c0_30 = arith.constant 0 : index
    %34 = memref.load %arg10[%c1_29, %c0_30] : memref<4x3xf32, #tpu.memory_space<smem>>
    %35 = vector.broadcast %34 : f32 to vector<32x128xf32>
    %36 = arith.mulf %35, %1 : vector<32x128xf32>
    %c1_31 = arith.constant 1 : index
    %c1_32 = arith.constant 1 : index
    %37 = memref.load %arg10[%c1_31, %c1_32] : memref<4x3xf32, #tpu.memory_space<smem>>
    %38 = vector.broadcast %37 : f32 to vector<32x128xf32>
    %39 = arith.mulf %38, %3 : vector<32x128xf32>
    %40 = arith.addf %36, %39 : vector<32x128xf32>
    %c1_33 = arith.constant 1 : index
    %c2_34 = arith.constant 2 : index
    %41 = memref.load %arg10[%c1_33, %c2_34] : memref<4x3xf32, #tpu.memory_space<smem>>
    %42 = vector.broadcast %41 : f32 to vector<32x128xf32>
    %43 = arith.mulf %42, %5 : vector<32x128xf32>
    %44 = arith.addf %40, %43 : vector<32x128xf32>
    %c0_35 = arith.constant 0 : index
    %c0_36 = arith.constant 0 : index
    %45 = vector.load %arg3[%c0_35, %c0_36] : memref<32x128xf32, #tpu.memory_space<vmem>>, vector<32x128xf32>
    %c0_37 = arith.constant 0 : index
    %c0_38 = arith.constant 0 : index
    %46 = vector.load %arg6[%c0_37, %c0_38] : memref<128x32xf32, #tpu.memory_space<vmem>>, vector<128x32xf32>
    %47 = vector.extract_strided_slice %45 {offsets = [0, 0], sizes = [8, 32], strides = [1, 1]} : vector<32x128xf32> to vector<8x32xf32>
    %48 = vector.extract_strided_slice %46 {offsets = [0, 0], sizes = [32, 8], strides = [1, 1]} : vector<128x32xf32> to vector<32x8xf32>
    %cst_39 = arith.constant dense<0.000000e+00> : vector<8x128xf32>
    %49 = tpu.matmul %47, %44, %cst_39 {dimension_numbers = #tpu.dot_dimension_numbers<[1], [0], [0], [1], [0, 0, 1, 1], [], []>} : vector<8x32xf32>, vector<32x128xf32>, vector<8x128xf32> -> vector<8x128xf32>
    %cst_40 = arith.constant dense<0.000000e+00> : vector<8x32xf32>
    %50 = tpu.matmul %49, %45, %cst_40 {dimension_numbers = #tpu.dot_dimension_numbers<[1], [1], [0], [0], [0, 0, 1, 0], [], []>} : vector<8x128xf32>, vector<32x128xf32>, vector<8x32xf32> -> vector<8x32xf32>
    %c1_41 = arith.constant 1 : index
    %51 = memref.load %arg11[%c1_41] : memref<4xf32, #tpu.memory_space<smem>>
    %52 = vector.broadcast %51 : f32 to vector<8x32xf32>
    %53 = arith.addf %50, %52 : vector<8x32xf32>
    %cst_42 = arith.constant 0.000000e+00 : f32
    %54 = vector.broadcast %cst_42 : f32 to vector<8x32xf32>
    %55 = arith.maximumf %53, %54 : vector<8x32xf32>
    %cst_43 = arith.constant dense<0.000000e+00> : vector<32x32xf32>
    %56 = tpu.matmul %48, %55, %cst_43 {dimension_numbers = #tpu.dot_dimension_numbers<[1], [0], [0], [1], [0, 0, 1, 1], [], []>} : vector<32x8xf32>, vector<8x32xf32>, vector<32x32xf32> -> vector<32x32xf32>
    %cst_44 = arith.constant dense<0.000000e+00> : vector<32x128xf32>
    %57 = tpu.matmul %56, %46, %cst_44 {dimension_numbers = #tpu.dot_dimension_numbers<[1], [1], [0], [0], [0, 0, 1, 0], [], []>} : vector<32x32xf32>, vector<128x32xf32>, vector<32x128xf32> -> vector<32x128xf32>
    %c128 = arith.constant 128 : index
    %c0_45 = arith.constant 0 : index
    %58 = vector.load %arg13[%c128, %c0_45] : memref<224x128xf32, #tpu.memory_space<vmem>>, vector<32x128xf32>
    tpu.vector_store %arg13[%c128, %c0_45], %57 {strides = array<i32>} : memref<224x128xf32, #tpu.memory_space<vmem>>, vector<32x128xf32>,
    %c2_46 = arith.constant 2 : index
    %c0_47 = arith.constant 0 : index
    %59 = memref.load %arg10[%c2_46, %c0_47] : memref<4x3xf32, #tpu.memory_space<smem>>
    %60 = vector.broadcast %59 : f32 to vector<32x128xf32>
    %61 = arith.mulf %60, %1 : vector<32x128xf32>
    %c2_48 = arith.constant 2 : index
    %c1_49 = arith.constant 1 : index
    %62 = memref.load %arg10[%c2_48, %c1_49] : memref<4x3xf32, #tpu.memory_space<smem>>
    %63 = vector.broadcast %62 : f32 to vector<32x128xf32>
    %64 = arith.mulf %63, %3 : vector<32x128xf32>
    %65 = arith.addf %61, %64 : vector<32x128xf32>
    %c2_50 = arith.constant 2 : index
    %c2_51 = arith.constant 2 : index
    %66 = memref.load %arg10[%c2_50, %c2_51] : memref<4x3xf32, #tpu.memory_space<smem>>
    %67 = vector.broadcast %66 : f32 to vector<32x128xf32>
    %68 = arith.mulf %67, %5 : vector<32x128xf32>
    %69 = arith.addf %65, %68 : vector<32x128xf32>
    %c0_52 = arith.constant 0 : index
    %c0_53 = arith.constant 0 : index
    %70 = vector.load %arg4[%c0_52, %c0_53] : memref<64x128xf32, #tpu.memory_space<vmem>>, vector<64x128xf32>
    %c0_54 = arith.constant 0 : index
    %c0_55 = arith.constant 0 : index
    %71 = vector.load %arg7[%c0_54, %c0_55] : memref<128x64xf32, #tpu.memory_space<vmem>>, vector<128x64xf32>
    %72 = vector.extract_strided_slice %70 {offsets = [0, 0], sizes = [16, 32], strides = [1, 1]} : vector<64x128xf32> to vector<16x32xf32>
    %73 = vector.extract_strided_slice %71 {offsets = [0, 0], sizes = [32, 16], strides = [1, 1]} : vector<128x64xf32> to vector<32x16xf32>
    %cst_56 = arith.constant dense<0.000000e+00> : vector<16x128xf32>
    %74 = tpu.matmul %72, %69, %cst_56 {dimension_numbers = #tpu.dot_dimension_numbers<[1], [0], [0], [1], [0, 0, 1, 1], [], []>} : vector<16x32xf32>, vector<32x128xf32>, vector<16x128xf32> -> vector<16x128xf32>
    %cst_57 = arith.constant dense<0.000000e+00> : vector<16x64xf32>
    %75 = tpu.matmul %74, %70, %cst_57 {dimension_numbers = #tpu.dot_dimension_numbers<[1], [1], [0], [0], [0, 0, 1, 0], [], []>} : vector<16x128xf32>, vector<64x128xf32>, vector<16x64xf32> -> vector<16x64xf32>
    %c2_58 = arith.constant 2 : index
    %76 = memref.load %arg11[%c2_58] : memref<4xf32, #tpu.memory_space<smem>>
    %77 = vector.broadcast %76 : f32 to vector<16x64xf32>
    %78 = arith.addf %75, %77 : vector<16x64xf32>
    %cst_59 = arith.constant 0.000000e+00 : f32
    %79 = vector.broadcast %cst_59 : f32 to vector<16x64xf32>
    %80 = arith.maximumf %78, %79 : vector<16x64xf32>
    %cst_60 = arith.constant dense<0.000000e+00> : vector<32x64xf32>
    %81 = tpu.matmul %73, %80, %cst_60 {dimension_numbers = #tpu.dot_dimension_numbers<[1], [0], [0], [1], [0, 0, 1, 1], [], []>} : vector<32x16xf32>, vector<16x64xf32>, vector<32x64xf32> -> vector<32x64xf32>
    %cst_61 = arith.constant dense<0.000000e+00> : vector<32x128xf32>
    %82 = tpu.matmul %81, %71, %cst_61 {dimension_numbers = #tpu.dot_dimension_numbers<[1], [1], [0], [0], [0, 0, 1, 0], [], []>} : vector<32x64xf32>, vector<128x64xf32>, vector<32x128xf32> -> vector<32x128xf32>
    %c160 = arith.constant 160 : index
    %c0_62 = arith.constant 0 : index
    %83 = vector.load %arg13[%c160, %c0_62] : memref<224x128xf32, #tpu.memory_space<vmem>>, vector<32x128xf32>
    tpu.vector_store %arg13[%c160, %c0_62], %82 {strides = array<i32>} : memref<224x128xf32, #tpu.memory_space<vmem>>, vector<32x128xf32>,
    %c3 = arith.constant 3 : index
    %c0_63 = arith.constant 0 : index
    %84 = memref.load %arg10[%c3, %c0_63] : memref<4x3xf32, #tpu.memory_space<smem>>
    %85 = vector.broadcast %84 : f32 to vector<32x128xf32>
    %86 = arith.mulf %85, %1 : vector<32x128xf32>
    %c3_64 = arith.constant 3 : index
    %c1_65 = arith.constant 1 : index
    %87 = memref.load %arg10[%c3_64, %c1_65] : memref<4x3xf32, #tpu.memory_space<smem>>
    %88 = vector.broadcast %87 : f32 to vector<32x128xf32>
    %89 = arith.mulf %88, %3 : vector<32x128xf32>
    %90 = arith.addf %86, %89 : vector<32x128xf32>
    %c3_66 = arith.constant 3 : index
    %c2_67 = arith.constant 2 : index
    %91 = memref.load %arg10[%c3_66, %c2_67] : memref<4x3xf32, #tpu.memory_space<smem>>
    %92 = vector.broadcast %91 : f32 to vector<32x128xf32>
    %93 = arith.mulf %92, %5 : vector<32x128xf32>
    %94 = arith.addf %90, %93 : vector<32x128xf32>
    %c3_68 = arith.constant 3 : index
    %95 = memref.load %arg11[%c3_68] : memref<4xf32, #tpu.memory_space<smem>>
    %96 = vector.broadcast %95 : f32 to vector<32x128xf32>
    %97 = arith.addf %94, %96 : vector<32x128xf32>
    %cst_69 = arith.constant 0.000000e+00 : f32
    %98 = vector.broadcast %cst_69 : f32 to vector<32x128xf32>
    %99 = arith.maximumf %97, %98 : vector<32x128xf32>
    %c192 = arith.constant 192 : index
    %c0_70 = arith.constant 0 : index
    %100 = vector.load %arg13[%c192, %c0_70] : memref<224x128xf32, #tpu.memory_space<vmem>>, vector<32x128xf32>
    tpu.vector_store %arg13[%c192, %c0_70], %99 {strides = array<i32>} : memref<224x128xf32, #tpu.memory_space<vmem>>, vector<32x128xf32>,
    %c0_71 = arith.constant 0 : index
    %c0_72 = arith.constant 0 : index
    %101 = vector.load %arg8[%c0_71, %c0_72] : memref<96x224xf32, #tpu.memory_space<vmem>>, vector<96x224xf32>
    %c0_73 = arith.constant 0 : index
    %c0_74 = arith.constant 0 : index
    %102 = vector.load %arg13[%c0_73, %c0_74] : memref<224x128xf32, #tpu.memory_space<vmem>>, vector<224x128xf32>
    %cst_75 = arith.constant dense<0.000000e+00> : vector<96x128xf32>
    %103 = tpu.matmul %101, %102, %cst_75 {dimension_numbers = #tpu.dot_dimension_numbers<[1], [0], [0], [1], [0, 0, 1, 1], [], []>} : vector<96x224xf32>, vector<224x128xf32>, vector<96x128xf32> -> vector<96x128xf32>
    %c0_76 = arith.constant 0 : index
    %c0_77 = arith.constant 0 : index
    %104 = vector.load %arg9[%c0_76, %c0_77] : memref<96x1xf32, #tpu.memory_space<vmem>>, vector<96x1xf32>
    %105 = vector.broadcast %104 : vector<96x1xf32> to vector<96x128xf32>
    %106 = arith.addf %103, %105 : vector<96x128xf32>
    %107 = vector.shape_cast %106 : vector<96x128xf32> to vector<3x32x128xf32>
    %c0_78 = arith.constant 0 : index
    %c0_79 = arith.constant 0 : index
    %c0_80 = arith.constant 0 : index
    %c0_81 = arith.constant 0 : index
    %108 = vector.load %arg12[%c0_78, %c0_79, %c0_80, %c0_81] : memref<2x3x32x128xf32, #tpu.memory_space<vmem>>, vector<1x3x32x128xf32>
    %109 = vector.shape_cast %108 : vector<1x3x32x128xf32> to vector<3x32x128xf32>
    %110 = vector.shape_cast %107 : vector<3x32x128xf32> to vector<1x3x32x128xf32>
    tpu.vector_store %arg12[%c0_78, %c0_79, %c0_80, %c0_81], %110 {strides = array<i32>} : memref<2x3x32x128xf32, #tpu.memory_space<vmem>>, vector<1x3x32x128xf32>,
    %c1_82 = arith.constant 1 : index
    %c0_83 = arith.constant 0 : index
    %c0_84 = arith.constant 0 : index
    %c0_85 = arith.constant 0 : index
    %111 = vector.load %arg1[%c1_82, %c0_83, %c0_84, %c0_85] : memref<2x3x32x128xf32, #tpu.memory_space<vmem>>, vector<1x1x32x128xf32>
    %112 = vector.shape_cast %111 : vector<1x1x32x128xf32> to vector<32x128xf32>
    %c1_86 = arith.constant 1 : index
    %c1_87 = arith.constant 1 : index
    %c0_88 = arith.constant 0 : index
    %c0_89 = arith.constant 0 : index
    %113 = vector.load %arg1[%c1_86, %c1_87, %c0_88, %c0_89] : memref<2x3x32x128xf32, #tpu.memory_space<vmem>>, vector<1x1x32x128xf32>
    %114 = vector.shape_cast %113 : vector<1x1x32x128xf32> to vector<32x128xf32>
    %c1_90 = arith.constant 1 : index
    %c2_91 = arith.constant 2 : index
    %c0_92 = arith.constant 0 : index
    %c0_93 = arith.constant 0 : index
    %115 = vector.load %arg1[%c1_90, %c2_91, %c0_92, %c0_93] : memref<2x3x32x128xf32, #tpu.memory_space<vmem>>, vector<1x1x32x128xf32>
    %116 = vector.shape_cast %115 : vector<1x1x32x128xf32> to vector<32x128xf32>
    %c0_94 = arith.constant 0 : index
    %c0_95 = arith.constant 0 : index
    %117 = vector.load %arg13[%c0_94, %c0_95] : memref<224x128xf32, #tpu.memory_space<vmem>>, vector<32x128xf32>
    tpu.vector_store %arg13[%c0_94, %c0_95], %112 {strides = array<i32>} : memref<224x128xf32, #tpu.memory_space<vmem>>, vector<32x128xf32>,
    %c32_96 = arith.constant 32 : index
    %c0_97 = arith.constant 0 : index
    %118 = vector.load %arg13[%c32_96, %c0_97] : memref<224x128xf32, #tpu.memory_space<vmem>>, vector<32x128xf32>
    tpu.vector_store %arg13[%c32_96, %c0_97], %114 {strides = array<i32>} : memref<224x128xf32, #tpu.memory_space<vmem>>, vector<32x128xf32>,
    %c64_98 = arith.constant 64 : index
    %c0_99 = arith.constant 0 : index
    %119 = vector.load %arg13[%c64_98, %c0_99] : memref<224x128xf32, #tpu.memory_space<vmem>>, vector<32x128xf32>
    tpu.vector_store %arg13[%c64_98, %c0_99], %116 {strides = array<i32>} : memref<224x128xf32, #tpu.memory_space<vmem>>, vector<32x128xf32>,
    %c0_100 = arith.constant 0 : index
    %c0_101 = arith.constant 0 : index
    %120 = memref.load %arg10[%c0_100, %c0_101] : memref<4x3xf32, #tpu.memory_space<smem>>
    %121 = vector.broadcast %120 : f32 to vector<32x128xf32>
    %122 = arith.mulf %121, %112 : vector<32x128xf32>
    %c0_102 = arith.constant 0 : index
    %c1_103 = arith.constant 1 : index
    %123 = memref.load %arg10[%c0_102, %c1_103] : memref<4x3xf32, #tpu.memory_space<smem>>
    %124 = vector.broadcast %123 : f32 to vector<32x128xf32>
    %125 = arith.mulf %124, %114 : vector<32x128xf32>
    %126 = arith.addf %122, %125 : vector<32x128xf32>
    %c0_104 = arith.constant 0 : index
    %c2_105 = arith.constant 2 : index
    %127 = memref.load %arg10[%c0_104, %c2_105] : memref<4x3xf32, #tpu.memory_space<smem>>
    %128 = vector.broadcast %127 : f32 to vector<32x128xf32>
    %129 = arith.mulf %128, %116 : vector<32x128xf32>
    %130 = arith.addf %126, %129 : vector<32x128xf32>
    %c0_106 = arith.constant 0 : index
    %c0_107 = arith.constant 0 : index
    %131 = vector.load %arg2[%c0_106, %c0_107] : memref<16x128xf32, #tpu.memory_space<vmem>>, vector<16x128xf32>
    %c0_108 = arith.constant 0 : index
    %c0_109 = arith.constant 0 : index
    %132 = vector.load %arg5[%c0_108, %c0_109] : memref<128x16xf32, #tpu.memory_space<vmem>>, vector<128x16xf32>
    %133 = vector.extract_strided_slice %131 {offsets = [0, 0], sizes = [4, 32], strides = [1, 1]} : vector<16x128xf32> to vector<4x32xf32>
    %134 = vector.extract_strided_slice %132 {offsets = [0, 0], sizes = [32, 4], strides = [1, 1]} : vector<128x16xf32> to vector<32x4xf32>
    %cst_110 = arith.constant dense<0.000000e+00> : vector<4x128xf32>
    %135 = tpu.matmul %133, %130, %cst_110 {dimension_numbers = #tpu.dot_dimension_numbers<[1], [0], [0], [1], [0, 0, 1, 1], [], []>} : vector<4x32xf32>, vector<32x128xf32>, vector<4x128xf32> -> vector<4x128xf32>
    %cst_111 = arith.constant dense<0.000000e+00> : vector<4x16xf32>
    %136 = tpu.matmul %135, %131, %cst_111 {dimension_numbers = #tpu.dot_dimension_numbers<[1], [1], [0], [0], [0, 0, 1, 0], [], []>} : vector<4x128xf32>, vector<16x128xf32>, vector<4x16xf32> -> vector<4x16xf32>
    %c0_112 = arith.constant 0 : index
    %137 = memref.load %arg11[%c0_112] : memref<4xf32, #tpu.memory_space<smem>>
    %138 = vector.broadcast %137 : f32 to vector<4x16xf32>
    %139 = arith.addf %136, %138 : vector<4x16xf32>
    %cst_113 = arith.constant 0.000000e+00 : f32
    %140 = vector.broadcast %cst_113 : f32 to vector<4x16xf32>
    %141 = arith.maximumf %139, %140 : vector<4x16xf32>
    %cst_114 = arith.constant dense<0.000000e+00> : vector<32x16xf32>
    %142 = tpu.matmul %134, %141, %cst_114 {dimension_numbers = #tpu.dot_dimension_numbers<[1], [0], [0], [1], [0, 0, 1, 1], [], []>} : vector<32x4xf32>, vector<4x16xf32>, vector<32x16xf32> -> vector<32x16xf32>
    %cst_115 = arith.constant dense<0.000000e+00> : vector<32x128xf32>
    %143 = tpu.matmul %142, %132, %cst_115 {dimension_numbers = #tpu.dot_dimension_numbers<[1], [1], [0], [0], [0, 0, 1, 0], [], []>} : vector<32x16xf32>, vector<128x16xf32>, vector<32x128xf32> -> vector<32x128xf32>
    %c96_116 = arith.constant 96 : index
    %c0_117 = arith.constant 0 : index
    %144 = vector.load %arg13[%c96_116, %c0_117] : memref<224x128xf32, #tpu.memory_space<vmem>>, vector<32x128xf32>
    tpu.vector_store %arg13[%c96_116, %c0_117], %143 {strides = array<i32>} : memref<224x128xf32, #tpu.memory_space<vmem>>, vector<32x128xf32>,
    %c1_118 = arith.constant 1 : index
    %c0_119 = arith.constant 0 : index
    %145 = memref.load %arg10[%c1_118, %c0_119] : memref<4x3xf32, #tpu.memory_space<smem>>
    %146 = vector.broadcast %145 : f32 to vector<32x128xf32>
    %147 = arith.mulf %146, %112 : vector<32x128xf32>
    %c1_120 = arith.constant 1 : index
    %c1_121 = arith.constant 1 : index
    %148 = memref.load %arg10[%c1_120, %c1_121] : memref<4x3xf32, #tpu.memory_space<smem>>
    %149 = vector.broadcast %148 : f32 to vector<32x128xf32>
    %150 = arith.mulf %149, %114 : vector<32x128xf32>
    %151 = arith.addf %147, %150 : vector<32x128xf32>
    %c1_122 = arith.constant 1 : index
    %c2_123 = arith.constant 2 : index
    %152 = memref.load %arg10[%c1_122, %c2_123] : memref<4x3xf32, #tpu.memory_space<smem>>
    %153 = vector.broadcast %152 : f32 to vector<32x128xf32>
    %154 = arith.mulf %153, %116 : vector<32x128xf32>
    %155 = arith.addf %151, %154 : vector<32x128xf32>
    %c0_124 = arith.constant 0 : index
    %c0_125 = arith.constant 0 : index
    %156 = vector.load %arg3[%c0_124, %c0_125] : memref<32x128xf32, #tpu.memory_space<vmem>>, vector<32x128xf32>
    %c0_126 = arith.constant 0 : index
    %c0_127 = arith.constant 0 : index
    %157 = vector.load %arg6[%c0_126, %c0_127] : memref<128x32xf32, #tpu.memory_space<vmem>>, vector<128x32xf32>
    %158 = vector.extract_strided_slice %156 {offsets = [0, 0], sizes = [8, 32], strides = [1, 1]} : vector<32x128xf32> to vector<8x32xf32>
    %159 = vector.extract_strided_slice %157 {offsets = [0, 0], sizes = [32, 8], strides = [1, 1]} : vector<128x32xf32> to vector<32x8xf32>
    %cst_128 = arith.constant dense<0.000000e+00> : vector<8x128xf32>
    %160 = tpu.matmul %158, %155, %cst_128 {dimension_numbers = #tpu.dot_dimension_numbers<[1], [0], [0], [1], [0, 0, 1, 1], [], []>} : vector<8x32xf32>, vector<32x128xf32>, vector<8x128xf32> -> vector<8x128xf32>
    %cst_129 = arith.constant dense<0.000000e+00> : vector<8x32xf32>
    %161 = tpu.matmul %160, %156, %cst_129 {dimension_numbers = #tpu.dot_dimension_numbers<[1], [1], [0], [0], [0, 0, 1, 0], [], []>} : vector<8x128xf32>, vector<32x128xf32>, vector<8x32xf32> -> vector<8x32xf32>
    %c1_130 = arith.constant 1 : index
    %162 = memref.load %arg11[%c1_130] : memref<4xf32, #tpu.memory_space<smem>>
    %163 = vector.broadcast %162 : f32 to vector<8x32xf32>
    %164 = arith.addf %161, %163 : vector<8x32xf32>
    %cst_131 = arith.constant 0.000000e+00 : f32
    %165 = vector.broadcast %cst_131 : f32 to vector<8x32xf32>
    %166 = arith.maximumf %164, %165 : vector<8x32xf32>
    %cst_132 = arith.constant dense<0.000000e+00> : vector<32x32xf32>
    %167 = tpu.matmul %159, %166, %cst_132 {dimension_numbers = #tpu.dot_dimension_numbers<[1], [0], [0], [1], [0, 0, 1, 1], [], []>} : vector<32x8xf32>, vector<8x32xf32>, vector<32x32xf32> -> vector<32x32xf32>
    %cst_133 = arith.constant dense<0.000000e+00> : vector<32x128xf32>
    %168 = tpu.matmul %167, %157, %cst_133 {dimension_numbers = #tpu.dot_dimension_numbers<[1], [1], [0], [0], [0, 0, 1, 0], [], []>} : vector<32x32xf32>, vector<128x32xf32>, vector<32x128xf32> -> vector<32x128xf32>
    %c128_134 = arith.constant 128 : index
    %c0_135 = arith.constant 0 : index
    %169 = vector.load %arg13[%c128_134, %c0_135] : memref<224x128xf32, #tpu.memory_space<vmem>>, vector<32x128xf32>
    tpu.vector_store %arg13[%c128_134, %c0_135], %168 {strides = array<i32>} : memref<224x128xf32, #tpu.memory_space<vmem>>, vector<32x128xf32>,
    %c2_136 = arith.constant 2 : index
    %c0_137 = arith.constant 0 : index
    %170 = memref.load %arg10[%c2_136, %c0_137] : memref<4x3xf32, #tpu.memory_space<smem>>
    %171 = vector.broadcast %170 : f32 to vector<32x128xf32>
    %172 = arith.mulf %171, %112 : vector<32x128xf32>
    %c2_138 = arith.constant 2 : index
    %c1_139 = arith.constant 1 : index
    %173 = memref.load %arg10[%c2_138, %c1_139] : memref<4x3xf32, #tpu.memory_space<smem>>
    %174 = vector.broadcast %173 : f32 to vector<32x128xf32>
    %175 = arith.mulf %174, %114 : vector<32x128xf32>
    %176 = arith.addf %172, %175 : vector<32x128xf32>
    %c2_140 = arith.constant 2 : index
    %c2_141 = arith.constant 2 : index
    %177 = memref.load %arg10[%c2_140, %c2_141] : memref<4x3xf32, #tpu.memory_space<smem>>
    %178 = vector.broadcast %177 : f32 to vector<32x128xf32>
    %179 = arith.mulf %178, %116 : vector<32x128xf32>
    %180 = arith.addf %176, %179 : vector<32x128xf32>
    %c0_142 = arith.constant 0 : index
    %c0_143 = arith.constant 0 : index
    %181 = vector.load %arg4[%c0_142, %c0_143] : memref<64x128xf32, #tpu.memory_space<vmem>>, vector<64x128xf32>
    %c0_144 = arith.constant 0 : index
    %c0_145 = arith.constant 0 : index
    %182 = vector.load %arg7[%c0_144, %c0_145] : memref<128x64xf32, #tpu.memory_space<vmem>>, vector<128x64xf32>
    %183 = vector.extract_strided_slice %181 {offsets = [0, 0], sizes = [16, 32], strides = [1, 1]} : vector<64x128xf32> to vector<16x32xf32>
    %184 = vector.extract_strided_slice %182 {offsets = [0, 0], sizes = [32, 16], strides = [1, 1]} : vector<128x64xf32> to vector<32x16xf32>
    %cst_146 = arith.constant dense<0.000000e+00> : vector<16x128xf32>
    %185 = tpu.matmul %183, %180, %cst_146 {dimension_numbers = #tpu.dot_dimension_numbers<[1], [0], [0], [1], [0, 0, 1, 1], [], []>} : vector<16x32xf32>, vector<32x128xf32>, vector<16x128xf32> -> vector<16x128xf32>
    %cst_147 = arith.constant dense<0.000000e+00> : vector<16x64xf32>
    %186 = tpu.matmul %185, %181, %cst_147 {dimension_numbers = #tpu.dot_dimension_numbers<[1], [1], [0], [0], [0, 0, 1, 0], [], []>} : vector<16x128xf32>, vector<64x128xf32>, vector<16x64xf32> -> vector<16x64xf32>
    %c2_148 = arith.constant 2 : index
    %187 = memref.load %arg11[%c2_148] : memref<4xf32, #tpu.memory_space<smem>>
    %188 = vector.broadcast %187 : f32 to vector<16x64xf32>
    %189 = arith.addf %186, %188 : vector<16x64xf32>
    %cst_149 = arith.constant 0.000000e+00 : f32
    %190 = vector.broadcast %cst_149 : f32 to vector<16x64xf32>
    %191 = arith.maximumf %189, %190 : vector<16x64xf32>
    %cst_150 = arith.constant dense<0.000000e+00> : vector<32x64xf32>
    %192 = tpu.matmul %184, %191, %cst_150 {dimension_numbers = #tpu.dot_dimension_numbers<[1], [0], [0], [1], [0, 0, 1, 1], [], []>} : vector<32x16xf32>, vector<16x64xf32>, vector<32x64xf32> -> vector<32x64xf32>
    %cst_151 = arith.constant dense<0.000000e+00> : vector<32x128xf32>
    %193 = tpu.matmul %192, %182, %cst_151 {dimension_numbers = #tpu.dot_dimension_numbers<[1], [1], [0], [0], [0, 0, 1, 0], [], []>} : vector<32x64xf32>, vector<128x64xf32>, vector<32x128xf32> -> vector<32x128xf32>
    %c160_152 = arith.constant 160 : index
    %c0_153 = arith.constant 0 : index
    %194 = vector.load %arg13[%c160_152, %c0_153] : memref<224x128xf32, #tpu.memory_space<vmem>>, vector<32x128xf32>
    tpu.vector_store %arg13[%c160_152, %c0_153], %193 {strides = array<i32>} : memref<224x128xf32, #tpu.memory_space<vmem>>, vector<32x128xf32>,
    %c3_154 = arith.constant 3 : index
    %c0_155 = arith.constant 0 : index
    %195 = memref.load %arg10[%c3_154, %c0_155] : memref<4x3xf32, #tpu.memory_space<smem>>
    %196 = vector.broadcast %195 : f32 to vector<32x128xf32>
    %197 = arith.mulf %196, %112 : vector<32x128xf32>
    %c3_156 = arith.constant 3 : index
    %c1_157 = arith.constant 1 : index
    %198 = memref.load %arg10[%c3_156, %c1_157] : memref<4x3xf32, #tpu.memory_space<smem>>
    %199 = vector.broadcast %198 : f32 to vector<32x128xf32>
    %200 = arith.mulf %199, %114 : vector<32x128xf32>
    %201 = arith.addf %197, %200 : vector<32x128xf32>
    %c3_158 = arith.constant 3 : index
    %c2_159 = arith.constant 2 : index
    %202 = memref.load %arg10[%c3_158, %c2_159] : memref<4x3xf32, #tpu.memory_space<smem>>
    %203 = vector.broadcast %202 : f32 to vector<32x128xf32>
    %204 = arith.mulf %203, %116 : vector<32x128xf32>
    %205 = arith.addf %201, %204 : vector<32x128xf32>
    %c3_160 = arith.constant 3 : index
    %206 = memref.load %arg11[%c3_160] : memref<4xf32, #tpu.memory_space<smem>>
    %207 = vector.broadcast %206 : f32 to vector<32x128xf32>
    %208 = arith.addf %205, %207 : vector<32x128xf32>
    %cst_161 = arith.constant 0.000000e+00 : f32
    %209 = vector.broadcast %cst_161 : f32 to vector<32x128xf32>
    %210 = arith.maximumf %208, %209 : vector<32x128xf32>
    %c192_162 = arith.constant 192 : index
    %c0_163 = arith.constant 0 : index
    %211 = vector.load %arg13[%c192_162, %c0_163] : memref<224x128xf32, #tpu.memory_space<vmem>>, vector<32x128xf32>
    tpu.vector_store %arg13[%c192_162, %c0_163], %210 {strides = array<i32>} : memref<224x128xf32, #tpu.memory_space<vmem>>, vector<32x128xf32>,
    %c0_164 = arith.constant 0 : index
    %c0_165 = arith.constant 0 : index
    %212 = vector.load %arg8[%c0_164, %c0_165] : memref<96x224xf32, #tpu.memory_space<vmem>>, vector<96x224xf32>
    %c0_166 = arith.constant 0 : index
    %c0_167 = arith.constant 0 : index
    %213 = vector.load %arg13[%c0_166, %c0_167] : memref<224x128xf32, #tpu.memory_space<vmem>>, vector<224x128xf32>
    %cst_168 = arith.constant dense<0.000000e+00> : vector<96x128xf32>
    %214 = tpu.matmul %212, %213, %cst_168 {dimension_numbers = #tpu.dot_dimension_numbers<[1], [0], [0], [1], [0, 0, 1, 1], [], []>} : vector<96x224xf32>, vector<224x128xf32>, vector<96x128xf32> -> vector<96x128xf32>
    %c0_169 = arith.constant 0 : index
    %c0_170 = arith.constant 0 : index
    %215 = vector.load %arg9[%c0_169, %c0_170] : memref<96x1xf32, #tpu.memory_space<vmem>>, vector<96x1xf32>
    %216 = vector.broadcast %215 : vector<96x1xf32> to vector<96x128xf32>
    %217 = arith.addf %214, %216 : vector<96x128xf32>
    %218 = vector.shape_cast %217 : vector<96x128xf32> to vector<3x32x128xf32>
    %c1_171 = arith.constant 1 : index
    %c0_172 = arith.constant 0 : index
    %c0_173 = arith.constant 0 : index
    %c0_174 = arith.constant 0 : index
    %219 = vector.load %arg12[%c1_171, %c0_172, %c0_173, %c0_174] : memref<2x3x32x128xf32, #tpu.memory_space<vmem>>, vector<1x3x32x128xf32>
    %220 = vector.shape_cast %219 : vector<1x3x32x128xf32> to vector<3x32x128xf32>
    %221 = vector.shape_cast %218 : vector<3x32x128xf32> to vector<1x3x32x128xf32>
    tpu.vector_store %arg12[%c1_171, %c0_172, %c0_173, %c0_174], %221 {strides = array<i32>} : memref<2x3x32x128xf32, #tpu.memory_space<vmem>>, vector<1x3x32x128xf32>,
    return
  }
  func.func @transform_0(%arg0: i32) -> (i32, i32, i32, i32) {
    %c0_i32 = arith.constant 0 : i32
    %c0_i32_0 = arith.constant 0 : i32
    %c0_i32_1 = arith.constant 0 : i32
    %c0_i32_2 = arith.constant 0 : i32
    return %arg0, %c0_i32, %c0_i32_0, %c0_i32_1 : i32, i32, i32, i32
  }
  func.func @transform_1(%arg0: i32) -> (i32, i32) {
    %c0_i32 = arith.constant 0 : i32
    %c0_i32_0 = arith.constant 0 : i32
    %c0_i32_1 = arith.constant 0 : i32
    return %c0_i32, %c0_i32_0 : i32, i32
  }
  func.func @transform_2(%arg0: i32) -> (i32, i32) {
    %c0_i32 = arith.constant 0 : i32
    %c0_i32_0 = arith.constant 0 : i32
    %c0_i32_1 = arith.constant 0 : i32
    return %c0_i32, %c0_i32_0 : i32, i32
  }
  func.func @transform_3(%arg0: i32) -> (i32, i32) {
    %c0_i32 = arith.constant 0 : i32
    %c0_i32_0 = arith.constant 0 : i32
    %c0_i32_1 = arith.constant 0 : i32
    return %c0_i32, %c0_i32_0 : i32, i32
  }
  func.func @transform_4(%arg0: i32) -> (i32, i32) {
    %c0_i32 = arith.constant 0 : i32
    %c0_i32_0 = arith.constant 0 : i32
    %c0_i32_1 = arith.constant 0 : i32
    return %c0_i32, %c0_i32_0 : i32, i32
  }
  func.func @transform_5(%arg0: i32) -> (i32, i32) {
    %c0_i32 = arith.constant 0 : i32
    %c0_i32_0 = arith.constant 0 : i32
    %c0_i32_1 = arith.constant 0 : i32
    return %c0_i32, %c0_i32_0 : i32, i32
  }
  func.func @transform_6(%arg0: i32) -> (i32, i32) {
    %c0_i32 = arith.constant 0 : i32
    %c0_i32_0 = arith.constant 0 : i32
    %c0_i32_1 = arith.constant 0 : i32
    return %c0_i32, %c0_i32_0 : i32, i32
  }
  func.func @transform_7(%arg0: i32) -> (i32, i32) {
    %c0_i32 = arith.constant 0 : i32
    %c0_i32_0 = arith.constant 0 : i32
    %c0_i32_1 = arith.constant 0 : i32
    return %c0_i32, %c0_i32_0 : i32, i32
  }
  func.func @transform_8(%arg0: i32) -> (i32, i32) {
    %c0_i32 = arith.constant 0 : i32
    %c0_i32_0 = arith.constant 0 : i32
    %c0_i32_1 = arith.constant 0 : i32
    return %c0_i32, %c0_i32_0 : i32, i32
  }
  func.func @transform_9(%arg0: i32) -> (i32, i32) {
    %c0_i32 = arith.constant 0 : i32
    %c0_i32_0 = arith.constant 0 : i32
    %c0_i32_1 = arith.constant 0 : i32
    return %c0_i32, %c0_i32_0 : i32, i32
  }
  func.func @transform_10(%arg0: i32) -> i32 {
    %c0_i32 = arith.constant 0 : i32
    %c0_i32_0 = arith.constant 0 : i32
    return %c0_i32 : i32
  }
  func.func @transform_11(%arg0: i32) -> (i32, i32, i32, i32) {
    %c0_i32 = arith.constant 0 : i32
    %c0_i32_0 = arith.constant 0 : i32
    %c0_i32_1 = arith.constant 0 : i32
    %c0_i32_2 = arith.constant 0 : i32
    return %arg0, %c0_i32, %c0_i32_0, %c0_i32_1 : i32, i32, i32, i32
  }
}

</mosaic_0001>

<llo_original>
// kernel: tpu_custom_call.1
$region0: #{tpu_custom_call.1}
  #allocation0 [shape = 'u32[]', space=smem, size = 0x4, offset = 0x4, fixed_abs, tag = 'smem constant byte address 0x4 - core index']
  #allocation1 [shape = 'u32[144,128]{1,0:T(1,128)}', space=vmem, size = 0x12000, scoped, tag = 'internal scratch']
  #allocation2 [shape = 'f32[224,128]{1,0:T(8,128)}', space=vmem, size = 0x1c000, scoped, tag = 'scratch operand']
  %s0 = inlined_call_operand.vmem [shape: f32[2,3,32,128], index: 0, kind: input, shape index: {}]
  %s1 = inlined_call_operand.vmem [shape: f32[16,128], index: 1, kind: input, shape index: {}]
  %s2 = inlined_call_operand.vmem [shape: f32[32,128], index: 2, kind: input, shape index: {}]
  %s3 = inlined_call_operand.vmem [shape: f32[64,128], index: 3, kind: input, shape index: {}]
  %s4 = inlined_call_operand.vmem [shape: f32[128,16], index: 4, kind: input, shape index: {}]
  %s5 = inlined_call_operand.vmem [shape: f32[128,32], index: 5, kind: input, shape index: {}]
  %s6 = inlined_call_operand.vmem [shape: f32[128,64], index: 6, kind: input, shape index: {}]
  %s7 = inlined_call_operand.vmem [shape: f32[96,224], index: 7, kind: input, shape index: {}]
  %s8 = inlined_call_operand.vmem [shape: f32[96,1], index: 8, kind: input, shape index: {}]
  %s9 = inlined_call_operand.vmem [shape: f32[4,3], index: 9, kind: input, shape index: {}]
  %s10 = inlined_call_operand.vmem [shape: f32[4], index: 10, kind: input, shape index: {}]
  %s11 = inlined_call_operand.hbm [shape: f32[2,3,32,128], index: 11, kind: output, shape index: {}]
  %s12 = sld [smem:[#allocation0]]
  $region62: #{tpu_custom_call.1} parent=0
    _
  %s14 = ssub.s32 1, %s12
  %s15 = scalar_select 0, %s14, %s12
  $region1: #{tpu_custom_call.1} parent=0
    #allocation3 [shape = 'u8[2048]{0}', space=smem, size = 0x800, scoped, tag = 'input window, operand 9, single buffered']
    #allocation4 [shape = 's32[1]{0}', space=sflag, size = 0x4, scoped, tag = 'scoped memory for tpu_custom_call.1']
    #allocation5 [shape = 's32[1]{0}', space=sflag, size = 0x4, scoped, tag = 'scoped memory for tpu_custom_call.1']
    #allocation6 [shape = 'u8[512]{0}', space=smem, size = 0x200, scoped, tag = 'input window, operand 10, single buffered']
    #allocation7 [shape = 's32[1]{0}', space=sflag, size = 0x4, scoped, tag = 'scoped memory for tpu_custom_call.1']
    #allocation8 [shape = 'u8[98304]{0}', space=vmem, size = 0x18000, scoped, tag = 'output window, operand 0, single buffered']
    %16 = vsyncpa [#allocation5], 0
    %17 = vsyncpa [#allocation7], 0
    %18 = vsyncpa [#allocation4], 0
    // Predicated region
    $region2: #{tpu_custom_call.1} parent=1 // pred_check
      _
    $region3: #{tpu_custom_call.1} parent=1 // pred_check_branch
      %20 = sbr.rel (0) target = $region5
    $region4: #{tpu_custom_call.1} parent=1 // pred_region
      _
    $region5: #{tpu_custom_call.1} parent=1 // pred_fallthru
      _
    // Predicated region
    $region6: #{tpu_custom_call.1} parent=1 // pred_check
      _
    $region7: #{tpu_custom_call.1} parent=1 // pred_check_branch
      %22 = sbr.rel (0) target = $region9
    $region8: #{tpu_custom_call.1} parent=1 // pred_region
      _
    $region9: #{tpu_custom_call.1} parent=1 // pred_fallthru
      _
    // Predicated region
    $region10: #{tpu_custom_call.1} parent=1 // pred_check
      _
    $region11: #{tpu_custom_call.1} parent=1 // pred_check_branch
      %24 = sbr.rel (0) target = $region13
    $region12: #{tpu_custom_call.1} parent=1 // pred_region
      _
    $region13: #{tpu_custom_call.1} parent=1 // pred_fallthru
      _
    // Predicated region
    $region14: #{tpu_custom_call.1} parent=1 // pred_check
      _
    $region15: #{tpu_custom_call.1} parent=1 // pred_check_branch
      %26 = sbr.rel (0) target = $region17
    $region16: #{tpu_custom_call.1} parent=1 // pred_region
      _
    $region17: #{tpu_custom_call.1} parent=1 // pred_fallthru
      _
    // Predicated region
    $region18: #{tpu_custom_call.1} parent=1 // pred_check
      _
    $region19: #{tpu_custom_call.1} parent=1 // pred_check_branch
      %28 = sbr.rel (0) target = $region21
    $region20: #{tpu_custom_call.1} parent=1 // pred_region
      _
    $region21: #{tpu_custom_call.1} parent=1 // pred_fallthru
      _
    // Predicated region
    $region22: #{tpu_custom_call.1} parent=1 // pred_check
      _
    $region23: #{tpu_custom_call.1} parent=1 // pred_check_branch
      %30 = sbr.rel (0) target = $region25
    $region24: #{tpu_custom_call.1} parent=1 // pred_region
      _
    $region25: #{tpu_custom_call.1} parent=1 // pred_fallthru
      _
    // Predicated region
    $region26: #{tpu_custom_call.1} parent=1 // pred_check
      _
    $region27: #{tpu_custom_call.1} parent=1 // pred_check_branch
      %32 = sbr.rel (0) target = $region29
    $region28: #{tpu_custom_call.1} parent=1 // pred_region
      _
    $region29: #{tpu_custom_call.1} parent=1 // pred_fallthru
      _
    // Predicated region
    $region30: #{tpu_custom_call.1} parent=1 // pred_check
      _
    $region31: #{tpu_custom_call.1} parent=1 // pred_check_branch
      %34 = sbr.rel (0) target = $region33
    $region32: #{tpu_custom_call.1} parent=1 // pred_region
      _
    $region33: #{tpu_custom_call.1} parent=1 // pred_fallthru
      _
    // Predicated region
    $region34: #{tpu_custom_call.1} parent=1 // pred_check
      _
    $region35: #{tpu_custom_call.1} parent=1 // pred_check_branch
      %36 = sbr.rel (0) target = $region37
    $region36: #{tpu_custom_call.1} parent=1 // pred_region
      _
    $region37: #{tpu_custom_call.1} parent=1 // pred_fallthru
      _
    // Predicated region
    $region38: #{tpu_custom_call.1} parent=1 // pred_check
      _
    $region39: #{tpu_custom_call.1} parent=1 // pred_check_branch
      %38 = sbr.rel (0) target = $region41
    $region40: #{tpu_custom_call.1} parent=1 // pred_region
      %s40 = ssub.s32 64, 64
      %41 = vsyncadd [#allocation5], %s40
      %s43 = sshll.u32 %s9, 4
      %s44 = int_to_ptr.vmem [resolvable:$true] %s43
      %46 = dma.vmem_to_smem %s44, 64, [#allocation3], [#allocation5]
    $region41: #{tpu_custom_call.1} parent=1 // pred_fallthru
      _
    // Predicated region
    $region42: #{tpu_custom_call.1} parent=1 // pred_check
      _
    $region43: #{tpu_custom_call.1} parent=1 // pred_check_branch
      %48 = sbr.rel (0) target = $region45
    $region44: #{tpu_custom_call.1} parent=1 // pred_region
      %s50 = ssub.s32 16, 16
      %51 = vsyncadd [#allocation7], %s50
      %s53 = sshll.u32 %s10, 4
      %s54 = int_to_ptr.vmem [resolvable:$true] %s53
      %56 = dma.vmem_to_smem %s54, 16, [#allocation6], [#allocation7]
    $region45: #{tpu_custom_call.1} parent=1 // pred_fallthru
      _
    // Predicated region
    $region46: #{tpu_custom_call.1} parent=1 // pred_check
      _
    $region47: #{tpu_custom_call.1} parent=1 // pred_check_branch
      %58 = sbr.rel (0) target = $region49
    $region48: #{tpu_custom_call.1} parent=1 // pred_region
      %59 = dma.done [#allocation5], 64
    $region49: #{tpu_custom_call.1} parent=1 // pred_fallthru
      _
    // Predicated region
    $region50: #{tpu_custom_call.1} parent=1 // pred_check
      _
    $region51: #{tpu_custom_call.1} parent=1 // pred_check_branch
      %61 = sbr.rel (0) target = $region53
    $region52: #{tpu_custom_call.1} parent=1 // pred_region
      %62 = dma.done [#allocation7], 16
    $region53: #{tpu_custom_call.1} parent=1 // pred_fallthru
      _
    %63 = sfence
    %v64 = vld [vmem:[%s0] sm:$0xff]
    %v65 = vld [vmem:[%s0 + $0x8] sm:$0xff]
    %v66 = vld [vmem:[%s0 + $0x10] sm:$0xff]
    %v67 = vld [vmem:[%s0 + $0x18] sm:$0xff]
    %s68 = scalar_lea.vmem %s0, 32
    %v69 = vld [vmem:[%s68] sm:$0xff]
    %v70 = vld [vmem:[%s68 + $0x8] sm:$0xff]
    %v71 = vld [vmem:[%s68 + $0x10] sm:$0xff]
    %v72 = vld [vmem:[%s68 + $0x18] sm:$0xff]
    %s73 = scalar_lea.vmem %s0, 64
    %v74 = vld [vmem:[%s73] sm:$0xff]
    %v75 = vld [vmem:[%s73 + $0x8] sm:$0xff]
    %v76 = vld [vmem:[%s73 + $0x10] sm:$0xff]
    %v77 = vld [vmem:[%s73 + $0x18] sm:$0xff]
    %78 = vst [vmem:[#allocation2] sm:$0xff] %v64
    %79 = vst [vmem:[#allocation2 + $0x8] sm:$0xff] %v65
    %80 = vst [vmem:[#allocation2 + $0x10] sm:$0xff] %v66
    %81 = vst [vmem:[#allocation2 + $0x18] sm:$0xff] %v67
    %82 = vst [vmem:[#allocation2 + $0x20] sm:$0xff] %v69
    %83 = vst [vmem:[#allocation2 + $0x28] sm:$0xff] %v70
    %84 = vst [vmem:[#allocation2 + $0x30] sm:$0xff] %v71
    %85 = vst [vmem:[#allocation2 + $0x38] sm:$0xff] %v72
    %86 = vst [vmem:[#allocation2 + $0x40] sm:$0xff] %v74
    %87 = vst [vmem:[#allocation2 + $0x48] sm:$0xff] %v75
    %88 = vst [vmem:[#allocation2 + $0x50] sm:$0xff] %v76
    %89 = vst [vmem:[#allocation2 + $0x58] sm:$0xff] %v77
    %s90 = sld [smem:[#allocation3]]
    %v91 = vstv %s90
    %v92 = vmul.f32 %v91, %v64
    %v93 = vmul.f32 %v91, %v65
    %v94 = vmul.f32 %v91, %v66
    %v95 = vmul.f32 %v91, %v67
    %s96 = sld [smem:[#allocation3 + $0x1]]
    %v97 = vstv %s96
    %v98 = vmul.f32 %v97, %v69
    %v99 = vmul.f32 %v97, %v70
    %v100 = vmul.f32 %v97, %v71
    %v101 = vmul.f32 %v97, %v72
    %v102 = vadd.f32 %v92, %v98
    %v103 = vadd.f32 %v93, %v99
    %v104 = vadd.f32 %v94, %v100
    %v105 = vadd.f32 %v95, %v101
    %s106 = sld [smem:[#allocation3 + $0x2]]
    %v107 = vstv %s106
    %v108 = vmul.f32 %v107, %v74
    %v109 = vmul.f32 %v107, %v75
    %v110 = vmul.f32 %v107, %v76
    %v111 = vmul.f32 %v107, %v77
    %v112 = vadd.f32 %v102, %v108
    %v113 = vadd.f32 %v103, %v109
    %v114 = vadd.f32 %v104, %v110
    %v115 = vadd.f32 %v105, %v111
    %v116 = vld [vmem:[%s1] sm:$0xff]
    %v117 = vld [vmem:[%s1 + $0x8] sm:$0xff]
    %v118 = vld [vmem:[%s4] sm:$0xff]
    %v119 = vld [vmem:[%s4 + $0x8] sm:$0xff]
    %v120 = vld [vmem:[%s4 + $0x10] sm:$0xff]
    %v121 = vld [vmem:[%s4 + $0x18] sm:$0xff]
    %v122 = vld [vmem:[%s4 + $0x20] sm:$0xff]
    %v123 = vld [vmem:[%s4 + $0x28] sm:$0xff]
    %v124 = vld [vmem:[%s4 + $0x30] sm:$0xff]
    %v125 = vld [vmem:[%s4 + $0x38] sm:$0xff]
    %v126 = vld [vmem:[%s4 + $0x40] sm:$0xff]
    %v127 = vld [vmem:[%s4 + $0x48] sm:$0xff]
    %v128 = vld [vmem:[%s4 + $0x50] sm:$0xff]
    %v129 = vld [vmem:[%s4 + $0x58] sm:$0xff]
    %v130 = vld [vmem:[%s4 + $0x60] sm:$0xff]
    %v131 = vld [vmem:[%s4 + $0x68] sm:$0xff]
    %v132 = vld [vmem:[%s4 + $0x70] sm:$0xff]
    %v133 = vld [vmem:[%s4 + $0x78] sm:$0xff]
    %vm134 = vcmask 261120
    %v136 = vsel %vm134, %v116, 0
    %138 = vmatprep.subr.mxu0 0.0
    %139 = vmatpush1.msra.mxu0 %v112
    %140 = vmatprep.subr.mxu0 0.0
    %141 = vmatpush1.msra.mxu0 %v113
    %142 = vmatprep.subr.mxu0 0.0
    %143 = vmatpush1.msra.mxu0 %v114
    %144 = vmatprep.subr.mxu0 0.0
    %145 = vmatpush1.msra.mxu0 %v115
    %146 = vmatprep.subr.mxu0 0.0
    %147 = vmatpush1.msra.mxu0 0.0
    %148 = vmatprep.subr.mxu0 0.0
    %149 = vmatpush1.msra.mxu0 0.0
    %150 = vmatprep.subr.mxu0 0.0
    %151 = vmatpush1.msra.mxu0 0.0
    %152 = vmatprep.subr.mxu0 0.0
    %153 = vmatpush1.msra.mxu0 0.0
    %154 = vmatprep.subr.mxu0 0.0
    %155 = vmatpush1.msra.mxu0 0.0
    %156 = vmatprep.subr.mxu0 0.0
    %157 = vmatpush1.msra.mxu0 0.0
    %158 = vmatprep.subr.mxu0 0.0
    %159 = vmatpush1.msra.mxu0 0.0
    %160 = vmatprep.subr.mxu0 0.0
    %161 = vmatpush1.msra.mxu0 0.0
    %162 = vmatprep.subr.mxu0 0.0
    %163 = vmatpush1.msra.mxu0 0.0
    %164 = vmatprep.subr.mxu0 0.0
    %165 = vmatpush1.msra.mxu0 0.0
    %166 = vmatprep.subr.mxu0 0.0
    %167 = vmatpush1.msra.mxu0 0.0
    %168 = vmatprep.subr.mxu0 0.0
    %169 = vmatpush1.msra.mxu0 0.0
    %170 = vmatprep.subr.mxu0 0.0
    %171 = vmatpush1.msra.mxu0 0.0
    %172 = vmatprep.subr.mxu0 0.0
    %173 = vmatpush1.msra.mxu0 0.0
    %174 = vmatprep.subr.mxu0 0.0
    %175 = vmatpush1.msra.mxu0 0.0
    %176 = vmatprep.subr.mxu0 0.0
    %177 = vmatpush1.msra.mxu0 0.0
    %178 = vmatprep.subr.mxu0 0.0
    %179 = vmatpush1.msra.mxu0 0.0
    %180 = vmatprep.subr.mxu0 0.0
    %181 = vmatpush1.msra.mxu0 0.0
    %182 = vmatprep.subr.mxu0 0.0
    %183 = vmatpush1.msra.mxu0 0.0
    %184 = vmatprep.subr.mxu0 0.0
    %185 = vmatpush1.msra.mxu0 0.0
    %186 = vmatprep.subr.mxu0 0.0
    %187 = vmatpush1.msra.mxu0 0.0
    %188 = vmatprep.subr.mxu0 0.0
    %189 = vmatpush1.msra.mxu0 0.0
    %190 = vmatprep.subr.mxu0 0.0
    %191 = vmatpush1.msra.mxu0 0.0
    %192 = vmatprep.subr.mxu0 0.0
    %193 = vmatpush1.msra.mxu0 0.0
    %194 = vmatprep.subr.mxu0 0.0
    %195 = vmatpush1.msra.mxu0 0.0
    %196 = vmatprep.subr.mxu0 0.0
    %197 = vmatpush1.msra.mxu0 0.0
    %198 = vmatprep.subr.mxu0 0.0
    %199 = vmatpush1.msra.mxu0 0.0
    %200 = vmatprep.subr.mxu0 0.0
    %201 = vmatpush1.msra.mxu0 0.0
    %202 = vmatprep.mubr.f32.mxu0 0.0
    %203 = vmatmul.mubr.f32.gmra.mrb[0].mxu0 %v136
    %v204 = vpop.f32.mrb[0].mxu0
    %v205 = vadd.f32 0.0, %v204
    %v206 = vpop.f32.mrb[0].mxu0
    %207 = vdwg.mxu0
    %s208 = sld [smem:[#allocation6]]
    %v209 = vstv %s208
    %210 = vmatprep.subr.mxu0 0.0
    %211 = vmatpush1.xpose.msra.mxu0 %v116
    %212 = vmatprep.subr.mxu0 0.0
    %213 = vmatpush1.xpose.msra.mxu0 %v117
    %214 = vmatprep.subr.mxu0 0.0
    %215 = vmatpush1.xpose.msra.mxu0 0.0
    %216 = vmatprep.subr.mxu0 0.0
    %217 = vmatpush1.xpose.msra.mxu0 0.0
    %218 = vmatprep.subr.mxu0 0.0
    %219 = vmatpush1.xpose.msra.mxu0 0.0
    %220 = vmatprep.subr.mxu0 0.0
    %221 = vmatpush1.xpose.msra.mxu0 0.0
    %222 = vmatprep.subr.mxu0 0.0
    %223 = vmatpush1.xpose.msra.mxu0 0.0
    %224 = vmatprep.subr.mxu0 0.0
    %225 = vmatpush1.xpose.msra.mxu0 0.0
    %226 = vmatprep.subr.mxu0 0.0
    %227 = vmatpush1.xpose.msra.mxu0 0.0
    %228 = vmatprep.subr.mxu0 0.0
    %229 = vmatpush1.xpose.msra.mxu0 0.0
    %230 = vmatprep.subr.mxu0 0.0
    %231 = vmatpush1.xpose.msra.mxu0 0.0
    %232 = vmatprep.subr.mxu0 0.0
    %233 = vmatpush1.xpose.msra.mxu0 0.0
    %234 = vmatprep.subr.mxu0 0.0
    %235 = vmatpush1.xpose.msra.mxu0 0.0
    %236 = vmatprep.subr.mxu0 0.0
    %237 = vmatpush1.xpose.msra.mxu0 0.0
    %238 = vmatprep.subr.mxu0 0.0
    %239 = vmatpush1.xpose.msra.mxu0 0.0
    %240 = vmatprep.subr.mxu0 0.0
    %241 = vmatpush1.xpose.msra.mxu0 0.0
    %242 = vmatprep.subr.mxu0 0.0
    %243 = vmatpush1.xpose.msra.mxu0 0.0
    %244 = vmatprep.subr.mxu0 0.0
    %245 = vmatpush1.xpose.msra.mxu0 0.0
    %246 = vmatprep.subr.mxu0 0.0
    %247 = vmatpush1.xpose.msra.mxu0 0.0
    %248 = vmatprep.subr.mxu0 0.0
    %249 = vmatpush1.xpose.msra.mxu0 0.0
    %250 = vmatprep.subr.mxu0 0.0
    %251 = vmatpush1.xpose.msra.mxu0 0.0
    %252 = vmatprep.subr.mxu0 0.0
    %253 = vmatpush1.xpose.msra.mxu0 0.0
    %254 = vmatprep.subr.mxu0 0.0
    %255 = vmatpush1.xpose.msra.mxu0 0.0
    %256 = vmatprep.subr.mxu0 0.0
    %257 = vmatpush1.xpose.msra.mxu0 0.0
    %258 = vmatprep.subr.mxu0 0.0
    %259 = vmatpush1.xpose.msra.mxu0 0.0
    %260 = vmatprep.subr.mxu0 0.0
    %261 = vmatpush1.xpose.msra.mxu0 0.0
    %262 = vmatprep.subr.mxu0 0.0
    %263 = vmatpush1.xpose.msra.mxu0 0.0
    %264 = vmatprep.subr.mxu0 0.0
    %265 = vmatpush1.xpose.msra.mxu0 0.0
    %266 = vmatprep.subr.mxu0 0.0
    %267 = vmatpush1.xpose.msra.mxu0 0.0
    %268 = vmatprep.subr.mxu0 0.0
    %269 = vmatpush1.xpose.msra.mxu0 0.0
    %270 = vmatprep.subr.mxu0 0.0
    %271 = vmatpush1.xpose.msra.mxu0 0.0
    %272 = vmatprep.subr.mxu0 0.0
    %273 = vmatpush1.xpose.msra.mxu0 0.0
    %274 = vmatprep.mubr.f32.mxu0 0.0
    %275 = vmatmul.mubr.f32.gmra.mrb[0].mxu0 %v205
    %v276 = vpop.f32.mrb[0].mxu0
    %v277 = vadd.f32 %v209, %v276
    %v278 = vpop.f32.mrb[0].mxu0
    %279 = vdwg.mxu0
    %v280 = vmax.f32 %v277, 0.0
    %vm281 = vcmask 31744
    %v283 = vsel %vm281, %v118, 0
    %v286 = vsel %vm281, %v119, 0
    %v289 = vsel %vm281, %v120, 0
    %v292 = vsel %vm281, %v121, 0
    %vm294 = vcmask 1043456
    %v296 = vsel %vm294, %v280, 0
    %298 = vmatprep.subr.mxu0 0.0
    %299 = vmatpush1.msra.mxu0 %v296
    %300 = vmatprep.subr.mxu0 0.0
    %301 = vmatpush1.msra.mxu0 0.0
    %302 = vmatprep.subr.mxu0 0.0
    %303 = vmatpush1.msra.mxu0 0.0
    %304 = vmatprep.subr.mxu0 0.0
    %305 = vmatpush1.msra.mxu0 0.0
    %306 = vmatprep.subr.mxu0 0.0
    %307 = vmatpush1.msra.mxu0 0.0
    %308 = vmatprep.subr.mxu0 0.0
    %309 = vmatpush1.msra.mxu0 0.0
    %310 = vmatprep.subr.mxu0 0.0
    %311 = vmatpush1.msra.mxu0 0.0
    %312 = vmatprep.subr.mxu0 0.0
    %313 = vmatpush1.msra.mxu0 0.0
    %314 = vmatprep.subr.mxu0 0.0
    %315 = vmatpush1.msra.mxu0 0.0
    %316 = vmatprep.subr.mxu0 0.0
    %317 = vmatpush1.msra.mxu0 0.0
    %318 = vmatprep.subr.mxu0 0.0
    %319 = vmatpush1.msra.mxu0 0.0
    %320 = vmatprep.subr.mxu0 0.0
    %321 = vmatpush1.msra.mxu0 0.0
    %322 = vmatprep.subr.mxu0 0.0
    %323 = vmatpush1.msra.mxu0 0.0
    %324 = vmatprep.subr.mxu0 0.0
    %325 = vmatpush1.msra.mxu0 0.0
    %326 = vmatprep.subr.mxu0 0.0
    %327 = vmatpush1.msra.mxu0 0.0
    %328 = vmatprep.subr.mxu0 0.0
    %329 = vmatpush1.msra.mxu0 0.0
    %330 = vmatprep.subr.mxu0 0.0
    %331 = vmatpush1.msra.mxu0 0.0
    %332 = vmatprep.subr.mxu0 0.0
    %333 = vmatpush1.msra.mxu0 0.0
    %334 = vmatprep.subr.mxu0 0.0
    %335 = vmatpush1.msra.mxu0 0.0
    %336 = vmatprep.subr.mxu0 0.0
    %337 = vmatpush1.msra.mxu0 0.0
    %338 = vmatprep.subr.mxu0 0.0
    %339 = vmatpush1.msra.mxu0 0.0
    %340 = vmatprep.subr.mxu0 0.0
    %341 = vmatpush1.msra.mxu0 0.0
    %342 = vmatprep.subr.mxu0 0.0
    %343 = vmatpush1.msra.mxu0 0.0
    %344 = vmatprep.subr.mxu0 0.0
    %345 = vmatpush1.msra.mxu0 0.0
    %346 = vmatprep.subr.mxu0 0.0
    %347 = vmatpush1.msra.mxu0 0.0
    %348 = vmatprep.subr.mxu0 0.0
    %349 = vmatpush1.msra.mxu0 0.0
    %350 = vmatprep.subr.mxu0 0.0
    %351 = vmatpush1.msra.mxu0 0.0
    %352 = vmatprep.subr.mxu0 0.0
    %353 = vmatpush1.msra.mxu0 0.0
    %354 = vmatprep.subr.mxu0 0.0
    %355 = vmatpush1.msra.mxu0 0.0
    %356 = vmatprep.subr.mxu0 0.0
    %357 = vmatpush1.msra.mxu0 0.0
    %358 = vmatprep.subr.mxu0 0.0
    %359 = vmatpush1.msra.mxu0 0.0
    %360 = vmatprep.subr.mxu0 0.0
    %361 = vmatpush1.msra.mxu0 0.0
    %362 = vmatprep.mubr.f32.mxu0 0.0
    %363 = vmatmul.mubr.f32.gmra.mrb[0].mxu0 %v283
    %v364 = vpop.f32.mrb[0].mxu0
    %v365 = vadd.f32 0.0, %v364
    %v366 = vpop.f32.mrb[0].mxu0
    %367 = vmatprep.mubr.f32.mxu0 0.0
    %368 = vmatmul.mubr.f32.gmra.mrb[0].mxu0 %v286
    %v369 = vpop.f32.mrb[0].mxu0
    %v370 = vadd.f32 0.0, %v369
    %v371 = vpop.f32.mrb[0].mxu0
    %372 = vmatprep.mubr.f32.mxu0 0.0
    %373 = vmatmul.mubr.f32.gmra.mrb[0].mxu0 %v289
    %v374 = vpop.f32.mrb[0].mxu0
    %v375 = vadd.f32 0.0, %v374
    %v376 = vpop.f32.mrb[0].mxu0
    %377 = vmatprep.mubr.f32.mxu0 0.0
    %378 = vmatmul.mubr.f32.gmra.mrb[0].mxu0 %v292
    %v379 = vpop.f32.mrb[0].mxu0
    %v380 = vadd.f32 0.0, %v379
    %v381 = vpop.f32.mrb[0].mxu0
    %382 = vdwg.mxu0
    %vm383 = vcmask 130048
    %v385 = vsel %vm383, %v365, 0
    %v388 = vsel %vm383, %v370, 0
    %v391 = vsel %vm383, %v375, 0
    %v394 = vsel %vm383, %v380, 0
    %v396 = vsel %vm383, %v118, 0
    %v398 = vsel %vm383, %v119, 0
    %v400 = vsel %vm383, %v120, 0
    %v402 = vsel %vm383, %v121, 0
    %v405 = vsel %vm383, %v122, 0
    %v408 = vsel %vm383, %v123, 0
    %v411 = vsel %vm383, %v124, 0
    %v414 = vsel %vm383, %v125, 0
    %v417 = vsel %vm383, %v126, 0
    %v420 = vsel %vm383, %v127, 0
    %v423 = vsel %vm383, %v128, 0
    %v426 = vsel %vm383, %v129, 0
    %v429 = vsel %vm383, %v130, 0
    %v432 = vsel %vm383, %v131, 0
    %v435 = vsel %vm383, %v132, 0
    %v438 = vsel %vm383, %v133, 0
    %440 = vmatprep.subr.mxu0 0.0
    %441 = vmatpush1.xpose.msra.mxu0 %v396
    %442 = vmatprep.subr.mxu0 0.0
    %443 = vmatpush1.xpose.msra.mxu0 %v398
    %444 = vmatprep.subr.mxu0 0.0
    %445 = vmatpush1.xpose.msra.mxu0 %v400
    %446 = vmatprep.subr.mxu0 0.0
    %447 = vmatpush1.xpose.msra.mxu0 %v402
    %448 = vmatprep.subr.mxu0 0.0
    %449 = vmatpush1.xpose.msra.mxu0 %v405
    %450 = vmatprep.subr.mxu0 0.0
    %451 = vmatpush1.xpose.msra.mxu0 %v408
    %452 = vmatprep.subr.mxu0 0.0
    %453 = vmatpush1.xpose.msra.mxu0 %v411
    %454 = vmatprep.subr.mxu0 0.0
    %455 = vmatpush1.xpose.msra.mxu0 %v414
    %456 = vmatprep.subr.mxu0 0.0
    %457 = vmatpush1.xpose.msra.mxu0 %v417
    %458 = vmatprep.subr.mxu0 0.0
    %459 = vmatpush1.xpose.msra.mxu0 %v420
    %460 = vmatprep.subr.mxu0 0.0
    %461 = vmatpush1.xpose.msra.mxu0 %v423
    %462 = vmatprep.subr.mxu0 0.0
    %463 = vmatpush1.xpose.msra.mxu0 %v426
    %464 = vmatprep.subr.mxu0 0.0
    %465 = vmatpush1.xpose.msra.mxu0 %v429
    %466 = vmatprep.subr.mxu0 0.0
    %467 = vmatpush1.xpose.msra.mxu0 %v432
    %468 = vmatprep.subr.mxu0 0.0
    %469 = vmatpush1.xpose.msra.mxu0 %v435
    %470 = vmatprep.subr.mxu0 0.0
    %471 = vmatpush1.xpose.msra.mxu0 %v438
    %472 = vmatprep.subr.mxu0 0.0
    %473 = vmatpush1.xpose.msra.mxu0 0.0
    %474 = vmatprep.subr.mxu0 0.0
    %475 = vmatpush1.xpose.msra.mxu0 0.0
    %476 = vmatprep.subr.mxu0 0.0
    %477 = vmatpush1.xpose.msra.mxu0 0.0
    %478 = vmatprep.subr.mxu0 0.0
    %479 = vmatpush1.xpose.msra.mxu0 0.0
    %480 = vmatprep.subr.mxu0 0.0
    %481 = vmatpush1.xpose.msra.mxu0 0.0
    %482 = vmatprep.subr.mxu0 0.0
    %483 = vmatpush1.xpose.msra.mxu0 0.0
    %484 = vmatprep.subr.mxu0 0.0
    %485 = vmatpush1.xpose.msra.mxu0 0.0
    %486 = vmatprep.subr.mxu0 0.0
    %487 = vmatpush1.xpose.msra.mxu0 0.0
    %488 = vmatprep.subr.mxu0 0.0
    %489 = vmatpush1.xpose.msra.mxu0 0.0
    %490 = vmatprep.subr.mxu0 0.0
    %491 = vmatpush1.xpose.msra.mxu0 0.0
    %492 = vmatprep.subr.mxu0 0.0
    %493 = vmatpush1.xpose.msra.mxu0 0.0
    %494 = vmatprep.subr.mxu0 0.0
    %495 = vmatpush1.xpose.msra.mxu0 0.0
    %496 = vmatprep.subr.mxu0 0.0
    %497 = vmatpush1.xpose.msra.mxu0 0.0
    %498 = vmatprep.subr.mxu0 0.0
    %499 = vmatpush1.xpose.msra.mxu0 0.0
    %500 = vmatprep.subr.mxu0 0.0
    %501 = vmatpush1.xpose.msra.mxu0 0.0
    %502 = vmatprep.subr.mxu0 0.0
    %503 = vmatpush1.xpose.msra.mxu0 0.0
    %504 = vmatprep.mubr.f32.mxu0 0.0
    %505 = vmatmul.mubr.f32.gmra.mrb[0].mxu0 %v385
    %v506 = vpop.f32.mrb[0].mxu0
    %v507 = vadd.f32 0.0, %v506
    %v508 = vpop.f32.mrb[0].mxu0
    %509 = vmatprep.mubr.f32.mxu0 0.0
    %510 = vmatmul.mubr.f32.gmra.mrb[0].mxu0 %v388
    %v511 = vpop.f32.mrb[0].mxu0
    %v512 = vadd.f32 0.0, %v511
    %v513 = vpop.f32.mrb[0].mxu0
    %514 = vmatprep.mubr.f32.mxu0 0.0
    %515 = vmatmul.mubr.f32.gmra.mrb[0].mxu0 %v391
    %v516 = vpop.f32.mrb[0].mxu0
    %v517 = vadd.f32 0.0, %v516
    %v518 = vpop.f32.mrb[0].mxu0
    %519 = vmatprep.mubr.f32.mxu0 0.0
    %520 = vmatmul.mubr.f32.gmra.mrb[0].mxu0 %v394
    %v521 = vpop.f32.mrb[0].mxu0
    %v522 = vadd.f32 0.0, %v521
    %v523 = vpop.f32.mrb[0].mxu0
    %524 = vdwg.mxu0
    %525 = vst [vmem:[#allocation2 + $0x60] sm:$0xff] %v507
    %526 = vst [vmem:[#allocation2 + $0x68] sm:$0xff] %v512
    %527 = vst [vmem:[#allocation2 + $0x70] sm:$0xff] %v517
    %528 = vst [vmem:[#allocation2 + $0x78] sm:$0xff] %v522
    %s529 = sld [smem:[#allocation3 + $0x80]]
    %v530 = vstv %s529
    %v531 = vmul.f32 %v530, %v64
    %v532 = vmul.f32 %v530, %v65
    %v533 = vmul.f32 %v530, %v66
    %v534 = vmul.f32 %v530, %v67
    %s535 = sld [smem:[#allocation3 + $0x81]]
    %v536 = vstv %s535
    %v537 = vmul.f32 %v536, %v69
    %v538 = vmul.f32 %v536, %v70
    %v539 = vmul.f32 %v536, %v71
    %v540 = vmul.f32 %v536, %v72
    %v541 = vadd.f32 %v531, %v537
    %v542 = vadd.f32 %v532, %v538
    %v543 = vadd.f32 %v533, %v539
    %v544 = vadd.f32 %v534, %v540
    %s545 = sld [smem:[#allocation3 + $0x82]]
    %v546 = vstv %s545
    %v547 = vmul.f32 %v546, %v74
    %v548 = vmul.f32 %v546, %v75
    %v549 = vmul.f32 %v546, %v76
    %v550 = vmul.f32 %v546, %v77
    %v551 = vadd.f32 %v541, %v547
    %v552 = vadd.f32 %v542, %v548
    %v553 = vadd.f32 %v543, %v549
    %v554 = vadd.f32 %v544, %v550
    %v555 = vld [vmem:[%s2] sm:$0xff]
    %v556 = vld [vmem:[%s2 + $0x8] sm:$0xff]
    %v557 = vld [vmem:[%s2 + $0x10] sm:$0xff]
    %v558 = vld [vmem:[%s2 + $0x18] sm:$0xff]
    %v559 = vld [vmem:[%s5] sm:$0xff]
    %v560 = vld [vmem:[%s5 + $0x8] sm:$0xff]
    %v561 = vld [vmem:[%s5 + $0x10] sm:$0xff]
    %v562 = vld [vmem:[%s5 + $0x18] sm:$0xff]
    %v563 = vld [vmem:[%s5 + $0x20] sm:$0xff]
    %v564 = vld [vmem:[%s5 + $0x28] sm:$0xff]
    %v565 = vld [vmem:[%s5 + $0x30] sm:$0xff]
    %v566 = vld [vmem:[%s5 + $0x38] sm:$0xff]
    %v567 = vld [vmem:[%s5 + $0x40] sm:$0xff]
    %v568 = vld [vmem:[%s5 + $0x48] sm:$0xff]
    %v569 = vld [vmem:[%s5 + $0x50] sm:$0xff]
    %v570 = vld [vmem:[%s5 + $0x58] sm:$0xff]
    %v571 = vld [vmem:[%s5 + $0x60] sm:$0xff]
    %v572 = vld [vmem:[%s5 + $0x68] sm:$0xff]
    %v573 = vld [vmem:[%s5 + $0x70] sm:$0xff]
    %v574 = vld [vmem:[%s5 + $0x78] sm:$0xff]
    %v576 = vsel %vm134, %v555, 0
    %578 = vmatprep.subr.mxu0 0.0
    %579 = vmatpush1.msra.mxu0 %v551
    %580 = vmatprep.subr.mxu0 0.0
    %581 = vmatpush1.msra.mxu0 %v552
    %582 = vmatprep.subr.mxu0 0.0
    %583 = vmatpush1.msra.mxu0 %v553
    %584 = vmatprep.subr.mxu0 0.0
    %585 = vmatpush1.msra.mxu0 %v554
    %586 = vmatprep.subr.mxu0 0.0
    %587 = vmatpush1.msra.mxu0 0.0
    %588 = vmatprep.subr.mxu0 0.0
    %589 = vmatpush1.msra.mxu0 0.0
    %590 = vmatprep.subr.mxu0 0.0
    %591 = vmatpush1.msra.mxu0 0.0
    %592 = vmatprep.subr.mxu0 0.0
    %593 = vmatpush1.msra.mxu0 0.0
    %594 = vmatprep.subr.mxu0 0.0
    %595 = vmatpush1.msra.mxu0 0.0
    %596 = vmatprep.subr.mxu0 0.0
    %597 = vmatpush1.msra.mxu0 0.0
    %598 = vmatprep.subr.mxu0 0.0
    %599 = vmatpush1.msra.mxu0 0.0
    %600 = vmatprep.subr.mxu0 0.0
    %601 = vmatpush1.msra.mxu0 0.0
    %602 = vmatprep.subr.mxu0 0.0
    %603 = vmatpush1.msra.mxu0 0.0
    %604 = vmatprep.subr.mxu0 0.0
    %605 = vmatpush1.msra.mxu0 0.0
    %606 = vmatprep.subr.mxu0 0.0
    %607 = vmatpush1.msra.mxu0 0.0
    %608 = vmatprep.subr.mxu0 0.0
    %609 = vmatpush1.msra.mxu0 0.0
    %610 = vmatprep.subr.mxu0 0.0
    %611 = vmatpush1.msra.mxu0 0.0
    %612 = vmatprep.subr.mxu0 0.0
    %613 = vmatpush1.msra.mxu0 0.0
    %614 = vmatprep.subr.mxu0 0.0
    %615 = vmatpush1.msra.mxu0 0.0
    %616 = vmatprep.subr.mxu0 0.0
    %617 = vmatpush1.msra.mxu0 0.0
    %618 = vmatprep.subr.mxu0 0.0
    %619 = vmatpush1.msra.mxu0 0.0
    %620 = vmatprep.subr.mxu0 0.0
    %621 = vmatpush1.msra.mxu0 0.0
    %622 = vmatprep.subr.mxu0 0.0
    %623 = vmatpush1.msra.mxu0 0.0
    %624 = vmatprep.subr.mxu0 0.0
    %625 = vmatpush1.msra.mxu0 0.0
    %626 = vmatprep.subr.mxu0 0.0
    %627 = vmatpush1.msra.mxu0 0.0
    %628 = vmatprep.subr.mxu0 0.0
    %629 = vmatpush1.msra.mxu0 0.0
    %630 = vmatprep.subr.mxu0 0.0
    %631 = vmatpush1.msra.mxu0 0.0
    %632 = vmatprep.subr.mxu0 0.0
    %633 = vmatpush1.msra.mxu0 0.0
    %634 = vmatprep.subr.mxu0 0.0
    %635 = vmatpush1.msra.mxu0 0.0
    %636 = vmatprep.subr.mxu0 0.0
    %637 = vmatpush1.msra.mxu0 0.0
    %638 = vmatprep.subr.mxu0 0.0
    %639 = vmatpush1.msra.mxu0 0.0
    %640 = vmatprep.subr.mxu0 0.0
    %641 = vmatpush1.msra.mxu0 0.0
    %642 = vmatprep.mubr.f32.mxu0 0.0
    %643 = vmatmul.mubr.f32.gmra.mrb[0].mxu0 %v576
    %v644 = vpop.f32.mrb[0].mxu0
    %v645 = vadd.f32 0.0, %v644
    %v646 = vpop.f32.mrb[0].mxu0
    %647 = vdwg.mxu0
    %s648 = sld [smem:[#allocation6 + $0x1]]
    %v649 = vstv %s648
    %650 = vmatprep.subr.mxu0 0.0
    %651 = vmatpush1.xpose.msra.mxu0 %v555
    %652 = vmatprep.subr.mxu0 0.0
    %653 = vmatpush1.xpose.msra.mxu0 %v556
    %654 = vmatprep.subr.mxu0 0.0
    %655 = vmatpush1.xpose.msra.mxu0 %v557
    %656 = vmatprep.subr.mxu0 0.0
    %657 = vmatpush1.xpose.msra.mxu0 %v558
    %658 = vmatprep.subr.mxu0 0.0
    %659 = vmatpush1.xpose.msra.mxu0 0.0
    %660 = vmatprep.subr.mxu0 0.0
    %661 = vmatpush1.xpose.msra.mxu0 0.0
    %662 = vmatprep.subr.mxu0 0.0
    %663 = vmatpush1.xpose.msra.mxu0 0.0
    %664 = vmatprep.subr.mxu0 0.0
    %665 = vmatpush1.xpose.msra.mxu0 0.0
    %666 = vmatprep.subr.mxu0 0.0
    %667 = vmatpush1.xpose.msra.mxu0 0.0
    %668 = vmatprep.subr.mxu0 0.0
    %669 = vmatpush1.xpose.msra.mxu0 0.0
    %670 = vmatprep.subr.mxu0 0.0
    %671 = vmatpush1.xpose.msra.mxu0 0.0
    %672 = vmatprep.subr.mxu0 0.0
    %673 = vmatpush1.xpose.msra.mxu0 0.0
    %674 = vmatprep.subr.mxu0 0.0
    %675 = vmatpush1.xpose.msra.mxu0 0.0
    %676 = vmatprep.subr.mxu0 0.0
    %677 = vmatpush1.xpose.msra.mxu0 0.0
    %678 = vmatprep.subr.mxu0 0.0
    %679 = vmatpush1.xpose.msra.mxu0 0.0
    %680 = vmatprep.subr.mxu0 0.0
    %681 = vmatpush1.xpose.msra.mxu0 0.0
    %682 = vmatprep.subr.mxu0 0.0
    %683 = vmatpush1.xpose.msra.mxu0 0.0
    %684 = vmatprep.subr.mxu0 0.0
    %685 = vmatpush1.xpose.msra.mxu0 0.0
    %686 = vmatprep.subr.mxu0 0.0
    %687 = vmatpush1.xpose.msra.mxu0 0.0
    %688 = vmatprep.subr.mxu0 0.0
    %689 = vmatpush1.xpose.msra.mxu0 0.0
    %690 = vmatprep.subr.mxu0 0.0
    %691 = vmatpush1.xpose.msra.mxu0 0.0
    %692 = vmatprep.subr.mxu0 0.0
    %693 = vmatpush1.xpose.msra.mxu0 0.0
    %694 = vmatprep.subr.mxu0 0.0
    %695 = vmatpush1.xpose.msra.mxu0 0.0
    %696 = vmatprep.subr.mxu0 0.0
    %697 = vmatpush1.xpose.msra.mxu0 0.0
    %698 = vmatprep.subr.mxu0 0.0
    %699 = vmatpush1.xpose.msra.mxu0 0.0
    %700 = vmatprep.subr.mxu0 0.0
    %701 = vmatpush1.xpose.msra.mxu0 0.0
    %702 = vmatprep.subr.mxu0 0.0
    %703 = vmatpush1.xpose.msra.mxu0 0.0
    %704 = vmatprep.subr.mxu0 0.0
    %705 = vmatpush1.xpose.msra.mxu0 0.0
    %706 = vmatprep.subr.mxu0 0.0
    %707 = vmatpush1.xpose.msra.mxu0 0.0
    %708 = vmatprep.subr.mxu0 0.0
    %709 = vmatpush1.xpose.msra.mxu0 0.0
    %710 = vmatprep.subr.mxu0 0.0
    %711 = vmatpush1.xpose.msra.mxu0 0.0
    %712 = vmatprep.subr.mxu0 0.0
    %713 = vmatpush1.xpose.msra.mxu0 0.0
    %714 = vmatprep.mubr.f32.mxu0 0.0
    %715 = vmatmul.mubr.f32.gmra.mrb[0].mxu0 %v645
    %v716 = vpop.f32.mrb[0].mxu0
    %v717 = vadd.f32 %v649, %v716
    %v718 = vpop.f32.mrb[0].mxu0
    %719 = vdwg.mxu0
    %v720 = vmax.f32 %v717, 0.0
    %vm721 = vcmask 64512
    %v723 = vsel %vm721, %v559, 0
    %v726 = vsel %vm721, %v560, 0
    %v729 = vsel %vm721, %v561, 0
    %v732 = vsel %vm721, %v562, 0
    %734 = vmatprep.subr.mxu0 0.0
    %735 = vmatpush1.msra.mxu0 %v720
    %736 = vmatprep.subr.mxu0 0.0
    %737 = vmatpush1.msra.mxu0 0.0
    %738 = vmatprep.subr.mxu0 0.0
    %739 = vmatpush1.msra.mxu0 0.0
    %740 = vmatprep.subr.mxu0 0.0
    %741 = vmatpush1.msra.mxu0 0.0
    %742 = vmatprep.subr.mxu0 0.0
    %743 = vmatpush1.msra.mxu0 0.0
    %744 = vmatprep.subr.mxu0 0.0
    %745 = vmatpush1.msra.mxu0 0.0
    %746 = vmatprep.subr.mxu0 0.0
    %747 = vmatpush1.msra.mxu0 0.0
    %748 = vmatprep.subr.mxu0 0.0
    %749 = vmatpush1.msra.mxu0 0.0
    %750 = vmatprep.subr.mxu0 0.0
    %751 = vmatpush1.msra.mxu0 0.0
    %752 = vmatprep.subr.mxu0 0.0
    %753 = vmatpush1.msra.mxu0 0.0
    %754 = vmatprep.subr.mxu0 0.0
    %755 = vmatpush1.msra.mxu0 0.0
    %756 = vmatprep.subr.mxu0 0.0
    %757 = vmatpush1.msra.mxu0 0.0
    %758 = vmatprep.subr.mxu0 0.0
    %759 = vmatpush1.msra.mxu0 0.0
    %760 = vmatprep.subr.mxu0 0.0
    %761 = vmatpush1.msra.mxu0 0.0
    %762 = vmatprep.subr.mxu0 0.0
    %763 = vmatpush1.msra.mxu0 0.0
    %764 = vmatprep.subr.mxu0 0.0
    %765 = vmatpush1.msra.mxu0 0.0
    %766 = vmatprep.subr.mxu0 0.0
    %767 = vmatpush1.msra.mxu0 0.0
    %768 = vmatprep.subr.mxu0 0.0
    %769 = vmatpush1.msra.mxu0 0.0
    %770 = vmatprep.subr.mxu0 0.0
    %771 = vmatpush1.msra.mxu0 0.0
    %772 = vmatprep.subr.mxu0 0.0
    %773 = vmatpush1.msra.mxu0 0.0
    %774 = vmatprep.subr.mxu0 0.0
    %775 = vmatpush1.msra.mxu0 0.0
    %776 = vmatprep.subr.mxu0 0.0
    %777 = vmatpush1.msra.mxu0 0.0
    %778 = vmatprep.subr.mxu0 0.0
    %779 = vmatpush1.msra.mxu0 0.0
    %780 = vmatprep.subr.mxu0 0.0
    %781 = vmatpush1.msra.mxu0 0.0
    %782 = vmatprep.subr.mxu0 0.0
    %783 = vmatpush1.msra.mxu0 0.0
    %784 = vmatprep.subr.mxu0 0.0
    %785 = vmatpush1.msra.mxu0 0.0
    %786 = vmatprep.subr.mxu0 0.0
    %787 = vmatpush1.msra.mxu0 0.0
    %788 = vmatprep.subr.mxu0 0.0
    %789 = vmatpush1.msra.mxu0 0.0
    %790 = vmatprep.subr.mxu0 0.0
    %791 = vmatpush1.msra.mxu0 0.0
    %792 = vmatprep.subr.mxu0 0.0
    %793 = vmatpush1.msra.mxu0 0.0
    %794 = vmatprep.subr.mxu0 0.0
    %795 = vmatpush1.msra.mxu0 0.0
    %796 = vmatprep.subr.mxu0 0.0
    %797 = vmatpush1.msra.mxu0 0.0
    %798 = vmatprep.mubr.f32.mxu0 0.0
    %799 = vmatmul.mubr.f32.gmra.mrb[0].mxu0 %v723
    %v800 = vpop.f32.mrb[0].mxu0
    %v801 = vadd.f32 0.0, %v800
    %v802 = vpop.f32.mrb[0].mxu0
    %803 = vmatprep.mubr.f32.mxu0 0.0
    %804 = vmatmul.mubr.f32.gmra.mrb[0].mxu0 %v726
    %v805 = vpop.f32.mrb[0].mxu0
    %v806 = vadd.f32 0.0, %v805
    %v807 = vpop.f32.mrb[0].mxu0
    %808 = vmatprep.mubr.f32.mxu0 0.0
    %809 = vmatmul.mubr.f32.gmra.mrb[0].mxu0 %v729
    %v810 = vpop.f32.mrb[0].mxu0
    %v811 = vadd.f32 0.0, %v810
    %v812 = vpop.f32.mrb[0].mxu0
    %813 = vmatprep.mubr.f32.mxu0 0.0
    %814 = vmatmul.mubr.f32.gmra.mrb[0].mxu0 %v732
    %v815 = vpop.f32.mrb[0].mxu0
    %v816 = vadd.f32 0.0, %v815
    %v817 = vpop.f32.mrb[0].mxu0
    %818 = vdwg.mxu0
    %v820 = vsel %vm134, %v801, 0
    %v823 = vsel %vm134, %v806, 0
    %v826 = vsel %vm134, %v811, 0
    %v829 = vsel %vm134, %v816, 0
    %v831 = vsel %vm134, %v559, 0
    %v833 = vsel %vm134, %v560, 0
    %v835 = vsel %vm134, %v561, 0
    %v837 = vsel %vm134, %v562, 0
    %v840 = vsel %vm134, %v563, 0
    %v843 = vsel %vm134, %v564, 0
    %v846 = vsel %vm134, %v565, 0
    %v849 = vsel %vm134, %v566, 0
    %v852 = vsel %vm134, %v567, 0
    %v855 = vsel %vm134, %v568, 0
    %v858 = vsel %vm134, %v569, 0
    %v861 = vsel %vm134, %v570, 0
    %v864 = vsel %vm134, %v571, 0
    %v867 = vsel %vm134, %v572, 0
    %v870 = vsel %vm134, %v573, 0
    %v873 = vsel %vm134, %v574, 0
    %875 = vmatprep.subr.mxu0 0.0
    %876 = vmatpush1.xpose.msra.mxu0 %v831
    %877 = vmatprep.subr.mxu0 0.0
    %878 = vmatpush1.xpose.msra.mxu0 %v833
    %879 = vmatprep.subr.mxu0 0.0
    %880 = vmatpush1.xpose.msra.mxu0 %v835
    %881 = vmatprep.subr.mxu0 0.0
    %882 = vmatpush1.xpose.msra.mxu0 %v837
    %883 = vmatprep.subr.mxu0 0.0
    %884 = vmatpush1.xpose.msra.mxu0 %v840
    %885 = vmatprep.subr.mxu0 0.0
    %886 = vmatpush1.xpose.msra.mxu0 %v843
    %887 = vmatprep.subr.mxu0 0.0
    %888 = vmatpush1.xpose.msra.mxu0 %v846
    %889 = vmatprep.subr.mxu0 0.0
    %890 = vmatpush1.xpose.msra.mxu0 %v849
    %891 = vmatprep.subr.mxu0 0.0
    %892 = vmatpush1.xpose.msra.mxu0 %v852
    %893 = vmatprep.subr.mxu0 0.0
    %894 = vmatpush1.xpose.msra.mxu0 %v855
    %895 = vmatprep.subr.mxu0 0.0
    %896 = vmatpush1.xpose.msra.mxu0 %v858
    %897 = vmatprep.subr.mxu0 0.0
    %898 = vmatpush1.xpose.msra.mxu0 %v861
    %899 = vmatprep.subr.mxu0 0.0
    %900 = vmatpush1.xpose.msra.mxu0 %v864
    %901 = vmatprep.subr.mxu0 0.0
    %902 = vmatpush1.xpose.msra.mxu0 %v867
    %903 = vmatprep.subr.mxu0 0.0
    %904 = vmatpush1.xpose.msra.mxu0 %v870
    %905 = vmatprep.subr.mxu0 0.0
    %906 = vmatpush1.xpose.msra.mxu0 %v873
    %907 = vmatprep.subr.mxu0 0.0
    %908 = vmatpush1.xpose.msra.mxu0 0.0
    %909 = vmatprep.subr.mxu0 0.0
    %910 = vmatpush1.xpose.msra.mxu0 0.0
    %911 = vmatprep.subr.mxu0 0.0
    %912 = vmatpush1.xpose.msra.mxu0 0.0
    %913 = vmatprep.subr.mxu0 0.0
    %914 = vmatpush1.xpose.msra.mxu0 0.0
    %915 = vmatprep.subr.mxu0 0.0
    %916 = vmatpush1.xpose.msra.mxu0 0.0
    %917 = vmatprep.subr.mxu0 0.0
    %918 = vmatpush1.xpose.msra.mxu0 0.0
    %919 = vmatprep.subr.mxu0 0.0
    %920 = vmatpush1.xpose.msra.mxu0 0.0
    %921 = vmatprep.subr.mxu0 0.0
    %922 = vmatpush1.xpose.msra.mxu0 0.0
    %923 = vmatprep.subr.mxu0 0.0
    %924 = vmatpush1.xpose.msra.mxu0 0.0
    %925 = vmatprep.subr.mxu0 0.0
    %926 = vmatpush1.xpose.msra.mxu0 0.0
    %927 = vmatprep.subr.mxu0 0.0
    %928 = vmatpush1.xpose.msra.mxu0 0.0
    %929 = vmatprep.subr.mxu0 0.0
    %930 = vmatpush1.xpose.msra.mxu0 0.0
    %931 = vmatprep.subr.mxu0 0.0
    %932 = vmatpush1.xpose.msra.mxu0 0.0
    %933 = vmatprep.subr.mxu0 0.0
    %934 = vmatpush1.xpose.msra.mxu0 0.0
    %935 = vmatprep.subr.mxu0 0.0
    %936 = vmatpush1.xpose.msra.mxu0 0.0
    %937 = vmatprep.subr.mxu0 0.0
    %938 = vmatpush1.xpose.msra.mxu0 0.0
    %939 = vmatprep.mubr.f32.mxu0 0.0
    %940 = vmatmul.mubr.f32.gmra.mrb[0].mxu0 %v820
    %v941 = vpop.f32.mrb[0].mxu0
    %v942 = vadd.f32 0.0, %v941
    %v943 = vpop.f32.mrb[0].mxu0
    %944 = vmatprep.mubr.f32.mxu0 0.0
    %945 = vmatmul.mubr.f32.gmra.mrb[0].mxu0 %v823
    %v946 = vpop.f32.mrb[0].mxu0
    %v947 = vadd.f32 0.0, %v946
    %v948 = vpop.f32.mrb[0].mxu0
    %949 = vmatprep.mubr.f32.mxu0 0.0
    %950 = vmatmul.mubr.f32.gmra.mrb[0].mxu0 %v826
    %v951 = vpop.f32.mrb[0].mxu0
    %v952 = vadd.f32 0.0, %v951
    %v953 = vpop.f32.mrb[0].mxu0
    %954 = vmatprep.mubr.f32.mxu0 0.0
    %955 = vmatmul.mubr.f32.gmra.mrb[0].mxu0 %v829
    %v956 = vpop.f32.mrb[0].mxu0
    %v957 = vadd.f32 0.0, %v956
    %v958 = vpop.f32.mrb[0].mxu0
    %959 = vdwg.mxu0
    %960 = vst [vmem:[#allocation2 + $0x80] sm:$0xff] %v942
    %961 = vst [vmem:[#allocation2 + $0x88] sm:$0xff] %v947
    %962 = vst [vmem:[#allocation2 + $0x90] sm:$0xff] %v952
    %963 = vst [vmem:[#allocation2 + $0x98] sm:$0xff] %v957
    %s964 = sld [smem:[#allocation3 + $0x100]]
    %v965 = vstv %s964
    %v966 = vmul.f32 %v965, %v64
    %v967 = vmul.f32 %v965, %v65
    %v968 = vmul.f32 %v965, %v66
    %v969 = vmul.f32 %v965, %v67
    %s970 = sld [smem:[#allocation3 + $0x101]]
    %v971 = vstv %s970
    %v972 = vmul.f32 %v971, %v69
    %v973 = vmul.f32 %v971, %v70
    %v974 = vmul.f32 %v971, %v71
    %v975 = vmul.f32 %v971, %v72
    %v976 = vadd.f32 %v966, %v972
    %v977 = vadd.f32 %v967, %v973
    %v978 = vadd.f32 %v968, %v974
    %v979 = vadd.f32 %v969, %v975
    %s980 = sld [smem:[#allocation3 + $0x102]]
    %v981 = vstv %s980
    %v982 = vmul.f32 %v981, %v74
    %v983 = vmul.f32 %v981, %v75
    %v984 = vmul.f32 %v981, %v76
    %v985 = vmul.f32 %v981, %v77
    %v986 = vadd.f32 %v976, %v982
    %v987 = vadd.f32 %v977, %v983
    %v988 = vadd.f32 %v978, %v984
    %v989 = vadd.f32 %v979, %v985
    %v990 = vld [vmem:[%s3] sm:$0xff]
    %v991 = vld [vmem:[%s3 + $0x8] sm:$0xff]
    %v992 = vld [vmem:[%s3 + $0x10] sm:$0xff]
    %v993 = vld [vmem:[%s3 + $0x18] sm:$0xff]
    %v994 = vld [vmem:[%s3 + $0x20] sm:$0xff]
    %v995 = vld [vmem:[%s3 + $0x28] sm:$0xff]
    %v996 = vld [vmem:[%s3 + $0x30] sm:$0xff]
    %v997 = vld [vmem:[%s3 + $0x38] sm:$0xff]
    %v998 = vld [vmem:[%s6] sm:$0xff]
    %v999 = vld [vmem:[%s6 + $0x8] sm:$0xff]
    %v1000 = vld [vmem:[%s6 + $0x10] sm:$0xff]
    %v1001 = vld [vmem:[%s6 + $0x18] sm:$0xff]
    %v1002 = vld [vmem:[%s6 + $0x20] sm:$0xff]
    %v1003 = vld [vmem:[%s6 + $0x28] sm:$0xff]
    %v1004 = vld [vmem:[%s6 + $0x30] sm:$0xff]
    %v1005 = vld [vmem:[%s6 + $0x38] sm:$0xff]
    %v1006 = vld [vmem:[%s6 + $0x40] sm:$0xff]
    %v1007 = vld [vmem:[%s6 + $0x48] sm:$0xff]
    %v1008 = vld [vmem:[%s6 + $0x50] sm:$0xff]
    %v1009 = vld [vmem:[%s6 + $0x58] sm:$0xff]
    %v1010 = vld [vmem:[%s6 + $0x60] sm:$0xff]
    %v1011 = vld [vmem:[%s6 + $0x68] sm:$0xff]
    %v1012 = vld [vmem:[%s6 + $0x70] sm:$0xff]
    %v1013 = vld [vmem:[%s6 + $0x78] sm:$0xff]
    %v1015 = vsel %vm134, %v990, 0
    %v1018 = vsel %vm134, %v991, 0
    %1020 = vmatprep.subr.mxu0 0.0
    %1021 = vmatpush1.msra.mxu0 %v986
    %1022 = vmatprep.subr.mxu0 0.0
    %1023 = vmatpush1.msra.mxu0 %v987
    %1024 = vmatprep.subr.mxu0 0.0
    %1025 = vmatpush1.msra.mxu0 %v988
    %1026 = vmatprep.subr.mxu0 0.0
    %1027 = vmatpush1.msra.mxu0 %v989
    %1028 = vmatprep.subr.mxu0 0.0
    %1029 = vmatpush1.msra.mxu0 0.0
    %1030 = vmatprep.subr.mxu0 0.0
    %1031 = vmatpush1.msra.mxu0 0.0
    %1032 = vmatprep.subr.mxu0 0.0
    %1033 = vmatpush1.msra.mxu0 0.0
    %1034 = vmatprep.subr.mxu0 0.0
    %1035 = vmatpush1.msra.mxu0 0.0
    %1036 = vmatprep.subr.mxu0 0.0
    %1037 = vmatpush1.msra.mxu0 0.0
    %1038 = vmatprep.subr.mxu0 0.0
    %1039 = vmatpush1.msra.mxu0 0.0
    %1040 = vmatprep.subr.mxu0 0.0
    %1041 = vmatpush1.msra.mxu0 0.0
    %1042 = vmatprep.subr.mxu0 0.0
    %1043 = vmatpush1.msra.mxu0 0.0
    %1044 = vmatprep.subr.mxu0 0.0
    %1045 = vmatpush1.msra.mxu0 0.0
    %1046 = vmatprep.subr.mxu0 0.0
    %1047 = vmatpush1.msra.mxu0 0.0
    %1048 = vmatprep.subr.mxu0 0.0
    %1049 = vmatpush1.msra.mxu0 0.0
    %1050 = vmatprep.subr.mxu0 0.0
    %1051 = vmatpush1.msra.mxu0 0.0
    %1052 = vmatprep.subr.mxu0 0.0
    %1053 = vmatpush1.msra.mxu0 0.0
    %1054 = vmatprep.subr.mxu0 0.0
    %1055 = vmatpush1.msra.mxu0 0.0
    %1056 = vmatprep.subr.mxu0 0.0
    %1057 = vmatpush1.msra.mxu0 0.0
    %1058 = vmatprep.subr.mxu0 0.0
    %1059 = vmatpush1.msra.mxu0 0.0
    %1060 = vmatprep.subr.mxu0 0.0
    %1061 = vmatpush1.msra.mxu0 0.0
    %1062 = vmatprep.subr.mxu0 0.0
    %1063 = vmatpush1.msra.mxu0 0.0
    %1064 = vmatprep.subr.mxu0 0.0
    %1065 = vmatpush1.msra.mxu0 0.0
    %1066 = vmatprep.subr.mxu0 0.0
    %1067 = vmatpush1.msra.mxu0 0.0
    %1068 = vmatprep.subr.mxu0 0.0
    %1069 = vmatpush1.msra.mxu0 0.0
    %1070 = vmatprep.subr.mxu0 0.0
    %1071 = vmatpush1.msra.mxu0 0.0
    %1072 = vmatprep.subr.mxu0 0.0
    %1073 = vmatpush1.msra.mxu0 0.0
    %1074 = vmatprep.subr.mxu0 0.0
    %1075 = vmatpush1.msra.mxu0 0.0
    %1076 = vmatprep.subr.mxu0 0.0
    %1077 = vmatpush1.msra.mxu0 0.0
    %1078 = vmatprep.subr.mxu0 0.0
    %1079 = vmatpush1.msra.mxu0 0.0
    %1080 = vmatprep.subr.mxu0 0.0
    %1081 = vmatpush1.msra.mxu0 0.0
    %1082 = vmatprep.subr.mxu0 0.0
    %1083 = vmatpush1.msra.mxu0 0.0
    %1084 = vmatprep.mubr.f32.mxu0 0.0
    %1085 = vmatmul.mubr.f32.gmra.mrb[0].mxu0 %v1015
    %v1086 = vpop.f32.mrb[0].mxu0
    %v1087 = vadd.f32 0.0, %v1086
    %v1088 = vpop.f32.mrb[0].mxu0
    %1089 = vmatprep.mubr.f32.mxu0 0.0
    %1090 = vmatmul.mubr.f32.gmra.mrb[0].mxu0 %v1018
    %v1091 = vpop.f32.mrb[0].mxu0
    %v1092 = vadd.f32 0.0, %v1091
    %v1093 = vpop.f32.mrb[0].mxu0
    %1094 = vdwg.mxu0
    %s1095 = sld [smem:[#allocation6 + $0x2]]
    %v1096 = vstv %s1095
    %1097 = vmatprep.subr.mxu0 0.0
    %1098 = vmatpush1.xpose.msra.mxu0 %v990
    %1099 = vmatprep.subr.mxu0 0.0
    %1100 = vmatpush1.xpose.msra.mxu0 %v991
    %1101 = vmatprep.subr.mxu0 0.0
    %1102 = vmatpush1.xpose.msra.mxu0 %v992
    %1103 = vmatprep.subr.mxu0 0.0
    %1104 = vmatpush1.xpose.msra.mxu0 %v993
    %1105 = vmatprep.subr.mxu0 0.0
    %1106 = vmatpush1.xpose.msra.mxu0 %v994
    %1107 = vmatprep.subr.mxu0 0.0
    %1108 = vmatpush1.xpose.msra.mxu0 %v995
    %1109 = vmatprep.subr.mxu0 0.0
    %1110 = vmatpush1.xpose.msra.mxu0 %v996
    %1111 = vmatprep.subr.mxu0 0.0
    %1112 = vmatpush1.xpose.msra.mxu0 %v997
    %1113 = vmatprep.subr.mxu0 0.0
    %1114 = vmatpush1.xpose.msra.mxu0 0.0
    %1115 = vmatprep.subr.mxu0 0.0
    %1116 = vmatpush1.xpose.msra.mxu0 0.0
    %1117 = vmatprep.subr.mxu0 0.0
    %1118 = vmatpush1.xpose.msra.mxu0 0.0
    %1119 = vmatprep.subr.mxu0 0.0
    %1120 = vmatpush1.xpose.msra.mxu0 0.0
    %1121 = vmatprep.subr.mxu0 0.0
    %1122 = vmatpush1.xpose.msra.mxu0 0.0
    %1123 = vmatprep.subr.mxu0 0.0
    %1124 = vmatpush1.xpose.msra.mxu0 0.0
    %1125 = vmatprep.subr.mxu0 0.0
    %1126 = vmatpush1.xpose.msra.mxu0 0.0
    %1127 = vmatprep.subr.mxu0 0.0
    %1128 = vmatpush1.xpose.msra.mxu0 0.0
    %1129 = vmatprep.subr.mxu0 0.0
    %1130 = vmatpush1.xpose.msra.mxu0 0.0
    %1131 = vmatprep.subr.mxu0 0.0
    %1132 = vmatpush1.xpose.msra.mxu0 0.0
    %1133 = vmatprep.subr.mxu0 0.0
    %1134 = vmatpush1.xpose.msra.mxu0 0.0
    %1135 = vmatprep.subr.mxu0 0.0
    %1136 = vmatpush1.xpose.msra.mxu0 0.0
    %1137 = vmatprep.subr.mxu0 0.0
    %1138 = vmatpush1.xpose.msra.mxu0 0.0
    %1139 = vmatprep.subr.mxu0 0.0
    %1140 = vmatpush1.xpose.msra.mxu0 0.0
    %1141 = vmatprep.subr.mxu0 0.0
    %1142 = vmatpush1.xpose.msra.mxu0 0.0
    %1143 = vmatprep.subr.mxu0 0.0
    %1144 = vmatpush1.xpose.msra.mxu0 0.0
    %1145 = vmatprep.subr.mxu0 0.0
    %1146 = vmatpush1.xpose.msra.mxu0 0.0
    %1147 = vmatprep.subr.mxu0 0.0
    %1148 = vmatpush1.xpose.msra.mxu0 0.0
    %1149 = vmatprep.subr.mxu0 0.0
    %1150 = vmatpush1.xpose.msra.mxu0 0.0
    %1151 = vmatprep.subr.mxu0 0.0
    %1152 = vmatpush1.xpose.msra.mxu0 0.0
    %1153 = vmatprep.subr.mxu0 0.0
    %1154 = vmatpush1.xpose.msra.mxu0 0.0
    %1155 = vmatprep.subr.mxu0 0.0
    %1156 = vmatpush1.xpose.msra.mxu0 0.0
    %1157 = vmatprep.subr.mxu0 0.0
    %1158 = vmatpush1.xpose.msra.mxu0 0.0
    %1159 = vmatprep.subr.mxu0 0.0
    %1160 = vmatpush1.xpose.msra.mxu0 0.0
    %1161 = vmatprep.mubr.f32.mxu0 0.0
    %1162 = vmatmul.mubr.f32.gmra.mrb[0].mxu0 %v1087
    %v1163 = vpop.f32.mrb[0].mxu0
    %v1164 = vadd.f32 %v1096, %v1163
    %v1165 = vpop.f32.mrb[0].mxu0
    %1166 = vmatprep.mubr.f32.mxu0 0.0
    %1167 = vmatmul.mubr.f32.gmra.mrb[0].mxu0 %v1092
    %v1168 = vpop.f32.mrb[0].mxu0
    %v1169 = vadd.f32 %v1096, %v1168
    %v1170 = vpop.f32.mrb[0].mxu0
    %1171 = vdwg.mxu0
    %v1172 = vmax.f32 %v1164, 0.0
    %v1173 = vmax.f32 %v1169, 0.0
    %v1175 = vsel %vm383, %v998, 0
    %v1178 = vsel %vm383, %v999, 0
    %v1181 = vsel %vm383, %v1000, 0
    %v1184 = vsel %vm383, %v1001, 0
    %1186 = vmatprep.subr.mxu0 0.0
    %1187 = vmatpush1.msra.mxu0 %v1172
    %1188 = vmatprep.subr.mxu0 0.0
    %1189 = vmatpush1.msra.mxu0 %v1173
    %1190 = vmatprep.subr.mxu0 0.0
    %1191 = vmatpush1.msra.mxu0 0.0
    %1192 = vmatprep.subr.mxu0 0.0
    %1193 = vmatpush1.msra.mxu0 0.0
    %1194 = vmatprep.subr.mxu0 0.0
    %1195 = vmatpush1.msra.mxu0 0.0
    %1196 = vmatprep.subr.mxu0 0.0
    %1197 = vmatpush1.msra.mxu0 0.0
    %1198 = vmatprep.subr.mxu0 0.0
    %1199 = vmatpush1.msra.mxu0 0.0
    %1200 = vmatprep.subr.mxu0 0.0
    %1201 = vmatpush1.msra.mxu0 0.0
    %1202 = vmatprep.subr.mxu0 0.0
    %1203 = vmatpush1.msra.mxu0 0.0
    %1204 = vmatprep.subr.mxu0 0.0
    %1205 = vmatpush1.msra.mxu0 0.0
    %1206 = vmatprep.subr.mxu0 0.0
    %1207 = vmatpush1.msra.mxu0 0.0
    %1208 = vmatprep.subr.mxu0 0.0
    %1209 = vmatpush1.msra.mxu0 0.0
    %1210 = vmatprep.subr.mxu0 0.0
    %1211 = vmatpush1.msra.mxu0 0.0
    %1212 = vmatprep.subr.mxu0 0.0
    %1213 = vmatpush1.msra.mxu0 0.0
    %1214 = vmatprep.subr.mxu0 0.0
    %1215 = vmatpush1.msra.mxu0 0.0
    %1216 = vmatprep.subr.mxu0 0.0
    %1217 = vmatpush1.msra.mxu0 0.0
    %1218 = vmatprep.subr.mxu0 0.0
    %1219 = vmatpush1.msra.mxu0 0.0
    %1220 = vmatprep.subr.mxu0 0.0
    %1221 = vmatpush1.msra.mxu0 0.0
    %1222 = vmatprep.subr.mxu0 0.0
    %1223 = vmatpush1.msra.mxu0 0.0
    %1224 = vmatprep.subr.mxu0 0.0
    %1225 = vmatpush1.msra.mxu0 0.0
    %1226 = vmatprep.subr.mxu0 0.0
    %1227 = vmatpush1.msra.mxu0 0.0
    %1228 = vmatprep.subr.mxu0 0.0
    %1229 = vmatpush1.msra.mxu0 0.0
    %1230 = vmatprep.subr.mxu0 0.0
    %1231 = vmatpush1.msra.mxu0 0.0
    %1232 = vmatprep.subr.mxu0 0.0
    %1233 = vmatpush1.msra.mxu0 0.0
    %1234 = vmatprep.subr.mxu0 0.0
    %1235 = vmatpush1.msra.mxu0 0.0
    %1236 = vmatprep.subr.mxu0 0.0
    %1237 = vmatpush1.msra.mxu0 0.0
    %1238 = vmatprep.subr.mxu0 0.0
    %1239 = vmatpush1.msra.mxu0 0.0
    %1240 = vmatprep.subr.mxu0 0.0
    %1241 = vmatpush1.msra.mxu0 0.0
    %1242 = vmatprep.subr.mxu0 0.0
    %1243 = vmatpush1.msra.mxu0 0.0
    %1244 = vmatprep.subr.mxu0 0.0
    %1245 = vmatpush1.msra.mxu0 0.0
    %1246 = vmatprep.subr.mxu0 0.0
    %1247 = vmatpush1.msra.mxu0 0.0
    %1248 = vmatprep.subr.mxu0 0.0
    %1249 = vmatpush1.msra.mxu0 0.0
    %1250 = vmatprep.mubr.f32.mxu0 0.0
    %1251 = vmatmul.mubr.f32.gmra.mrb[0].mxu0 %v1175
    %v1252 = vpop.f32.mrb[0].mxu0
    %v1253 = vadd.f32 0.0, %v1252
    %v1254 = vpop.f32.mrb[0].mxu0
    %1255 = vmatprep.mubr.f32.mxu0 0.0
    %1256 = vmatmul.mubr.f32.gmra.mrb[0].mxu0 %v1178
    %v1257 = vpop.f32.mrb[0].mxu0
    %v1258 = vadd.f32 0.0, %v1257
    %v1259 = vpop.f32.mrb[0].mxu0
    %1260 = vmatprep.mubr.f32.mxu0 0.0
    %1261 = vmatmul.mubr.f32.gmra.mrb[0].mxu0 %v1181
    %v1262 = vpop.f32.mrb[0].mxu0
    %v1263 = vadd.f32 0.0, %v1262
    %v1264 = vpop.f32.mrb[0].mxu0
    %1265 = vmatprep.mubr.f32.mxu0 0.0
    %1266 = vmatmul.mubr.f32.gmra.mrb[0].mxu0 %v1184
    %v1267 = vpop.f32.mrb[0].mxu0
    %v1268 = vadd.f32 0.0, %v1267
    %v1269 = vpop.f32.mrb[0].mxu0
    %1270 = vdwg.mxu0
    %vm1271 = vcmask 523264
    %v1273 = vsel %vm1271, %v1253, 0
    %v1276 = vsel %vm1271, %v1258, 0
    %v1279 = vsel %vm1271, %v1263, 0
    %v1282 = vsel %vm1271, %v1268, 0
    %v1284 = vsel %vm1271, %v998, 0
    %v1286 = vsel %vm1271, %v999, 0
    %v1288 = vsel %vm1271, %v1000, 0
    %v1290 = vsel %vm1271, %v1001, 0
    %v1293 = vsel %vm1271, %v1002, 0
    %v1296 = vsel %vm1271, %v1003, 0
    %v1299 = vsel %vm1271, %v1004, 0
    %v1302 = vsel %vm1271, %v1005, 0
    %v1305 = vsel %vm1271, %v1006, 0
    %v1308 = vsel %vm1271, %v1007, 0
    %v1311 = vsel %vm1271, %v1008, 0
    %v1314 = vsel %vm1271, %v1009, 0
    %v1317 = vsel %vm1271, %v1010, 0
    %v1320 = vsel %vm1271, %v1011, 0
    %v1323 = vsel %vm1271, %v1012, 0
    %v1326 = vsel %vm1271, %v1013, 0
    %1328 = vmatprep.subr.mxu0 0.0
    %1329 = vmatpush1.xpose.msra.mxu0 %v1284
    %1330 = vmatprep.subr.mxu0 0.0
    %1331 = vmatpush1.xpose.msra.mxu0 %v1286
    %1332 = vmatprep.subr.mxu0 0.0
    %1333 = vmatpush1.xpose.msra.mxu0 %v1288
    %1334 = vmatprep.subr.mxu0 0.0
    %1335 = vmatpush1.xpose.msra.mxu0 %v1290
    %1336 = vmatprep.subr.mxu0 0.0
    %1337 = vmatpush1.xpose.msra.mxu0 %v1293
    %1338 = vmatprep.subr.mxu0 0.0
    %1339 = vmatpush1.xpose.msra.mxu0 %v1296
    %1340 = vmatprep.subr.mxu0 0.0
    %1341 = vmatpush1.xpose.msra.mxu0 %v1299
    %1342 = vmatprep.subr.mxu0 0.0
    %1343 = vmatpush1.xpose.msra.mxu0 %v1302
    %1344 = vmatprep.subr.mxu0 0.0
    %1345 = vmatpush1.xpose.msra.mxu0 %v1305
    %1346 = vmatprep.subr.mxu0 0.0
    %1347 = vmatpush1.xpose.msra.mxu0 %v1308
    %1348 = vmatprep.subr.mxu0 0.0
    %1349 = vmatpush1.xpose.msra.mxu0 %v1311
    %1350 = vmatprep.subr.mxu0 0.0
    %1351 = vmatpush1.xpose.msra.mxu0 %v1314
    %1352 = vmatprep.subr.mxu0 0.0
    %1353 = vmatpush1.xpose.msra.mxu0 %v1317
    %1354 = vmatprep.subr.mxu0 0.0
    %1355 = vmatpush1.xpose.msra.mxu0 %v1320
    %1356 = vmatprep.subr.mxu0 0.0
    %1357 = vmatpush1.xpose.msra.mxu0 %v1323
    %1358 = vmatprep.subr.mxu0 0.0
    %1359 = vmatpush1.xpose.msra.mxu0 %v1326
    %1360 = vmatprep.subr.mxu0 0.0
    %1361 = vmatpush1.xpose.msra.mxu0 0.0
    %1362 = vmatprep.subr.mxu0 0.0
    %1363 = vmatpush1.xpose.msra.mxu0 0.0
    %1364 = vmatprep.subr.mxu0 0.0
    %1365 = vmatpush1.xpose.msra.mxu0 0.0
    %1366 = vmatprep.subr.mxu0 0.0
    %1367 = vmatpush1.xpose.msra.mxu0 0.0
    %1368 = vmatprep.subr.mxu0 0.0
    %1369 = vmatpush1.xpose.msra.mxu0 0.0
    %1370 = vmatprep.subr.mxu0 0.0
    %1371 = vmatpush1.xpose.msra.mxu0 0.0
    %1372 = vmatprep.subr.mxu0 0.0
    %1373 = vmatpush1.xpose.msra.mxu0 0.0
    %1374 = vmatprep.subr.mxu0 0.0
    %1375 = vmatpush1.xpose.msra.mxu0 0.0
    %1376 = vmatprep.subr.mxu0 0.0
    %1377 = vmatpush1.xpose.msra.mxu0 0.0
    %1378 = vmatprep.subr.mxu0 0.0
    %1379 = vmatpush1.xpose.msra.mxu0 0.0
    %1380 = vmatprep.subr.mxu0 0.0
    %1381 = vmatpush1.xpose.msra.mxu0 0.0
    %1382 = vmatprep.subr.mxu0 0.0
    %1383 = vmatpush1.xpose.msra.mxu0 0.0
    %1384 = vmatprep.subr.mxu0 0.0
    %1385 = vmatpush1.xpose.msra.mxu0 0.0
    %1386 = vmatprep.subr.mxu0 0.0
    %1387 = vmatpush1.xpose.msra.mxu0 0.0
    %1388 = vmatprep.subr.mxu0 0.0
    %1389 = vmatpush1.xpose.msra.mxu0 0.0
    %1390 = vmatprep.subr.mxu0 0.0
    %1391 = vmatpush1.xpose.msra.mxu0 0.0
    %1392 = vmatprep.mubr.f32.mxu0 0.0
    %1393 = vmatmul.mubr.f32.gmra.mrb[0].mxu0 %v1273
    %v1394 = vpop.f32.mrb[0].mxu0
    %v1395 = vadd.f32 0.0, %v1394
    %v1396 = vpop.f32.mrb[0].mxu0
    %1397 = vmatprep.mubr.f32.mxu0 0.0
    %1398 = vmatmul.mubr.f32.gmra.mrb[0].mxu0 %v1276
    %v1399 = vpop.f32.mrb[0].mxu0
    %v1400 = vadd.f32 0.0, %v1399
    %v1401 = vpop.f32.mrb[0].mxu0
    %1402 = vmatprep.mubr.f32.mxu0 0.0
    %1403 = vmatmul.mubr.f32.gmra.mrb[0].mxu0 %v1279
    %v1404 = vpop.f32.mrb[0].mxu0
    %v1405 = vadd.f32 0.0, %v1404
    %v1406 = vpop.f32.mrb[0].mxu0
    %1407 = vmatprep.mubr.f32.mxu0 0.0
    %1408 = vmatmul.mubr.f32.gmra.mrb[0].mxu0 %v1282
    %v1409 = vpop.f32.mrb[0].mxu0
    %v1410 = vadd.f32 0.0, %v1409
    %v1411 = vpop.f32.mrb[0].mxu0
    %1412 = vdwg.mxu0
    %1413 = vst [vmem:[#allocation2 + $0xa0] sm:$0xff] %v1395
    %1414 = vst [vmem:[#allocation2 + $0xa8] sm:$0xff] %v1400
    %1415 = vst [vmem:[#allocation2 + $0xb0] sm:$0xff] %v1405
    %1416 = vst [vmem:[#allocation2 + $0xb8] sm:$0xff] %v1410
    %s1417 = sld [smem:[#allocation3 + $0x180]]
    %v1418 = vstv %s1417
    %v1419 = vmul.f32 %v1418, %v64
    %v1420 = vmul.f32 %v1418, %v65
    %v1421 = vmul.f32 %v1418, %v66
    %v1422 = vmul.f32 %v1418, %v67
    %s1423 = sld [smem:[#allocation3 + $0x181]]
    %v1424 = vstv %s1423
    %v1425 = vmul.f32 %v1424, %v69
    %v1426 = vmul.f32 %v1424, %v70
    %v1427 = vmul.f32 %v1424, %v71
    %v1428 = vmul.f32 %v1424, %v72
    %v1429 = vadd.f32 %v1419, %v1425
    %v1430 = vadd.f32 %v1420, %v1426
    %v1431 = vadd.f32 %v1421, %v1427
    %v1432 = vadd.f32 %v1422, %v1428
    %s1433 = sld [smem:[#allocation3 + $0x182]]
    %v1434 = vstv %s1433
    %v1435 = vmul.f32 %v1434, %v74
    %v1436 = vmul.f32 %v1434, %v75
    %v1437 = vmul.f32 %v1434, %v76
    %v1438 = vmul.f32 %v1434, %v77
    %v1439 = vadd.f32 %v1429, %v1435
    %v1440 = vadd.f32 %v1430, %v1436
    %v1441 = vadd.f32 %v1431, %v1437
    %v1442 = vadd.f32 %v1432, %v1438
    %s1443 = sld [smem:[#allocation6 + $0x3]]
    %v1444 = vstv %s1443
    %v1445 = vadd.f32 %v1439, %v1444
    %v1446 = vadd.f32 %v1440, %v1444
    %v1447 = vadd.f32 %v1441, %v1444
    %v1448 = vadd.f32 %v1442, %v1444
    %v1449 = vmax.f32 %v1445, 0.0
    %v1450 = vmax.f32 %v1446, 0.0
    %v1451 = vmax.f32 %v1447, 0.0
    %v1452 = vmax.f32 %v1448, 0.0
    %1453 = vst [vmem:[#allocation2 + $0xc0] sm:$0xff] %v1449
    %1454 = vst [vmem:[#allocation2 + $0xc8] sm:$0xff] %v1450
    %1455 = vst [vmem:[#allocation2 + $0xd0] sm:$0xff] %v1451
    %1456 = vst [vmem:[#allocation2 + $0xd8] sm:$0xff] %v1452
    %v1457 = vld [vmem:[%s7] sm:$0xff]
    %v1458 = vld [vmem:[%s7 + $0x8] sm:$0xff]
    %v1459 = vld [vmem:[%s7 + $0x10] sm:$0xff]
    %v1460 = vld [vmem:[%s7 + $0x18] sm:$0xff]
    %v1461 = vld [vmem:[%s7 + $0x20] sm:$0xff]
    %v1462 = vld [vmem:[%s7 + $0x28] sm:$0xff]
    %v1463 = vld [vmem:[%s7 + $0x30] sm:$0xff]
    %v1464 = vld [vmem:[%s7 + $0x38] sm:$0xff]
    %v1465 = vld [vmem:[%s7 + $0x40] sm:$0xff]
    %v1466 = vld [vmem:[%s7 + $0x48] sm:$0xff]
    %v1467 = vld [vmem:[%s7 + $0x50] sm:$0xff]
    %v1468 = vld [vmem:[%s7 + $0x58] sm:$0xff]
    %v1469 = vld [vmem:[%s7 + $0x60] sm:$0xff]
    %v1470 = vld [vmem:[%s7 + $0x68] sm:$0xff]
    %v1471 = vld [vmem:[%s7 + $0x70] sm:$0xff]
    %v1472 = vld [vmem:[%s7 + $0x78] sm:$0xff]
    %v1473 = vld [vmem:[%s7 + $0x80] sm:$0xff]
    %v1474 = vld [vmem:[%s7 + $0x88] sm:$0xff]
    %v1475 = vld [vmem:[%s7 + $0x90] sm:$0xff]
    %v1476 = vld [vmem:[%s7 + $0x98] sm:$0xff]
    %v1477 = vld [vmem:[%s7 + $0xa0] sm:$0xff]
    %v1478 = vld [vmem:[%s7 + $0xa8] sm:$0xff]
    %v1479 = vld [vmem:[%s7 + $0xb0] sm:$0xff]
    %v1480 = vld [vmem:[%s7 + $0xb8] sm:$0xff]
    %v1481 = vld [vmem:[#allocation2] sm:$0xff]
    %v1482 = vld [vmem:[#allocation2 + $0x8] sm:$0xff]
    %v1483 = vld [vmem:[#allocation2 + $0x10] sm:$0xff]
    %v1484 = vld [vmem:[#allocation2 + $0x18] sm:$0xff]
    %v1485 = vld [vmem:[#allocation2 + $0x20] sm:$0xff]
    %v1486 = vld [vmem:[#allocation2 + $0x28] sm:$0xff]
    %v1487 = vld [vmem:[#allocation2 + $0x30] sm:$0xff]
    %v1488 = vld [vmem:[#allocation2 + $0x38] sm:$0xff]
    %v1489 = vld [vmem:[#allocation2 + $0x40] sm:$0xff]
    %v1490 = vld [vmem:[#allocation2 + $0x48] sm:$0xff]
    %v1491 = vld [vmem:[#allocation2 + $0x50] sm:$0xff]
    %v1492 = vld [vmem:[#allocation2 + $0x58] sm:$0xff]
    %v1493 = vld [vmem:[#allocation2 + $0x60] sm:$0xff]
    %v1494 = vld [vmem:[#allocation2 + $0x68] sm:$0xff]
    %v1495 = vld [vmem:[#allocation2 + $0x70] sm:$0xff]
    %v1496 = vld [vmem:[#allocation2 + $0x78] sm:$0xff]
    %v1497 = vld [vmem:[#allocation2 + $0x80] sm:$0xff]
    %v1498 = vld [vmem:[#allocation2 + $0x88] sm:$0xff]
    %v1499 = vld [vmem:[#allocation2 + $0x90] sm:$0xff]
    %v1500 = vld [vmem:[#allocation2 + $0x98] sm:$0xff]
    %v1501 = vld [vmem:[#allocation2 + $0xa0] sm:$0xff]
    %v1502 = vld [vmem:[#allocation2 + $0xa8] sm:$0xff]
    %v1503 = vld [vmem:[#allocation2 + $0xb0] sm:$0xff]
    %v1504 = vld [vmem:[#allocation2 + $0xb8] sm:$0xff]
    %v1505 = vld [vmem:[#allocation2 + $0xc0] sm:$0xff]
    %v1506 = vld [vmem:[#allocation2 + $0xc8] sm:$0xff]
    %v1507 = vld [vmem:[#allocation2 + $0xd0] sm:$0xff]
    %v1508 = vld [vmem:[#allocation2 + $0xd8] sm:$0xff]
    %v1509 = vld [vmem:[%s8] sm:$0xff]
    %v1510 = vld [vmem:[%s8 + $0x8] sm:$0xff]
    %v1511 = vld [vmem:[%s8 + $0x10] sm:$0xff]
    %v1512 = vld [vmem:[%s8 + $0x18] sm:$0xff]
    %v1513 = vld [vmem:[%s8 + $0x20] sm:$0xff]
    %v1514 = vld [vmem:[%s8 + $0x28] sm:$0xff]
    %v1515 = vld [vmem:[%s8 + $0x30] sm:$0xff]
    %v1516 = vld [vmem:[%s8 + $0x38] sm:$0xff]
    %v1517 = vld [vmem:[%s8 + $0x40] sm:$0xff]
    %v1518 = vld [vmem:[%s8 + $0x48] sm:$0xff]
    %v1519 = vld [vmem:[%s8 + $0x50] sm:$0xff]
    %v1520 = vld [vmem:[%s8 + $0x58] sm:$0xff]
    %1522 = vset.pattern.permute.xlu0 0
    %1523 = vperm.xlu0 %1522, %v1509
    %v1524 = vpop.permute.xlu0 %1523
    %1527 = vset.pattern.permute.xlu0 0
    %1528 = vperm.xlu0 %1527, %v1510
    %v1529 = vpop.permute.xlu0 %1528
    %1532 = vset.pattern.permute.xlu0 0
    %1533 = vperm.xlu0 %1532, %v1511
    %v1534 = vpop.permute.xlu0 %1533
    %1537 = vset.pattern.permute.xlu0 0
    %1538 = vperm.xlu0 %1537, %v1512
    %v1539 = vpop.permute.xlu0 %1538
    %1542 = vset.pattern.permute.xlu0 0
    %1543 = vperm.xlu0 %1542, %v1513
    %v1544 = vpop.permute.xlu0 %1543
    %1547 = vset.pattern.permute.xlu0 0
    %1548 = vperm.xlu0 %1547, %v1514
    %v1549 = vpop.permute.xlu0 %1548
    %1552 = vset.pattern.permute.xlu0 0
    %1553 = vperm.xlu0 %1552, %v1515
    %v1554 = vpop.permute.xlu0 %1553
    %1557 = vset.pattern.permute.xlu0 0
    %1558 = vperm.xlu0 %1557, %v1516
    %v1559 = vpop.permute.xlu0 %1558
    %1562 = vset.pattern.permute.xlu0 0
    %1563 = vperm.xlu0 %1562, %v1517
    %v1564 = vpop.permute.xlu0 %1563
    %1567 = vset.pattern.permute.xlu0 0
    %1568 = vperm.xlu0 %1567, %v1518
    %v1569 = vpop.permute.xlu0 %1568
    %1572 = vset.pattern.permute.xlu0 0
    %1573 = vperm.xlu0 %1572, %v1519
    %v1574 = vpop.permute.xlu0 %1573
    %1577 = vset.pattern.permute.xlu0 0
    %1578 = vperm.xlu0 %1577, %v1520
    %v1579 = vpop.permute.xlu0 %1578
    %vm1581 = vcmask 785408
    %v1583 = vsel %vm1581, %v1458, 0
    %v1586 = vsel %vm1581, %v1460, 0
    %v1589 = vsel %vm1581, %v1462, 0
    %v1592 = vsel %vm1581, %v1464, 0
    %v1595 = vsel %vm1581, %v1466, 0
    %v1598 = vsel %vm1581, %v1468, 0
    %v1601 = vsel %vm1581, %v1470, 0
    %v1604 = vsel %vm1581, %v1472, 0
    %v1607 = vsel %vm1581, %v1474, 0
    %v1610 = vsel %vm1581, %v1476, 0
    %v1613 = vsel %vm1581, %v1478, 0
    %v1616 = vsel %vm1581, %v1480, 0
    %1618 = vmatprep.subr.mxu0 0.0
    %1619 = vmatpush1.msra.mxu0 %v1481
    %1620 = vmatprep.subr.mxu0 0.0
    %1621 = vmatpush1.msra.mxu0 %v1482
    %1622 = vmatprep.subr.mxu0 0.0
    %1623 = vmatpush1.msra.mxu0 %v1483
    %1624 = vmatprep.subr.mxu0 0.0
    %1625 = vmatpush1.msra.mxu0 %v1484
    %1626 = vmatprep.subr.mxu0 0.0
    %1627 = vmatpush1.msra.mxu0 %v1485
    %1628 = vmatprep.subr.mxu0 0.0
    %1629 = vmatpush1.msra.mxu0 %v1486
    %1630 = vmatprep.subr.mxu0 0.0
    %1631 = vmatpush1.msra.mxu0 %v1487
    %1632 = vmatprep.subr.mxu0 0.0
    %1633 = vmatpush1.msra.mxu0 %v1488
    %1634 = vmatprep.subr.mxu0 0.0
    %1635 = vmatpush1.msra.mxu0 %v1489
    %1636 = vmatprep.subr.mxu0 0.0
    %1637 = vmatpush1.msra.mxu0 %v1490
    %1638 = vmatprep.subr.mxu0 0.0
    %1639 = vmatpush1.msra.mxu0 %v1491
    %1640 = vmatprep.subr.mxu0 0.0
    %1641 = vmatpush1.msra.mxu0 %v1492
    %1642 = vmatprep.subr.mxu0 0.0
    %1643 = vmatpush1.msra.mxu0 %v1493
    %1644 = vmatprep.subr.mxu0 0.0
    %1645 = vmatpush1.msra.mxu0 %v1494
    %1646 = vmatprep.subr.mxu0 0.0
    %1647 = vmatpush1.msra.mxu0 %v1495
    %1648 = vmatprep.subr.mxu0 0.0
    %1649 = vmatpush1.msra.mxu0 %v1496
    %1650 = vmatprep.subr.mxu0 0.0
    %1651 = vmatpush1.msra.mxu0 %v1497
    %1652 = vmatprep.subr.mxu0 0.0
    %1653 = vmatpush1.msra.mxu0 %v1498
    %1654 = vmatprep.subr.mxu0 0.0
    %1655 = vmatpush1.msra.mxu0 %v1499
    %1656 = vmatprep.subr.mxu0 0.0
    %1657 = vmatpush1.msra.mxu0 %v1500
    %1658 = vmatprep.subr.mxu0 0.0
    %1659 = vmatpush1.msra.mxu0 %v1501
    %1660 = vmatprep.subr.mxu0 0.0
    %1661 = vmatpush1.msra.mxu0 %v1502
    %1662 = vmatprep.subr.mxu0 0.0
    %1663 = vmatpush1.msra.mxu0 %v1503
    %1664 = vmatprep.subr.mxu0 0.0
    %1665 = vmatpush1.msra.mxu0 %v1504
    %1666 = vmatprep.subr.mxu0 0.0
    %1667 = vmatpush1.msra.mxu0 %v1505
    %1668 = vmatprep.subr.mxu0 0.0
    %1669 = vmatpush1.msra.mxu0 %v1506
    %1670 = vmatprep.subr.mxu0 0.0
    %1671 = vmatpush1.msra.mxu0 %v1507
    %1672 = vmatprep.subr.mxu0 0.0
    %1673 = vmatpush1.msra.mxu0 %v1508
    %1674 = vmatprep.subr.mxu0 0.0
    %1675 = vmatpush1.msra.mxu0 0.0
    %1676 = vmatprep.subr.mxu0 0.0
    %1677 = vmatpush1.msra.mxu0 0.0
    %1678 = vmatprep.subr.mxu0 0.0
    %1679 = vmatpush1.msra.mxu0 0.0
    %1680 = vmatprep.subr.mxu0 0.0
    %1681 = vmatpush1.msra.mxu0 0.0
    %1682 = vmatprep.mubr.f32.mxu0 %v1583
    %1683 = vmatmul.mubr.f32.gmra.mrb[0].mxu0 %v1457
    %v1684 = vpop.f32.mrb[0].mxu0
    %v1685 = vadd.f32 %v1524, %v1684
    %v1686 = vpop.f32.mrb[0].mxu0
    %1687 = vmatprep.mubr.f32.mxu0 %v1586
    %1688 = vmatmul.mubr.f32.gmra.mrb[0].mxu0 %v1459
    %v1689 = vpop.f32.mrb[0].mxu0
    %v1690 = vadd.f32 %v1529, %v1689
    %v1691 = vpop.f32.mrb[0].mxu0
    %1692 = vmatprep.mubr.f32.mxu0 %v1589
    %1693 = vmatmul.mubr.f32.gmra.mrb[0].mxu0 %v1461
    %v1694 = vpop.f32.mrb[0].mxu0
    %v1695 = vadd.f32 %v1534, %v1694
    %v1696 = vpop.f32.mrb[0].mxu0
    %1697 = vmatprep.mubr.f32.mxu0 %v1592
    %1698 = vmatmul.mubr.f32.gmra.mrb[0].mxu0 %v1463
    %v1699 = vpop.f32.mrb[0].mxu0
    %v1700 = vadd.f32 %v1539, %v1699
    %v1701 = vpop.f32.mrb[0].mxu0
    %1702 = vmatprep.mubr.f32.mxu0 %v1595
    %1703 = vmatmul.mubr.f32.gmra.mrb[0].mxu0 %v1465
    %v1704 = vpop.f32.mrb[0].mxu0
    %v1705 = vadd.f32 %v1544, %v1704
    %v1706 = vpop.f32.mrb[0].mxu0
    %1707 = vmatprep.mubr.f32.mxu0 %v1598
    %1708 = vmatmul.mubr.f32.gmra.mrb[0].mxu0 %v1467
    %v1709 = vpop.f32.mrb[0].mxu0
    %v1710 = vadd.f32 %v1549, %v1709
    %v1711 = vpop.f32.mrb[0].mxu0
    %1712 = vmatprep.mubr.f32.mxu0 %v1601
    %1713 = vmatmul.mubr.f32.gmra.mrb[0].mxu0 %v1469
    %v1714 = vpop.f32.mrb[0].mxu0
    %v1715 = vadd.f32 %v1554, %v1714
    %v1716 = vpop.f32.mrb[0].mxu0
    %1717 = vmatprep.mubr.f32.mxu0 %v1604
    %1718 = vmatmul.mubr.f32.gmra.mrb[0].mxu0 %v1471
    %v1719 = vpop.f32.mrb[0].mxu0
    %v1720 = vadd.f32 %v1559, %v1719
    %v1721 = vpop.f32.mrb[0].mxu0
    %1722 = vmatprep.mubr.f32.mxu0 %v1607
    %1723 = vmatmul.mubr.f32.gmra.mrb[0].mxu0 %v1473
    %v1724 = vpop.f32.mrb[0].mxu0
    %v1725 = vadd.f32 %v1564, %v1724
    %v1726 = vpop.f32.mrb[0].mxu0
    %1727 = vmatprep.mubr.f32.mxu0 %v1610
    %1728 = vmatmul.mubr.f32.gmra.mrb[0].mxu0 %v1475
    %v1729 = vpop.f32.mrb[0].mxu0
    %v1730 = vadd.f32 %v1569, %v1729
    %v1731 = vpop.f32.mrb[0].mxu0
    %1732 = vmatprep.mubr.f32.mxu0 %v1613
    %1733 = vmatmul.mubr.f32.gmra.mrb[0].mxu0 %v1477
    %v1734 = vpop.f32.mrb[0].mxu0
    %v1735 = vadd.f32 %v1574, %v1734
    %v1736 = vpop.f32.mrb[0].mxu0
    %1737 = vmatprep.mubr.f32.mxu0 %v1616
    %1738 = vmatmul.mubr.f32.gmra.mrb[0].mxu0 %v1479
    %v1739 = vpop.f32.mrb[0].mxu0
    %v1740 = vadd.f32 %v1579, %v1739
    %v1741 = vpop.f32.mrb[0].mxu0
    %1742 = vdwg.mxu0
    %1743 = vst [vmem:[#allocation8] sm:$0xff] %v1685
    %1744 = vst [vmem:[#allocation8 + $0x8] sm:$0xff] %v1690
    %1745 = vst [vmem:[#allocation8 + $0x10] sm:$0xff] %v1695
    %1746 = vst [vmem:[#allocation8 + $0x18] sm:$0xff] %v1700
    %1747 = vst [vmem:[#allocation8 + $0x20] sm:$0xff] %v1705
    %1748 = vst [vmem:[#allocation8 + $0x28] sm:$0xff] %v1710
    %1749 = vst [vmem:[#allocation8 + $0x30] sm:$0xff] %v1715
    %1750 = vst [vmem:[#allocation8 + $0x38] sm:$0xff] %v1720
    %1751 = vst [vmem:[#allocation8 + $0x40] sm:$0xff] %v1725
    %1752 = vst [vmem:[#allocation8 + $0x48] sm:$0xff] %v1730
    %1753 = vst [vmem:[#allocation8 + $0x50] sm:$0xff] %v1735
    %1754 = vst [vmem:[#allocation8 + $0x58] sm:$0xff] %v1740
    %s1755 = scalar_lea.vmem %s0, 96
    %v1756 = vld [vmem:[%s1755] sm:$0xff]
    %v1757 = vld [vmem:[%s1755 + $0x8] sm:$0xff]
    %v1758 = vld [vmem:[%s1755 + $0x10] sm:$0xff]
    %v1759 = vld [vmem:[%s1755 + $0x18] sm:$0xff]
    %s1760 = scalar_lea.vmem %s0, 128
    %v1761 = vld [vmem:[%s1760] sm:$0xff]
    %v1762 = vld [vmem:[%s1760 + $0x8] sm:$0xff]
    %v1763 = vld [vmem:[%s1760 + $0x10] sm:$0xff]
    %v1764 = vld [vmem:[%s1760 + $0x18] sm:$0xff]
    %s1765 = scalar_lea.vmem %s0, 160
    %v1766 = vld [vmem:[%s1765] sm:$0xff]
    %v1767 = vld [vmem:[%s1765 + $0x8] sm:$0xff]
    %v1768 = vld [vmem:[%s1765 + $0x10] sm:$0xff]
    %v1769 = vld [vmem:[%s1765 + $0x18] sm:$0xff]
    %1770 = vst [vmem:[#allocation2] sm:$0xff] %v1756
    %1771 = vst [vmem:[#allocation2 + $0x8] sm:$0xff] %v1757
    %1772 = vst [vmem:[#allocation2 + $0x10] sm:$0xff] %v1758
    %1773 = vst [vmem:[#allocation2 + $0x18] sm:$0xff] %v1759
    %1774 = vst [vmem:[#allocation2 + $0x20] sm:$0xff] %v1761
    %1775 = vst [vmem:[#allocation2 + $0x28] sm:$0xff] %v1762
    %1776 = vst [vmem:[#allocation2 + $0x30] sm:$0xff] %v1763
    %1777 = vst [vmem:[#allocation2 + $0x38] sm:$0xff] %v1764
    %1778 = vst [vmem:[#allocation2 + $0x40] sm:$0xff] %v1766
    %1779 = vst [vmem:[#allocation2 + $0x48] sm:$0xff] %v1767
    %1780 = vst [vmem:[#allocation2 + $0x50] sm:$0xff] %v1768
    %1781 = vst [vmem:[#allocation2 + $0x58] sm:$0xff] %v1769
    %s1782 = sld [smem:[#allocation3]]
    %v1783 = vstv %s1782
    %v1784 = vmul.f32 %v1783, %v1756
    %v1785 = vmul.f32 %v1783, %v1757
    %v1786 = vmul.f32 %v1783, %v1758
    %v1787 = vmul.f32 %v1783, %v1759
    %s1788 = sld [smem:[#allocation3 + $0x1]]
    %v1789 = vstv %s1788
    %v1790 = vmul.f32 %v1789, %v1761
    %v1791 = vmul.f32 %v1789, %v1762
    %v1792 = vmul.f32 %v1789, %v1763
    %v1793 = vmul.f32 %v1789, %v1764
    %v1794 = vadd.f32 %v1784, %v1790
    %v1795 = vadd.f32 %v1785, %v1791
    %v1796 = vadd.f32 %v1786, %v1792
    %v1797 = vadd.f32 %v1787, %v1793
    %s1798 = sld [smem:[#allocation3 + $0x2]]
    %v1799 = vstv %s1798
    %v1800 = vmul.f32 %v1799, %v1766
    %v1801 = vmul.f32 %v1799, %v1767
    %v1802 = vmul.f32 %v1799, %v1768
    %v1803 = vmul.f32 %v1799, %v1769
    %v1804 = vadd.f32 %v1794, %v1800
    %v1805 = vadd.f32 %v1795, %v1801
    %v1806 = vadd.f32 %v1796, %v1802
    %v1807 = vadd.f32 %v1797, %v1803
    %v1808 = vld [vmem:[%s1] sm:$0xff]
    %v1809 = vld [vmem:[%s1 + $0x8] sm:$0xff]
    %v1810 = vld [vmem:[%s4] sm:$0xff]
    %v1811 = vld [vmem:[%s4 + $0x8] sm:$0xff]
    %v1812 = vld [vmem:[%s4 + $0x10] sm:$0xff]
    %v1813 = vld [vmem:[%s4 + $0x18] sm:$0xff]
    %v1814 = vld [vmem:[%s4 + $0x20] sm:$0xff]
    %v1815 = vld [vmem:[%s4 + $0x28] sm:$0xff]
    %v1816 = vld [vmem:[%s4 + $0x30] sm:$0xff]
    %v1817 = vld [vmem:[%s4 + $0x38] sm:$0xff]
    %v1818 = vld [vmem:[%s4 + $0x40] sm:$0xff]
    %v1819 = vld [vmem:[%s4 + $0x48] sm:$0xff]
    %v1820 = vld [vmem:[%s4 + $0x50] sm:$0xff]
    %v1821 = vld [vmem:[%s4 + $0x58] sm:$0xff]
    %v1822 = vld [vmem:[%s4 + $0x60] sm:$0xff]
    %v1823 = vld [vmem:[%s4 + $0x68] sm:$0xff]
    %v1824 = vld [vmem:[%s4 + $0x70] sm:$0xff]
    %v1825 = vld [vmem:[%s4 + $0x78] sm:$0xff]
    %v1827 = vsel %vm134, %v1808, 0
    %1829 = vmatprep.subr.mxu0 0.0
    %1830 = vmatpush1.msra.mxu0 %v1804
    %1831 = vmatprep.subr.mxu0 0.0
    %1832 = vmatpush1.msra.mxu0 %v1805
    %1833 = vmatprep.subr.mxu0 0.0
    %1834 = vmatpush1.msra.mxu0 %v1806
    %1835 = vmatprep.subr.mxu0 0.0
    %1836 = vmatpush1.msra.mxu0 %v1807
    %1837 = vmatprep.subr.mxu0 0.0
    %1838 = vmatpush1.msra.mxu0 0.0
    %1839 = vmatprep.subr.mxu0 0.0
    %1840 = vmatpush1.msra.mxu0 0.0
    %1841 = vmatprep.subr.mxu0 0.0
    %1842 = vmatpush1.msra.mxu0 0.0
    %1843 = vmatprep.subr.mxu0 0.0
    %1844 = vmatpush1.msra.mxu0 0.0
    %1845 = vmatprep.subr.mxu0 0.0
    %1846 = vmatpush1.msra.mxu0 0.0
    %1847 = vmatprep.subr.mxu0 0.0
    %1848 = vmatpush1.msra.mxu0 0.0
    %1849 = vmatprep.subr.mxu0 0.0
    %1850 = vmatpush1.msra.mxu0 0.0
    %1851 = vmatprep.subr.mxu0 0.0
    %1852 = vmatpush1.msra.mxu0 0.0
    %1853 = vmatprep.subr.mxu0 0.0
    %1854 = vmatpush1.msra.mxu0 0.0
    %1855 = vmatprep.subr.mxu0 0.0
    %1856 = vmatpush1.msra.mxu0 0.0
    %1857 = vmatprep.subr.mxu0 0.0
    %1858 = vmatpush1.msra.mxu0 0.0
    %1859 = vmatprep.subr.mxu0 0.0
    %1860 = vmatpush1.msra.mxu0 0.0
    %1861 = vmatprep.subr.mxu0 0.0
    %1862 = vmatpush1.msra.mxu0 0.0
    %1863 = vmatprep.subr.mxu0 0.0
    %1864 = vmatpush1.msra.mxu0 0.0
    %1865 = vmatprep.subr.mxu0 0.0
    %1866 = vmatpush1.msra.mxu0 0.0
    %1867 = vmatprep.subr.mxu0 0.0
    %1868 = vmatpush1.msra.mxu0 0.0
    %1869 = vmatprep.subr.mxu0 0.0
    %1870 = vmatpush1.msra.mxu0 0.0
    %1871 = vmatprep.subr.mxu0 0.0
    %1872 = vmatpush1.msra.mxu0 0.0
    %1873 = vmatprep.subr.mxu0 0.0
    %1874 = vmatpush1.msra.mxu0 0.0
    %1875 = vmatprep.subr.mxu0 0.0
    %1876 = vmatpush1.msra.mxu0 0.0
    %1877 = vmatprep.subr.mxu0 0.0
    %1878 = vmatpush1.msra.mxu0 0.0
    %1879 = vmatprep.subr.mxu0 0.0
    %1880 = vmatpush1.msra.mxu0 0.0
    %1881 = vmatprep.subr.mxu0 0.0
    %1882 = vmatpush1.msra.mxu0 0.0
    %1883 = vmatprep.subr.mxu0 0.0
    %1884 = vmatpush1.msra.mxu0 0.0
    %1885 = vmatprep.subr.mxu0 0.0
    %1886 = vmatpush1.msra.mxu0 0.0
    %1887 = vmatprep.subr.mxu0 0.0
    %1888 = vmatpush1.msra.mxu0 0.0
    %1889 = vmatprep.subr.mxu0 0.0
    %1890 = vmatpush1.msra.mxu0 0.0
    %1891 = vmatprep.subr.mxu0 0.0
    %1892 = vmatpush1.msra.mxu0 0.0
    %1893 = vmatprep.mubr.f32.mxu0 0.0
    %1894 = vmatmul.mubr.f32.gmra.mrb[0].mxu0 %v1827
    %v1895 = vpop.f32.mrb[0].mxu0
    %v1896 = vadd.f32 0.0, %v1895
    %v1897 = vpop.f32.mrb[0].mxu0
    %1898 = vdwg.mxu0
    %s1899 = sld [smem:[#allocation6]]
    %v1900 = vstv %s1899
    %1901 = vmatprep.subr.mxu0 0.0
    %1902 = vmatpush1.xpose.msra.mxu0 %v1808
    %1903 = vmatprep.subr.mxu0 0.0
    %1904 = vmatpush1.xpose.msra.mxu0 %v1809
    %1905 = vmatprep.subr.mxu0 0.0
    %1906 = vmatpush1.xpose.msra.mxu0 0.0
    %1907 = vmatprep.subr.mxu0 0.0
    %1908 = vmatpush1.xpose.msra.mxu0 0.0
    %1909 = vmatprep.subr.mxu0 0.0
    %1910 = vmatpush1.xpose.msra.mxu0 0.0
    %1911 = vmatprep.subr.mxu0 0.0
    %1912 = vmatpush1.xpose.msra.mxu0 0.0
    %1913 = vmatprep.subr.mxu0 0.0
    %1914 = vmatpush1.xpose.msra.mxu0 0.0
    %1915 = vmatprep.subr.mxu0 0.0
    %1916 = vmatpush1.xpose.msra.mxu0 0.0
    %1917 = vmatprep.subr.mxu0 0.0
    %1918 = vmatpush1.xpose.msra.mxu0 0.0
    %1919 = vmatprep.subr.mxu0 0.0
    %1920 = vmatpush1.xpose.msra.mxu0 0.0
    %1921 = vmatprep.subr.mxu0 0.0
    %1922 = vmatpush1.xpose.msra.mxu0 0.0
    %1923 = vmatprep.subr.mxu0 0.0
    %1924 = vmatpush1.xpose.msra.mxu0 0.0
    %1925 = vmatprep.subr.mxu0 0.0
    %1926 = vmatpush1.xpose.msra.mxu0 0.0
    %1927 = vmatprep.subr.mxu0 0.0
    %1928 = vmatpush1.xpose.msra.mxu0 0.0
    %1929 = vmatprep.subr.mxu0 0.0
    %1930 = vmatpush1.xpose.msra.mxu0 0.0
    %1931 = vmatprep.subr.mxu0 0.0
    %1932 = vmatpush1.xpose.msra.mxu0 0.0
    %1933 = vmatprep.subr.mxu0 0.0
    %1934 = vmatpush1.xpose.msra.mxu0 0.0
    %1935 = vmatprep.subr.mxu0 0.0
    %1936 = vmatpush1.xpose.msra.mxu0 0.0
    %1937 = vmatprep.subr.mxu0 0.0
    %1938 = vmatpush1.xpose.msra.mxu0 0.0
    %1939 = vmatprep.subr.mxu0 0.0
    %1940 = vmatpush1.xpose.msra.mxu0 0.0
    %1941 = vmatprep.subr.mxu0 0.0
    %1942 = vmatpush1.xpose.msra.mxu0 0.0
    %1943 = vmatprep.subr.mxu0 0.0
    %1944 = vmatpush1.xpose.msra.mxu0 0.0
    %1945 = vmatprep.subr.mxu0 0.0
    %1946 = vmatpush1.xpose.msra.mxu0 0.0
    %1947 = vmatprep.subr.mxu0 0.0
    %1948 = vmatpush1.xpose.msra.mxu0 0.0
    %1949 = vmatprep.subr.mxu0 0.0
    %1950 = vmatpush1.xpose.msra.mxu0 0.0
    %1951 = vmatprep.subr.mxu0 0.0
    %1952 = vmatpush1.xpose.msra.mxu0 0.0
    %1953 = vmatprep.subr.mxu0 0.0
    %1954 = vmatpush1.xpose.msra.mxu0 0.0
    %1955 = vmatprep.subr.mxu0 0.0
    %1956 = vmatpush1.xpose.msra.mxu0 0.0
    %1957 = vmatprep.subr.mxu0 0.0
    %1958 = vmatpush1.xpose.msra.mxu0 0.0
    %1959 = vmatprep.subr.mxu0 0.0
    %1960 = vmatpush1.xpose.msra.mxu0 0.0
    %1961 = vmatprep.subr.mxu0 0.0
    %1962 = vmatpush1.xpose.msra.mxu0 0.0
    %1963 = vmatprep.subr.mxu0 0.0
    %1964 = vmatpush1.xpose.msra.mxu0 0.0
    %1965 = vmatprep.mubr.f32.mxu0 0.0
    %1966 = vmatmul.mubr.f32.gmra.mrb[0].mxu0 %v1896
    %v1967 = vpop.f32.mrb[0].mxu0
    %v1968 = vadd.f32 %v1900, %v1967
    %v1969 = vpop.f32.mrb[0].mxu0
    %1970 = vdwg.mxu0
    %v1971 = vmax.f32 %v1968, 0.0
    %v1973 = vsel %vm281, %v1810, 0
    %v1976 = vsel %vm281, %v1811, 0
    %v1979 = vsel %vm281, %v1812, 0
    %v1982 = vsel %vm281, %v1813, 0
    %v1985 = vsel %vm294, %v1971, 0
    %1987 = vmatprep.subr.mxu0 0.0
    %1988 = vmatpush1.msra.mxu0 %v1985
    %1989 = vmatprep.subr.mxu0 0.0
    %1990 = vmatpush1.msra.mxu0 0.0
    %1991 = vmatprep.subr.mxu0 0.0
    %1992 = vmatpush1.msra.mxu0 0.0
    %1993 = vmatprep.subr.mxu0 0.0
    %1994 = vmatpush1.msra.mxu0 0.0
    %1995 = vmatprep.subr.mxu0 0.0
    %1996 = vmatpush1.msra.mxu0 0.0
    %1997 = vmatprep.subr.mxu0 0.0
    %1998 = vmatpush1.msra.mxu0 0.0
    %1999 = vmatprep.subr.mxu0 0.0
    %2000 = vmatpush1.msra.mxu0 0.0
    %2001 = vmatprep.subr.mxu0 0.0
    %2002 = vmatpush1.msra.mxu0 0.0
    %2003 = vmatprep.subr.mxu0 0.0
    %2004 = vmatpush1.msra.mxu0 0.0
    %2005 = vmatprep.subr.mxu0 0.0
    %2006 = vmatpush1.msra.mxu0 0.0
    %2007 = vmatprep.subr.mxu0 0.0
    %2008 = vmatpush1.msra.mxu0 0.0
    %2009 = vmatprep.subr.mxu0 0.0
    %2010 = vmatpush1.msra.mxu0 0.0
    %2011 = vmatprep.subr.mxu0 0.0
    %2012 = vmatpush1.msra.mxu0 0.0
    %2013 = vmatprep.subr.mxu0 0.0
    %2014 = vmatpush1.msra.mxu0 0.0
    %2015 = vmatprep.subr.mxu0 0.0
    %2016 = vmatpush1.msra.mxu0 0.0
    %2017 = vmatprep.subr.mxu0 0.0
    %2018 = vmatpush1.msra.mxu0 0.0
    %2019 = vmatprep.subr.mxu0 0.0
    %2020 = vmatpush1.msra.mxu0 0.0
    %2021 = vmatprep.subr.mxu0 0.0
    %2022 = vmatpush1.msra.mxu0 0.0
    %2023 = vmatprep.subr.mxu0 0.0
    %2024 = vmatpush1.msra.mxu0 0.0
    %2025 = vmatprep.subr.mxu0 0.0
    %2026 = vmatpush1.msra.mxu0 0.0
    %2027 = vmatprep.subr.mxu0 0.0
    %2028 = vmatpush1.msra.mxu0 0.0
    %2029 = vmatprep.subr.mxu0 0.0
    %2030 = vmatpush1.msra.mxu0 0.0
    %2031 = vmatprep.subr.mxu0 0.0
    %2032 = vmatpush1.msra.mxu0 0.0
    %2033 = vmatprep.subr.mxu0 0.0
    %2034 = vmatpush1.msra.mxu0 0.0
    %2035 = vmatprep.subr.mxu0 0.0
    %2036 = vmatpush1.msra.mxu0 0.0
    %2037 = vmatprep.subr.mxu0 0.0
    %2038 = vmatpush1.msra.mxu0 0.0
    %2039 = vmatprep.subr.mxu0 0.0
    %2040 = vmatpush1.msra.mxu0 0.0
    %2041 = vmatprep.subr.mxu0 0.0
    %2042 = vmatpush1.msra.mxu0 0.0
    %2043 = vmatprep.subr.mxu0 0.0
    %2044 = vmatpush1.msra.mxu0 0.0
    %2045 = vmatprep.subr.mxu0 0.0
    %2046 = vmatpush1.msra.mxu0 0.0
    %2047 = vmatprep.subr.mxu0 0.0
    %2048 = vmatpush1.msra.mxu0 0.0
    %2049 = vmatprep.subr.mxu0 0.0
    %2050 = vmatpush1.msra.mxu0 0.0
    %2051 = vmatprep.mubr.f32.mxu0 0.0
    %2052 = vmatmul.mubr.f32.gmra.mrb[0].mxu0 %v1973
    %v2053 = vpop.f32.mrb[0].mxu0
    %v2054 = vadd.f32 0.0, %v2053
    %v2055 = vpop.f32.mrb[0].mxu0
    %2056 = vmatprep.mubr.f32.mxu0 0.0
    %2057 = vmatmul.mubr.f32.gmra.mrb[0].mxu0 %v1976
    %v2058 = vpop.f32.mrb[0].mxu0
    %v2059 = vadd.f32 0.0, %v2058
    %v2060 = vpop.f32.mrb[0].mxu0
    %2061 = vmatprep.mubr.f32.mxu0 0.0
    %2062 = vmatmul.mubr.f32.gmra.mrb[0].mxu0 %v1979
    %v2063 = vpop.f32.mrb[0].mxu0
    %v2064 = vadd.f32 0.0, %v2063
    %v2065 = vpop.f32.mrb[0].mxu0
    %2066 = vmatprep.mubr.f32.mxu0 0.0
    %2067 = vmatmul.mubr.f32.gmra.mrb[0].mxu0 %v1982
    %v2068 = vpop.f32.mrb[0].mxu0
    %v2069 = vadd.f32 0.0, %v2068
    %v2070 = vpop.f32.mrb[0].mxu0
    %2071 = vdwg.mxu0
    %v2073 = vsel %vm383, %v2054, 0
    %v2076 = vsel %vm383, %v2059, 0
    %v2079 = vsel %vm383, %v2064, 0
    %v2082 = vsel %vm383, %v2069, 0
    %v2084 = vsel %vm383, %v1810, 0
    %v2086 = vsel %vm383, %v1811, 0
    %v2088 = vsel %vm383, %v1812, 0
    %v2090 = vsel %vm383, %v1813, 0
    %v2093 = vsel %vm383, %v1814, 0
    %v2096 = vsel %vm383, %v1815, 0
    %v2099 = vsel %vm383, %v1816, 0
    %v2102 = vsel %vm383, %v1817, 0
    %v2105 = vsel %vm383, %v1818, 0
    %v2108 = vsel %vm383, %v1819, 0
    %v2111 = vsel %vm383, %v1820, 0
    %v2114 = vsel %vm383, %v1821, 0
    %v2117 = vsel %vm383, %v1822, 0
    %v2120 = vsel %vm383, %v1823, 0
    %v2123 = vsel %vm383, %v1824, 0
    %v2126 = vsel %vm383, %v1825, 0
    %2128 = vmatprep.subr.mxu0 0.0
    %2129 = vmatpush1.xpose.msra.mxu0 %v2084
    %2130 = vmatprep.subr.mxu0 0.0
    %2131 = vmatpush1.xpose.msra.mxu0 %v2086
    %2132 = vmatprep.subr.mxu0 0.0
    %2133 = vmatpush1.xpose.msra.mxu0 %v2088
    %2134 = vmatprep.subr.mxu0 0.0
    %2135 = vmatpush1.xpose.msra.mxu0 %v2090
    %2136 = vmatprep.subr.mxu0 0.0
    %2137 = vmatpush1.xpose.msra.mxu0 %v2093
    %2138 = vmatprep.subr.mxu0 0.0
    %2139 = vmatpush1.xpose.msra.mxu0 %v2096
    %2140 = vmatprep.subr.mxu0 0.0
    %2141 = vmatpush1.xpose.msra.mxu0 %v2099
    %2142 = vmatprep.subr.mxu0 0.0
    %2143 = vmatpush1.xpose.msra.mxu0 %v2102
    %2144 = vmatprep.subr.mxu0 0.0
    %2145 = vmatpush1.xpose.msra.mxu0 %v2105
    %2146 = vmatprep.subr.mxu0 0.0
    %2147 = vmatpush1.xpose.msra.mxu0 %v2108
    %2148 = vmatprep.subr.mxu0 0.0
    %2149 = vmatpush1.xpose.msra.mxu0 %v2111
    %2150 = vmatprep.subr.mxu0 0.0
    %2151 = vmatpush1.xpose.msra.mxu0 %v2114
    %2152 = vmatprep.subr.mxu0 0.0
    %2153 = vmatpush1.xpose.msra.mxu0 %v2117
    %2154 = vmatprep.subr.mxu0 0.0
    %2155 = vmatpush1.xpose.msra.mxu0 %v2120
    %2156 = vmatprep.subr.mxu0 0.0
    %2157 = vmatpush1.xpose.msra.mxu0 %v2123
    %2158 = vmatprep.subr.mxu0 0.0
    %2159 = vmatpush1.xpose.msra.mxu0 %v2126
    %2160 = vmatprep.subr.mxu0 0.0
    %2161 = vmatpush1.xpose.msra.mxu0 0.0
    %2162 = vmatprep.subr.mxu0 0.0
    %2163 = vmatpush1.xpose.msra.mxu0 0.0
    %2164 = vmatprep.subr.mxu0 0.0
    %2165 = vmatpush1.xpose.msra.mxu0 0.0
    %2166 = vmatprep.subr.mxu0 0.0
    %2167 = vmatpush1.xpose.msra.mxu0 0.0
    %2168 = vmatprep.subr.mxu0 0.0
    %2169 = vmatpush1.xpose.msra.mxu0 0.0
    %2170 = vmatprep.subr.mxu0 0.0
    %2171 = vmatpush1.xpose.msra.mxu0 0.0
    %2172 = vmatprep.subr.mxu0 0.0
    %2173 = vmatpush1.xpose.msra.mxu0 0.0
    %2174 = vmatprep.subr.mxu0 0.0
    %2175 = vmatpush1.xpose.msra.mxu0 0.0
    %2176 = vmatprep.subr.mxu0 0.0
    %2177 = vmatpush1.xpose.msra.mxu0 0.0
    %2178 = vmatprep.subr.mxu0 0.0
    %2179 = vmatpush1.xpose.msra.mxu0 0.0
    %2180 = vmatprep.subr.mxu0 0.0
    %2181 = vmatpush1.xpose.msra.mxu0 0.0
    %2182 = vmatprep.subr.mxu0 0.0
    %2183 = vmatpush1.xpose.msra.mxu0 0.0
    %2184 = vmatprep.subr.mxu0 0.0
    %2185 = vmatpush1.xpose.msra.mxu0 0.0
    %2186 = vmatprep.subr.mxu0 0.0
    %2187 = vmatpush1.xpose.msra.mxu0 0.0
    %2188 = vmatprep.subr.mxu0 0.0
    %2189 = vmatpush1.xpose.msra.mxu0 0.0
    %2190 = vmatprep.subr.mxu0 0.0
    %2191 = vmatpush1.xpose.msra.mxu0 0.0
    %2192 = vmatprep.mubr.f32.mxu0 0.0
    %2193 = vmatmul.mubr.f32.gmra.mrb[0].mxu0 %v2073
    %v2194 = vpop.f32.mrb[0].mxu0
    %v2195 = vadd.f32 0.0, %v2194
    %v2196 = vpop.f32.mrb[0].mxu0
    %2197 = vmatprep.mubr.f32.mxu0 0.0
    %2198 = vmatmul.mubr.f32.gmra.mrb[0].mxu0 %v2076
    %v2199 = vpop.f32.mrb[0].mxu0
    %v2200 = vadd.f32 0.0, %v2199
    %v2201 = vpop.f32.mrb[0].mxu0
    %2202 = vmatprep.mubr.f32.mxu0 0.0
    %2203 = vmatmul.mubr.f32.gmra.mrb[0].mxu0 %v2079
    %v2204 = vpop.f32.mrb[0].mxu0
    %v2205 = vadd.f32 0.0, %v2204
    %v2206 = vpop.f32.mrb[0].mxu0
    %2207 = vmatprep.mubr.f32.mxu0 0.0
    %2208 = vmatmul.mubr.f32.gmra.mrb[0].mxu0 %v2082
    %v2209 = vpop.f32.mrb[0].mxu0
    %v2210 = vadd.f32 0.0, %v2209
    %v2211 = vpop.f32.mrb[0].mxu0
    %2212 = vdwg.mxu0
    %2213 = vst [vmem:[#allocation2 + $0x60] sm:$0xff] %v2195
    %2214 = vst [vmem:[#allocation2 + $0x68] sm:$0xff] %v2200
    %2215 = vst [vmem:[#allocation2 + $0x70] sm:$0xff] %v2205
    %2216 = vst [vmem:[#allocation2 + $0x78] sm:$0xff] %v2210
    %s2217 = sld [smem:[#allocation3 + $0x80]]
    %v2218 = vstv %s2217
    %v2219 = vmul.f32 %v2218, %v1756
    %v2220 = vmul.f32 %v2218, %v1757
    %v2221 = vmul.f32 %v2218, %v1758
    %v2222 = vmul.f32 %v2218, %v1759
    %s2223 = sld [smem:[#allocation3 + $0x81]]
    %v2224 = vstv %s2223
    %v2225 = vmul.f32 %v2224, %v1761
    %v2226 = vmul.f32 %v2224, %v1762
    %v2227 = vmul.f32 %v2224, %v1763
    %v2228 = vmul.f32 %v2224, %v1764
    %v2229 = vadd.f32 %v2219, %v2225
    %v2230 = vadd.f32 %v2220, %v2226
    %v2231 = vadd.f32 %v2221, %v2227
    %v2232 = vadd.f32 %v2222, %v2228
    %s2233 = sld [smem:[#allocation3 + $0x82]]
    %v2234 = vstv %s2233
    %v2235 = vmul.f32 %v2234, %v1766
    %v2236 = vmul.f32 %v2234, %v1767
    %v2237 = vmul.f32 %v2234, %v1768
    %v2238 = vmul.f32 %v2234, %v1769
    %v2239 = vadd.f32 %v2229, %v2235
    %v2240 = vadd.f32 %v2230, %v2236
    %v2241 = vadd.f32 %v2231, %v2237
    %v2242 = vadd.f32 %v2232, %v2238
    %v2243 = vld [vmem:[%s2] sm:$0xff]
    %v2244 = vld [vmem:[%s2 + $0x8] sm:$0xff]
    %v2245 = vld [vmem:[%s2 + $0x10] sm:$0xff]
    %v2246 = vld [vmem:[%s2 + $0x18] sm:$0xff]
    %v2247 = vld [vmem:[%s5] sm:$0xff]
    %v2248 = vld [vmem:[%s5 + $0x8] sm:$0xff]
    %v2249 = vld [vmem:[%s5 + $0x10] sm:$0xff]
    %v2250 = vld [vmem:[%s5 + $0x18] sm:$0xff]
    %v2251 = vld [vmem:[%s5 + $0x20] sm:$0xff]
    %v2252 = vld [vmem:[%s5 + $0x28] sm:$0xff]
    %v2253 = vld [vmem:[%s5 + $0x30] sm:$0xff]
    %v2254 = vld [vmem:[%s5 + $0x38] sm:$0xff]
    %v2255 = vld [vmem:[%s5 + $0x40] sm:$0xff]
    %v2256 = vld [vmem:[%s5 + $0x48] sm:$0xff]
    %v2257 = vld [vmem:[%s5 + $0x50] sm:$0xff]
    %v2258 = vld [vmem:[%s5 + $0x58] sm:$0xff]
    %v2259 = vld [vmem:[%s5 + $0x60] sm:$0xff]
    %v2260 = vld [vmem:[%s5 + $0x68] sm:$0xff]
    %v2261 = vld [vmem:[%s5 + $0x70] sm:$0xff]
    %v2262 = vld [vmem:[%s5 + $0x78] sm:$0xff]
    %v2264 = vsel %vm134, %v2243, 0
    %2266 = vmatprep.subr.mxu0 0.0
    %2267 = vmatpush1.msra.mxu0 %v2239
    %2268 = vmatprep.subr.mxu0 0.0
    %2269 = vmatpush1.msra.mxu0 %v2240
    %2270 = vmatprep.subr.mxu0 0.0
    %2271 = vmatpush1.msra.mxu0 %v2241
    %2272 = vmatprep.subr.mxu0 0.0
    %2273 = vmatpush1.msra.mxu0 %v2242
    %2274 = vmatprep.subr.mxu0 0.0
    %2275 = vmatpush1.msra.mxu0 0.0
    %2276 = vmatprep.subr.mxu0 0.0
    %2277 = vmatpush1.msra.mxu0 0.0
    %2278 = vmatprep.subr.mxu0 0.0
    %2279 = vmatpush1.msra.mxu0 0.0
    %2280 = vmatprep.subr.mxu0 0.0
    %2281 = vmatpush1.msra.mxu0 0.0
    %2282 = vmatprep.subr.mxu0 0.0
    %2283 = vmatpush1.msra.mxu0 0.0
    %2284 = vmatprep.subr.mxu0 0.0
    %2285 = vmatpush1.msra.mxu0 0.0
    %2286 = vmatprep.subr.mxu0 0.0
    %2287 = vmatpush1.msra.mxu0 0.0
    %2288 = vmatprep.subr.mxu0 0.0
    %2289 = vmatpush1.msra.mxu0 0.0
    %2290 = vmatprep.subr.mxu0 0.0
    %2291 = vmatpush1.msra.mxu0 0.0
    %2292 = vmatprep.subr.mxu0 0.0
    %2293 = vmatpush1.msra.mxu0 0.0
    %2294 = vmatprep.subr.mxu0 0.0
    %2295 = vmatpush1.msra.mxu0 0.0
    %2296 = vmatprep.subr.mxu0 0.0
    %2297 = vmatpush1.msra.mxu0 0.0
    %2298 = vmatprep.subr.mxu0 0.0
    %2299 = vmatpush1.msra.mxu0 0.0
    %2300 = vmatprep.subr.mxu0 0.0
    %2301 = vmatpush1.msra.mxu0 0.0
    %2302 = vmatprep.subr.mxu0 0.0
    %2303 = vmatpush1.msra.mxu0 0.0
    %2304 = vmatprep.subr.mxu0 0.0
    %2305 = vmatpush1.msra.mxu0 0.0
    %2306 = vmatprep.subr.mxu0 0.0
    %2307 = vmatpush1.msra.mxu0 0.0
    %2308 = vmatprep.subr.mxu0 0.0
    %2309 = vmatpush1.msra.mxu0 0.0
    %2310 = vmatprep.subr.mxu0 0.0
    %2311 = vmatpush1.msra.mxu0 0.0
    %2312 = vmatprep.subr.mxu0 0.0
    %2313 = vmatpush1.msra.mxu0 0.0
    %2314 = vmatprep.subr.mxu0 0.0
    %2315 = vmatpush1.msra.mxu0 0.0
    %2316 = vmatprep.subr.mxu0 0.0
    %2317 = vmatpush1.msra.mxu0 0.0
    %2318 = vmatprep.subr.mxu0 0.0
    %2319 = vmatpush1.msra.mxu0 0.0
    %2320 = vmatprep.subr.mxu0 0.0
    %2321 = vmatpush1.msra.mxu0 0.0
    %2322 = vmatprep.subr.mxu0 0.0
    %2323 = vmatpush1.msra.mxu0 0.0
    %2324 = vmatprep.subr.mxu0 0.0
    %2325 = vmatpush1.msra.mxu0 0.0
    %2326 = vmatprep.subr.mxu0 0.0
    %2327 = vmatpush1.msra.mxu0 0.0
    %2328 = vmatprep.subr.mxu0 0.0
    %2329 = vmatpush1.msra.mxu0 0.0
    %2330 = vmatprep.mubr.f32.mxu0 0.0
    %2331 = vmatmul.mubr.f32.gmra.mrb[0].mxu0 %v2264
    %v2332 = vpop.f32.mrb[0].mxu0
    %v2333 = vadd.f32 0.0, %v2332
    %v2334 = vpop.f32.mrb[0].mxu0
    %2335 = vdwg.mxu0
    %s2336 = sld [smem:[#allocation6 + $0x1]]
    %v2337 = vstv %s2336
    %2338 = vmatprep.subr.mxu0 0.0
    %2339 = vmatpush1.xpose.msra.mxu0 %v2243
    %2340 = vmatprep.subr.mxu0 0.0
    %2341 = vmatpush1.xpose.msra.mxu0 %v2244
    %2342 = vmatprep.subr.mxu0 0.0
    %2343 = vmatpush1.xpose.msra.mxu0 %v2245
    %2344 = vmatprep.subr.mxu0 0.0
    %2345 = vmatpush1.xpose.msra.mxu0 %v2246
    %2346 = vmatprep.subr.mxu0 0.0
    %2347 = vmatpush1.xpose.msra.mxu0 0.0
    %2348 = vmatprep.subr.mxu0 0.0
    %2349 = vmatpush1.xpose.msra.mxu0 0.0
    %2350 = vmatprep.subr.mxu0 0.0
    %2351 = vmatpush1.xpose.msra.mxu0 0.0
    %2352 = vmatprep.subr.mxu0 0.0
    %2353 = vmatpush1.xpose.msra.mxu0 0.0
    %2354 = vmatprep.subr.mxu0 0.0
    %2355 = vmatpush1.xpose.msra.mxu0 0.0
    %2356 = vmatprep.subr.mxu0 0.0
    %2357 = vmatpush1.xpose.msra.mxu0 0.0
    %2358 = vmatprep.subr.mxu0 0.0
    %2359 = vmatpush1.xpose.msra.mxu0 0.0
    %2360 = vmatprep.subr.mxu0 0.0
    %2361 = vmatpush1.xpose.msra.mxu0 0.0
    %2362 = vmatprep.subr.mxu0 0.0
    %2363 = vmatpush1.xpose.msra.mxu0 0.0
    %2364 = vmatprep.subr.mxu0 0.0
    %2365 = vmatpush1.xpose.msra.mxu0 0.0
    %2366 = vmatprep.subr.mxu0 0.0
    %2367 = vmatpush1.xpose.msra.mxu0 0.0
    %2368 = vmatprep.subr.mxu0 0.0
    %2369 = vmatpush1.xpose.msra.mxu0 0.0
    %2370 = vmatprep.subr.mxu0 0.0
    %2371 = vmatpush1.xpose.msra.mxu0 0.0
    %2372 = vmatprep.subr.mxu0 0.0
    %2373 = vmatpush1.xpose.msra.mxu0 0.0
    %2374 = vmatprep.subr.mxu0 0.0
    %2375 = vmatpush1.xpose.msra.mxu0 0.0
    %2376 = vmatprep.subr.mxu0 0.0
    %2377 = vmatpush1.xpose.msra.mxu0 0.0
    %2378 = vmatprep.subr.mxu0 0.0
    %2379 = vmatpush1.xpose.msra.mxu0 0.0
    %2380 = vmatprep.subr.mxu0 0.0
    %2381 = vmatpush1.xpose.msra.mxu0 0.0
    %2382 = vmatprep.subr.mxu0 0.0
    %2383 = vmatpush1.xpose.msra.mxu0 0.0
    %2384 = vmatprep.subr.mxu0 0.0
    %2385 = vmatpush1.xpose.msra.mxu0 0.0
    %2386 = vmatprep.subr.mxu0 0.0
    %2387 = vmatpush1.xpose.msra.mxu0 0.0
    %2388 = vmatprep.subr.mxu0 0.0
    %2389 = vmatpush1.xpose.msra.mxu0 0.0
    %2390 = vmatprep.subr.mxu0 0.0
    %2391 = vmatpush1.xpose.msra.mxu0 0.0
    %2392 = vmatprep.subr.mxu0 0.0
    %2393 = vmatpush1.xpose.msra.mxu0 0.0
    %2394 = vmatprep.subr.mxu0 0.0
    %2395 = vmatpush1.xpose.msra.mxu0 0.0
    %2396 = vmatprep.subr.mxu0 0.0
    %2397 = vmatpush1.xpose.msra.mxu0 0.0
    %2398 = vmatprep.subr.mxu0 0.0
    %2399 = vmatpush1.xpose.msra.mxu0 0.0
    %2400 = vmatprep.subr.mxu0 0.0
    %2401 = vmatpush1.xpose.msra.mxu0 0.0
    %2402 = vmatprep.mubr.f32.mxu0 0.0
    %2403 = vmatmul.mubr.f32.gmra.mrb[0].mxu0 %v2333
    %v2404 = vpop.f32.mrb[0].mxu0
    %v2405 = vadd.f32 %v2337, %v2404
    %v2406 = vpop.f32.mrb[0].mxu0
    %2407 = vdwg.mxu0
    %v2408 = vmax.f32 %v2405, 0.0
    %v2410 = vsel %vm721, %v2247, 0
    %v2413 = vsel %vm721, %v2248, 0
    %v2416 = vsel %vm721, %v2249, 0
    %v2419 = vsel %vm721, %v2250, 0
    %2421 = vmatprep.subr.mxu0 0.0
    %2422 = vmatpush1.msra.mxu0 %v2408
    %2423 = vmatprep.subr.mxu0 0.0
    %2424 = vmatpush1.msra.mxu0 0.0
    %2425 = vmatprep.subr.mxu0 0.0
    %2426 = vmatpush1.msra.mxu0 0.0
    %2427 = vmatprep.subr.mxu0 0.0
    %2428 = vmatpush1.msra.mxu0 0.0
    %2429 = vmatprep.subr.mxu0 0.0
    %2430 = vmatpush1.msra.mxu0 0.0
    %2431 = vmatprep.subr.mxu0 0.0
    %2432 = vmatpush1.msra.mxu0 0.0
    %2433 = vmatprep.subr.mxu0 0.0
    %2434 = vmatpush1.msra.mxu0 0.0
    %2435 = vmatprep.subr.mxu0 0.0
    %2436 = vmatpush1.msra.mxu0 0.0
    %2437 = vmatprep.subr.mxu0 0.0
    %2438 = vmatpush1.msra.mxu0 0.0
    %2439 = vmatprep.subr.mxu0 0.0
    %2440 = vmatpush1.msra.mxu0 0.0
    %2441 = vmatprep.subr.mxu0 0.0
    %2442 = vmatpush1.msra.mxu0 0.0
    %2443 = vmatprep.subr.mxu0 0.0
    %2444 = vmatpush1.msra.mxu0 0.0
    %2445 = vmatprep.subr.mxu0 0.0
    %2446 = vmatpush1.msra.mxu0 0.0
    %2447 = vmatprep.subr.mxu0 0.0
    %2448 = vmatpush1.msra.mxu0 0.0
    %2449 = vmatprep.subr.mxu0 0.0
    %2450 = vmatpush1.msra.mxu0 0.0
    %2451 = vmatprep.subr.mxu0 0.0
    %2452 = vmatpush1.msra.mxu0 0.0
    %2453 = vmatprep.subr.mxu0 0.0
    %2454 = vmatpush1.msra.mxu0 0.0
    %2455 = vmatprep.subr.mxu0 0.0
    %2456 = vmatpush1.msra.mxu0 0.0
    %2457 = vmatprep.subr.mxu0 0.0
    %2458 = vmatpush1.msra.mxu0 0.0
    %2459 = vmatprep.subr.mxu0 0.0
    %2460 = vmatpush1.msra.mxu0 0.0
    %2461 = vmatprep.subr.mxu0 0.0
    %2462 = vmatpush1.msra.mxu0 0.0
    %2463 = vmatprep.subr.mxu0 0.0
    %2464 = vmatpush1.msra.mxu0 0.0
    %2465 = vmatprep.subr.mxu0 0.0
    %2466 = vmatpush1.msra.mxu0 0.0
    %2467 = vmatprep.subr.mxu0 0.0
    %2468 = vmatpush1.msra.mxu0 0.0
    %2469 = vmatprep.subr.mxu0 0.0
    %2470 = vmatpush1.msra.mxu0 0.0
    %2471 = vmatprep.subr.mxu0 0.0
    %2472 = vmatpush1.msra.mxu0 0.0
    %2473 = vmatprep.subr.mxu0 0.0
    %2474 = vmatpush1.msra.mxu0 0.0
    %2475 = vmatprep.subr.mxu0 0.0
    %2476 = vmatpush1.msra.mxu0 0.0
    %2477 = vmatprep.subr.mxu0 0.0
    %2478 = vmatpush1.msra.mxu0 0.0
    %2479 = vmatprep.subr.mxu0 0.0
    %2480 = vmatpush1.msra.mxu0 0.0
    %2481 = vmatprep.subr.mxu0 0.0
    %2482 = vmatpush1.msra.mxu0 0.0
    %2483 = vmatprep.subr.mxu0 0.0
    %2484 = vmatpush1.msra.mxu0 0.0
    %2485 = vmatprep.mubr.f32.mxu0 0.0
    %2486 = vmatmul.mubr.f32.gmra.mrb[0].mxu0 %v2410
    %v2487 = vpop.f32.mrb[0].mxu0
    %v2488 = vadd.f32 0.0, %v2487
    %v2489 = vpop.f32.mrb[0].mxu0
    %2490 = vmatprep.mubr.f32.mxu0 0.0
    %2491 = vmatmul.mubr.f32.gmra.mrb[0].mxu0 %v2413
    %v2492 = vpop.f32.mrb[0].mxu0
    %v2493 = vadd.f32 0.0, %v2492
    %v2494 = vpop.f32.mrb[0].mxu0
    %2495 = vmatprep.mubr.f32.mxu0 0.0
    %2496 = vmatmul.mubr.f32.gmra.mrb[0].mxu0 %v2416
    %v2497 = vpop.f32.mrb[0].mxu0
    %v2498 = vadd.f32 0.0, %v2497
    %v2499 = vpop.f32.mrb[0].mxu0
    %2500 = vmatprep.mubr.f32.mxu0 0.0
    %2501 = vmatmul.mubr.f32.gmra.mrb[0].mxu0 %v2419
    %v2502 = vpop.f32.mrb[0].mxu0
    %v2503 = vadd.f32 0.0, %v2502
    %v2504 = vpop.f32.mrb[0].mxu0
    %2505 = vdwg.mxu0
    %v2507 = vsel %vm134, %v2488, 0
    %v2510 = vsel %vm134, %v2493, 0
    %v2513 = vsel %vm134, %v2498, 0
    %v2516 = vsel %vm134, %v2503, 0
    %v2518 = vsel %vm134, %v2247, 0
    %v2520 = vsel %vm134, %v2248, 0
    %v2522 = vsel %vm134, %v2249, 0
    %v2524 = vsel %vm134, %v2250, 0
    %v2527 = vsel %vm134, %v2251, 0
    %v2530 = vsel %vm134, %v2252, 0
    %v2533 = vsel %vm134, %v2253, 0
    %v2536 = vsel %vm134, %v2254, 0
    %v2539 = vsel %vm134, %v2255, 0
    %v2542 = vsel %vm134, %v2256, 0
    %v2545 = vsel %vm134, %v2257, 0
    %v2548 = vsel %vm134, %v2258, 0
    %v2551 = vsel %vm134, %v2259, 0
    %v2554 = vsel %vm134, %v2260, 0
    %v2557 = vsel %vm134, %v2261, 0
    %v2560 = vsel %vm134, %v2262, 0
    %2562 = vmatprep.subr.mxu0 0.0
    %2563 = vmatpush1.xpose.msra.mxu0 %v2518
    %2564 = vmatprep.subr.mxu0 0.0
    %2565 = vmatpush1.xpose.msra.mxu0 %v2520
    %2566 = vmatprep.subr.mxu0 0.0
    %2567 = vmatpush1.xpose.msra.mxu0 %v2522
    %2568 = vmatprep.subr.mxu0 0.0
    %2569 = vmatpush1.xpose.msra.mxu0 %v2524
    %2570 = vmatprep.subr.mxu0 0.0
    %2571 = vmatpush1.xpose.msra.mxu0 %v2527
    %2572 = vmatprep.subr.mxu0 0.0
    %2573 = vmatpush1.xpose.msra.mxu0 %v2530
    %2574 = vmatprep.subr.mxu0 0.0
    %2575 = vmatpush1.xpose.msra.mxu0 %v2533
    %2576 = vmatprep.subr.mxu0 0.0
    %2577 = vmatpush1.xpose.msra.mxu0 %v2536
    %2578 = vmatprep.subr.mxu0 0.0
    %2579 = vmatpush1.xpose.msra.mxu0 %v2539
    %2580 = vmatprep.subr.mxu0 0.0
    %2581 = vmatpush1.xpose.msra.mxu0 %v2542
    %2582 = vmatprep.subr.mxu0 0.0
    %2583 = vmatpush1.xpose.msra.mxu0 %v2545
    %2584 = vmatprep.subr.mxu0 0.0
    %2585 = vmatpush1.xpose.msra.mxu0 %v2548
    %2586 = vmatprep.subr.mxu0 0.0
    %2587 = vmatpush1.xpose.msra.mxu0 %v2551
    %2588 = vmatprep.subr.mxu0 0.0
    %2589 = vmatpush1.xpose.msra.mxu0 %v2554
    %2590 = vmatprep.subr.mxu0 0.0
    %2591 = vmatpush1.xpose.msra.mxu0 %v2557
    %2592 = vmatprep.subr.mxu0 0.0
    %2593 = vmatpush1.xpose.msra.mxu0 %v2560
    %2594 = vmatprep.subr.mxu0 0.0
    %2595 = vmatpush1.xpose.msra.mxu0 0.0
    %2596 = vmatprep.subr.mxu0 0.0
    %2597 = vmatpush1.xpose.msra.mxu0 0.0
    %2598 = vmatprep.subr.mxu0 0.0
    %2599 = vmatpush1.xpose.msra.mxu0 0.0
    %2600 = vmatprep.subr.mxu0 0.0
    %2601 = vmatpush1.xpose.msra.mxu0 0.0
    %2602 = vmatprep.subr.mxu0 0.0
    %2603 = vmatpush1.xpose.msra.mxu0 0.0
    %2604 = vmatprep.subr.mxu0 0.0
    %2605 = vmatpush1.xpose.msra.mxu0 0.0
    %2606 = vmatprep.subr.mxu0 0.0
    %2607 = vmatpush1.xpose.msra.mxu0 0.0
    %2608 = vmatprep.subr.mxu0 0.0
    %2609 = vmatpush1.xpose.msra.mxu0 0.0
    %2610 = vmatprep.subr.mxu0 0.0
    %2611 = vmatpush1.xpose.msra.mxu0 0.0
    %2612 = vmatprep.subr.mxu0 0.0
    %2613 = vmatpush1.xpose.msra.mxu0 0.0
    %2614 = vmatprep.subr.mxu0 0.0
    %2615 = vmatpush1.xpose.msra.mxu0 0.0
    %2616 = vmatprep.subr.mxu0 0.0
    %2617 = vmatpush1.xpose.msra.mxu0 0.0
    %2618 = vmatprep.subr.mxu0 0.0
    %2619 = vmatpush1.xpose.msra.mxu0 0.0
    %2620 = vmatprep.subr.mxu0 0.0
    %2621 = vmatpush1.xpose.msra.mxu0 0.0
    %2622 = vmatprep.subr.mxu0 0.0
    %2623 = vmatpush1.xpose.msra.mxu0 0.0
    %2624 = vmatprep.subr.mxu0 0.0
    %2625 = vmatpush1.xpose.msra.mxu0 0.0
    %2626 = vmatprep.mubr.f32.mxu0 0.0
    %2627 = vmatmul.mubr.f32.gmra.mrb[0].mxu0 %v2507
    %v2628 = vpop.f32.mrb[0].mxu0
    %v2629 = vadd.f32 0.0, %v2628
    %v2630 = vpop.f32.mrb[0].mxu0
    %2631 = vmatprep.mubr.f32.mxu0 0.0
    %2632 = vmatmul.mubr.f32.gmra.mrb[0].mxu0 %v2510
    %v2633 = vpop.f32.mrb[0].mxu0
    %v2634 = vadd.f32 0.0, %v2633
    %v2635 = vpop.f32.mrb[0].mxu0
    %2636 = vmatprep.mubr.f32.mxu0 0.0
    %2637 = vmatmul.mubr.f32.gmra.mrb[0].mxu0 %v2513
    %v2638 = vpop.f32.mrb[0].mxu0
    %v2639 = vadd.f32 0.0, %v2638
    %v2640 = vpop.f32.mrb[0].mxu0
    %2641 = vmatprep.mubr.f32.mxu0 0.0
    %2642 = vmatmul.mubr.f32.gmra.mrb[0].mxu0 %v2516
    %v2643 = vpop.f32.mrb[0].mxu0
    %v2644 = vadd.f32 0.0, %v2643
    %v2645 = vpop.f32.mrb[0].mxu0
    %2646 = vdwg.mxu0
    %2647 = vst [vmem:[#allocation2 + $0x80] sm:$0xff] %v2629
    %2648 = vst [vmem:[#allocation2 + $0x88] sm:$0xff] %v2634
    %2649 = vst [vmem:[#allocation2 + $0x90] sm:$0xff] %v2639
    %2650 = vst [vmem:[#allocation2 + $0x98] sm:$0xff] %v2644
    %s2651 = sld [smem:[#allocation3 + $0x100]]
    %v2652 = vstv %s2651
    %v2653 = vmul.f32 %v2652, %v1756
    %v2654 = vmul.f32 %v2652, %v1757
    %v2655 = vmul.f32 %v2652, %v1758
    %v2656 = vmul.f32 %v2652, %v1759
    %s2657 = sld [smem:[#allocation3 + $0x101]]
    %v2658 = vstv %s2657
    %v2659 = vmul.f32 %v2658, %v1761
    %v2660 = vmul.f32 %v2658, %v1762
    %v2661 = vmul.f32 %v2658, %v1763
    %v2662 = vmul.f32 %v2658, %v1764
    %v2663 = vadd.f32 %v2653, %v2659
    %v2664 = vadd.f32 %v2654, %v2660
    %v2665 = vadd.f32 %v2655, %v2661
    %v2666 = vadd.f32 %v2656, %v2662
    %s2667 = sld [smem:[#allocation3 + $0x102]]
    %v2668 = vstv %s2667
    %v2669 = vmul.f32 %v2668, %v1766
    %v2670 = vmul.f32 %v2668, %v1767
    %v2671 = vmul.f32 %v2668, %v1768
    %v2672 = vmul.f32 %v2668, %v1769
    %v2673 = vadd.f32 %v2663, %v2669
    %v2674 = vadd.f32 %v2664, %v2670
    %v2675 = vadd.f32 %v2665, %v2671
    %v2676 = vadd.f32 %v2666, %v2672
    %v2677 = vld [vmem:[%s3] sm:$0xff]
    %v2678 = vld [vmem:[%s3 + $0x8] sm:$0xff]
    %v2679 = vld [vmem:[%s3 + $0x10] sm:$0xff]
    %v2680 = vld [vmem:[%s3 + $0x18] sm:$0xff]
    %v2681 = vld [vmem:[%s3 + $0x20] sm:$0xff]
    %v2682 = vld [vmem:[%s3 + $0x28] sm:$0xff]
    %v2683 = vld [vmem:[%s3 + $0x30] sm:$0xff]
    %v2684 = vld [vmem:[%s3 + $0x38] sm:$0xff]
    %v2685 = vld [vmem:[%s6] sm:$0xff]
    %v2686 = vld [vmem:[%s6 + $0x8] sm:$0xff]
    %v2687 = vld [vmem:[%s6 + $0x10] sm:$0xff]
    %v2688 = vld [vmem:[%s6 + $0x18] sm:$0xff]
    %v2689 = vld [vmem:[%s6 + $0x20] sm:$0xff]
    %v2690 = vld [vmem:[%s6 + $0x28] sm:$0xff]
    %v2691 = vld [vmem:[%s6 + $0x30] sm:$0xff]
    %v2692 = vld [vmem:[%s6 + $0x38] sm:$0xff]
    %v2693 = vld [vmem:[%s6 + $0x40] sm:$0xff]
    %v2694 = vld [vmem:[%s6 + $0x48] sm:$0xff]
    %v2695 = vld [vmem:[%s6 + $0x50] sm:$0xff]
    %v2696 = vld [vmem:[%s6 + $0x58] sm:$0xff]
    %v2697 = vld [vmem:[%s6 + $0x60] sm:$0xff]
    %v2698 = vld [vmem:[%s6 + $0x68] sm:$0xff]
    %v2699 = vld [vmem:[%s6 + $0x70] sm:$0xff]
    %v2700 = vld [vmem:[%s6 + $0x78] sm:$0xff]
    %v2702 = vsel %vm134, %v2677, 0
    %v2705 = vsel %vm134, %v2678, 0
    %2707 = vmatprep.subr.mxu0 0.0
    %2708 = vmatpush1.msra.mxu0 %v2673
    %2709 = vmatprep.subr.mxu0 0.0
    %2710 = vmatpush1.msra.mxu0 %v2674
    %2711 = vmatprep.subr.mxu0 0.0
    %2712 = vmatpush1.msra.mxu0 %v2675
    %2713 = vmatprep.subr.mxu0 0.0
    %2714 = vmatpush1.msra.mxu0 %v2676
    %2715 = vmatprep.subr.mxu0 0.0
    %2716 = vmatpush1.msra.mxu0 0.0
    %2717 = vmatprep.subr.mxu0 0.0
    %2718 = vmatpush1.msra.mxu0 0.0
    %2719 = vmatprep.subr.mxu0 0.0
    %2720 = vmatpush1.msra.mxu0 0.0
    %2721 = vmatprep.subr.mxu0 0.0
    %2722 = vmatpush1.msra.mxu0 0.0
    %2723 = vmatprep.subr.mxu0 0.0
    %2724 = vmatpush1.msra.mxu0 0.0
    %2725 = vmatprep.subr.mxu0 0.0
    %2726 = vmatpush1.msra.mxu0 0.0
    %2727 = vmatprep.subr.mxu0 0.0
    %2728 = vmatpush1.msra.mxu0 0.0
    %2729 = vmatprep.subr.mxu0 0.0
    %2730 = vmatpush1.msra.mxu0 0.0
    %2731 = vmatprep.subr.mxu0 0.0
    %2732 = vmatpush1.msra.mxu0 0.0
    %2733 = vmatprep.subr.mxu0 0.0
    %2734 = vmatpush1.msra.mxu0 0.0
    %2735 = vmatprep.subr.mxu0 0.0
    %2736 = vmatpush1.msra.mxu0 0.0
    %2737 = vmatprep.subr.mxu0 0.0
    %2738 = vmatpush1.msra.mxu0 0.0
    %2739 = vmatprep.subr.mxu0 0.0
    %2740 = vmatpush1.msra.mxu0 0.0
    %2741 = vmatprep.subr.mxu0 0.0
    %2742 = vmatpush1.msra.mxu0 0.0
    %2743 = vmatprep.subr.mxu0 0.0
    %2744 = vmatpush1.msra.mxu0 0.0
    %2745 = vmatprep.subr.mxu0 0.0
    %2746 = vmatpush1.msra.mxu0 0.0
    %2747 = vmatprep.subr.mxu0 0.0
    %2748 = vmatpush1.msra.mxu0 0.0
    %2749 = vmatprep.subr.mxu0 0.0
    %2750 = vmatpush1.msra.mxu0 0.0
    %2751 = vmatprep.subr.mxu0 0.0
    %2752 = vmatpush1.msra.mxu0 0.0
    %2753 = vmatprep.subr.mxu0 0.0
    %2754 = vmatpush1.msra.mxu0 0.0
    %2755 = vmatprep.subr.mxu0 0.0
    %2756 = vmatpush1.msra.mxu0 0.0
    %2757 = vmatprep.subr.mxu0 0.0
    %2758 = vmatpush1.msra.mxu0 0.0
    %2759 = vmatprep.subr.mxu0 0.0
    %2760 = vmatpush1.msra.mxu0 0.0
    %2761 = vmatprep.subr.mxu0 0.0
    %2762 = vmatpush1.msra.mxu0 0.0
    %2763 = vmatprep.subr.mxu0 0.0
    %2764 = vmatpush1.msra.mxu0 0.0
    %2765 = vmatprep.subr.mxu0 0.0
    %2766 = vmatpush1.msra.mxu0 0.0
    %2767 = vmatprep.subr.mxu0 0.0
    %2768 = vmatpush1.msra.mxu0 0.0
    %2769 = vmatprep.subr.mxu0 0.0
    %2770 = vmatpush1.msra.mxu0 0.0
    %2771 = vmatprep.mubr.f32.mxu0 0.0
    %2772 = vmatmul.mubr.f32.gmra.mrb[0].mxu0 %v2702
    %v2773 = vpop.f32.mrb[0].mxu0
    %v2774 = vadd.f32 0.0, %v2773
    %v2775 = vpop.f32.mrb[0].mxu0
    %2776 = vmatprep.mubr.f32.mxu0 0.0
    %2777 = vmatmul.mubr.f32.gmra.mrb[0].mxu0 %v2705
    %v2778 = vpop.f32.mrb[0].mxu0
    %v2779 = vadd.f32 0.0, %v2778
    %v2780 = vpop.f32.mrb[0].mxu0
    %2781 = vdwg.mxu0
    %s2782 = sld [smem:[#allocation6 + $0x2]]
    %v2783 = vstv %s2782
    %2784 = vmatprep.subr.mxu0 0.0
    %2785 = vmatpush1.xpose.msra.mxu0 %v2677
    %2786 = vmatprep.subr.mxu0 0.0
    %2787 = vmatpush1.xpose.msra.mxu0 %v2678
    %2788 = vmatprep.subr.mxu0 0.0
    %2789 = vmatpush1.xpose.msra.mxu0 %v2679
    %2790 = vmatprep.subr.mxu0 0.0
    %2791 = vmatpush1.xpose.msra.mxu0 %v2680
    %2792 = vmatprep.subr.mxu0 0.0
    %2793 = vmatpush1.xpose.msra.mxu0 %v2681
    %2794 = vmatprep.subr.mxu0 0.0
    %2795 = vmatpush1.xpose.msra.mxu0 %v2682
    %2796 = vmatprep.subr.mxu0 0.0
    %2797 = vmatpush1.xpose.msra.mxu0 %v2683
    %2798 = vmatprep.subr.mxu0 0.0
    %2799 = vmatpush1.xpose.msra.mxu0 %v2684
    %2800 = vmatprep.subr.mxu0 0.0
    %2801 = vmatpush1.xpose.msra.mxu0 0.0
    %2802 = vmatprep.subr.mxu0 0.0
    %2803 = vmatpush1.xpose.msra.mxu0 0.0
    %2804 = vmatprep.subr.mxu0 0.0
    %2805 = vmatpush1.xpose.msra.mxu0 0.0
    %2806 = vmatprep.subr.mxu0 0.0
    %2807 = vmatpush1.xpose.msra.mxu0 0.0
    %2808 = vmatprep.subr.mxu0 0.0
    %2809 = vmatpush1.xpose.msra.mxu0 0.0
    %2810 = vmatprep.subr.mxu0 0.0
    %2811 = vmatpush1.xpose.msra.mxu0 0.0
    %2812 = vmatprep.subr.mxu0 0.0
    %2813 = vmatpush1.xpose.msra.mxu0 0.0
    %2814 = vmatprep.subr.mxu0 0.0
    %2815 = vmatpush1.xpose.msra.mxu0 0.0
    %2816 = vmatprep.subr.mxu0 0.0
    %2817 = vmatpush1.xpose.msra.mxu0 0.0
    %2818 = vmatprep.subr.mxu0 0.0
    %2819 = vmatpush1.xpose.msra.mxu0 0.0
    %2820 = vmatprep.subr.mxu0 0.0
    %2821 = vmatpush1.xpose.msra.mxu0 0.0
    %2822 = vmatprep.subr.mxu0 0.0
    %2823 = vmatpush1.xpose.msra.mxu0 0.0
    %2824 = vmatprep.subr.mxu0 0.0
    %2825 = vmatpush1.xpose.msra.mxu0 0.0
    %2826 = vmatprep.subr.mxu0 0.0
    %2827 = vmatpush1.xpose.msra.mxu0 0.0
    %2828 = vmatprep.subr.mxu0 0.0
    %2829 = vmatpush1.xpose.msra.mxu0 0.0
    %2830 = vmatprep.subr.mxu0 0.0
    %2831 = vmatpush1.xpose.msra.mxu0 0.0
    %2832 = vmatprep.subr.mxu0 0.0
    %2833 = vmatpush1.xpose.msra.mxu0 0.0
    %2834 = vmatprep.subr.mxu0 0.0
    %2835 = vmatpush1.xpose.msra.mxu0 0.0
    %2836 = vmatprep.subr.mxu0 0.0
    %2837 = vmatpush1.xpose.msra.mxu0 0.0
    %2838 = vmatprep.subr.mxu0 0.0
    %2839 = vmatpush1.xpose.msra.mxu0 0.0
    %2840 = vmatprep.subr.mxu0 0.0
    %2841 = vmatpush1.xpose.msra.mxu0 0.0
    %2842 = vmatprep.subr.mxu0 0.0
    %2843 = vmatpush1.xpose.msra.mxu0 0.0
    %2844 = vmatprep.subr.mxu0 0.0
    %2845 = vmatpush1.xpose.msra.mxu0 0.0
    %2846 = vmatprep.subr.mxu0 0.0
    %2847 = vmatpush1.xpose.msra.mxu0 0.0
    %2848 = vmatprep.mubr.f32.mxu0 0.0
    %2849 = vmatmul.mubr.f32.gmra.mrb[0].mxu0 %v2774
    %v2850 = vpop.f32.mrb[0].mxu0
    %v2851 = vadd.f32 %v2783, %v2850
    %v2852 = vpop.f32.mrb[0].mxu0
    %2853 = vmatprep.mubr.f32.mxu0 0.0
    %2854 = vmatmul.mubr.f32.gmra.mrb[0].mxu0 %v2779
    %v2855 = vpop.f32.mrb[0].mxu0
    %v2856 = vadd.f32 %v2783, %v2855
    %v2857 = vpop.f32.mrb[0].mxu0
    %2858 = vdwg.mxu0
    %v2859 = vmax.f32 %v2851, 0.0
    %v2860 = vmax.f32 %v2856, 0.0
    %v2862 = vsel %vm383, %v2685, 0
    %v2865 = vsel %vm383, %v2686, 0
    %v2868 = vsel %vm383, %v2687, 0
    %v2871 = vsel %vm383, %v2688, 0
    %2873 = vmatprep.subr.mxu0 0.0
    %2874 = vmatpush1.msra.mxu0 %v2859
    %2875 = vmatprep.subr.mxu0 0.0
    %2876 = vmatpush1.msra.mxu0 %v2860
    %2877 = vmatprep.subr.mxu0 0.0
    %2878 = vmatpush1.msra.mxu0 0.0
    %2879 = vmatprep.subr.mxu0 0.0
    %2880 = vmatpush1.msra.mxu0 0.0
    %2881 = vmatprep.subr.mxu0 0.0
    %2882 = vmatpush1.msra.mxu0 0.0
    %2883 = vmatprep.subr.mxu0 0.0
    %2884 = vmatpush1.msra.mxu0 0.0
    %2885 = vmatprep.subr.mxu0 0.0
    %2886 = vmatpush1.msra.mxu0 0.0
    %2887 = vmatprep.subr.mxu0 0.0
    %2888 = vmatpush1.msra.mxu0 0.0
    %2889 = vmatprep.subr.mxu0 0.0
    %2890 = vmatpush1.msra.mxu0 0.0
    %2891 = vmatprep.subr.mxu0 0.0
    %2892 = vmatpush1.msra.mxu0 0.0
    %2893 = vmatprep.subr.mxu0 0.0
    %2894 = vmatpush1.msra.mxu0 0.0
    %2895 = vmatprep.subr.mxu0 0.0
    %2896 = vmatpush1.msra.mxu0 0.0
    %2897 = vmatprep.subr.mxu0 0.0
    %2898 = vmatpush1.msra.mxu0 0.0
    %2899 = vmatprep.subr.mxu0 0.0
    %2900 = vmatpush1.msra.mxu0 0.0
    %2901 = vmatprep.subr.mxu0 0.0
    %2902 = vmatpush1.msra.mxu0 0.0
    %2903 = vmatprep.subr.mxu0 0.0
    %2904 = vmatpush1.msra.mxu0 0.0
    %2905 = vmatprep.subr.mxu0 0.0
    %2906 = vmatpush1.msra.mxu0 0.0
    %2907 = vmatprep.subr.mxu0 0.0
    %2908 = vmatpush1.msra.mxu0 0.0
    %2909 = vmatprep.subr.mxu0 0.0
    %2910 = vmatpush1.msra.mxu0 0.0
    %2911 = vmatprep.subr.mxu0 0.0
    %2912 = vmatpush1.msra.mxu0 0.0
    %2913 = vmatprep.subr.mxu0 0.0
    %2914 = vmatpush1.msra.mxu0 0.0
    %2915 = vmatprep.subr.mxu0 0.0
    %2916 = vmatpush1.msra.mxu0 0.0
    %2917 = vmatprep.subr.mxu0 0.0
    %2918 = vmatpush1.msra.mxu0 0.0
    %2919 = vmatprep.subr.mxu0 0.0
    %2920 = vmatpush1.msra.mxu0 0.0
    %2921 = vmatprep.subr.mxu0 0.0
    %2922 = vmatpush1.msra.mxu0 0.0
    %2923 = vmatprep.subr.mxu0 0.0
    %2924 = vmatpush1.msra.mxu0 0.0
    %2925 = vmatprep.subr.mxu0 0.0
    %2926 = vmatpush1.msra.mxu0 0.0
    %2927 = vmatprep.subr.mxu0 0.0
    %2928 = vmatpush1.msra.mxu0 0.0
    %2929 = vmatprep.subr.mxu0 0.0
    %2930 = vmatpush1.msra.mxu0 0.0
    %2931 = vmatprep.subr.mxu0 0.0
    %2932 = vmatpush1.msra.mxu0 0.0
    %2933 = vmatprep.subr.mxu0 0.0
    %2934 = vmatpush1.msra.mxu0 0.0
    %2935 = vmatprep.subr.mxu0 0.0
    %2936 = vmatpush1.msra.mxu0 0.0
    %2937 = vmatprep.mubr.f32.mxu0 0.0
    %2938 = vmatmul.mubr.f32.gmra.mrb[0].mxu0 %v2862
    %v2939 = vpop.f32.mrb[0].mxu0
    %v2940 = vadd.f32 0.0, %v2939
    %v2941 = vpop.f32.mrb[0].mxu0
    %2942 = vmatprep.mubr.f32.mxu0 0.0
    %2943 = vmatmul.mubr.f32.gmra.mrb[0].mxu0 %v2865
    %v2944 = vpop.f32.mrb[0].mxu0
    %v2945 = vadd.f32 0.0, %v2944
    %v2946 = vpop.f32.mrb[0].mxu0
    %2947 = vmatprep.mubr.f32.mxu0 0.0
    %2948 = vmatmul.mubr.f32.gmra.mrb[0].mxu0 %v2868
    %v2949 = vpop.f32.mrb[0].mxu0
    %v2950 = vadd.f32 0.0, %v2949
    %v2951 = vpop.f32.mrb[0].mxu0
    %2952 = vmatprep.mubr.f32.mxu0 0.0
    %2953 = vmatmul.mubr.f32.gmra.mrb[0].mxu0 %v2871
    %v2954 = vpop.f32.mrb[0].mxu0
    %v2955 = vadd.f32 0.0, %v2954
    %v2956 = vpop.f32.mrb[0].mxu0
    %2957 = vdwg.mxu0
    %v2959 = vsel %vm1271, %v2940, 0
    %v2962 = vsel %vm1271, %v2945, 0
    %v2965 = vsel %vm1271, %v2950, 0
    %v2968 = vsel %vm1271, %v2955, 0
    %v2970 = vsel %vm1271, %v2685, 0
    %v2972 = vsel %vm1271, %v2686, 0
    %v2974 = vsel %vm1271, %v2687, 0
    %v2976 = vsel %vm1271, %v2688, 0
    %v2979 = vsel %vm1271, %v2689, 0
    %v2982 = vsel %vm1271, %v2690, 0
    %v2985 = vsel %vm1271, %v2691, 0
    %v2988 = vsel %vm1271, %v2692, 0
    %v2991 = vsel %vm1271, %v2693, 0
    %v2994 = vsel %vm1271, %v2694, 0
    %v2997 = vsel %vm1271, %v2695, 0
    %v3000 = vsel %vm1271, %v2696, 0
    %v3003 = vsel %vm1271, %v2697, 0
    %v3006 = vsel %vm1271, %v2698, 0
    %v3009 = vsel %vm1271, %v2699, 0
    %v3012 = vsel %vm1271, %v2700, 0
    %3014 = vmatprep.subr.mxu0 0.0
    %3015 = vmatpush1.xpose.msra.mxu0 %v2970
    %3016 = vmatprep.subr.mxu0 0.0
    %3017 = vmatpush1.xpose.msra.mxu0 %v2972
    %3018 = vmatprep.subr.mxu0 0.0
    %3019 = vmatpush1.xpose.msra.mxu0 %v2974
    %3020 = vmatprep.subr.mxu0 0.0
    %3021 = vmatpush1.xpose.msra.mxu0 %v2976
    %3022 = vmatprep.subr.mxu0 0.0
    %3023 = vmatpush1.xpose.msra.mxu0 %v2979
    %3024 = vmatprep.subr.mxu0 0.0
    %3025 = vmatpush1.xpose.msra.mxu0 %v2982
    %3026 = vmatprep.subr.mxu0 0.0
    %3027 = vmatpush1.xpose.msra.mxu0 %v2985
    %3028 = vmatprep.subr.mxu0 0.0
    %3029 = vmatpush1.xpose.msra.mxu0 %v2988
    %3030 = vmatprep.subr.mxu0 0.0
    %3031 = vmatpush1.xpose.msra.mxu0 %v2991
    %3032 = vmatprep.subr.mxu0 0.0
    %3033 = vmatpush1.xpose.msra.mxu0 %v2994
    %3034 = vmatprep.subr.mxu0 0.0
    %3035 = vmatpush1.xpose.msra.mxu0 %v2997
    %3036 = vmatprep.subr.mxu0 0.0
    %3037 = vmatpush1.xpose.msra.mxu0 %v3000
    %3038 = vmatprep.subr.mxu0 0.0
    %3039 = vmatpush1.xpose.msra.mxu0 %v3003
    %3040 = vmatprep.subr.mxu0 0.0
    %3041 = vmatpush1.xpose.msra.mxu0 %v3006
    %3042 = vmatprep.subr.mxu0 0.0
    %3043 = vmatpush1.xpose.msra.mxu0 %v3009
    %3044 = vmatprep.subr.mxu0 0.0
    %3045 = vmatpush1.xpose.msra.mxu0 %v3012
    %3046 = vmatprep.subr.mxu0 0.0
    %3047 = vmatpush1.xpose.msra.mxu0 0.0
    %3048 = vmatprep.subr.mxu0 0.0
    %3049 = vmatpush1.xpose.msra.mxu0 0.0
    %3050 = vmatprep.subr.mxu0 0.0
    %3051 = vmatpush1.xpose.msra.mxu0 0.0
    %3052 = vmatprep.subr.mxu0 0.0
    %3053 = vmatpush1.xpose.msra.mxu0 0.0
    %3054 = vmatprep.subr.mxu0 0.0
    %3055 = vmatpush1.xpose.msra.mxu0 0.0
    %3056 = vmatprep.subr.mxu0 0.0
    %3057 = vmatpush1.xpose.msra.mxu0 0.0
    %3058 = vmatprep.subr.mxu0 0.0
    %3059 = vmatpush1.xpose.msra.mxu0 0.0
    %3060 = vmatprep.subr.mxu0 0.0
    %3061 = vmatpush1.xpose.msra.mxu0 0.0
    %3062 = vmatprep.subr.mxu0 0.0
    %3063 = vmatpush1.xpose.msra.mxu0 0.0
    %3064 = vmatprep.subr.mxu0 0.0
    %3065 = vmatpush1.xpose.msra.mxu0 0.0
    %3066 = vmatprep.subr.mxu0 0.0
    %3067 = vmatpush1.xpose.msra.mxu0 0.0
    %3068 = vmatprep.subr.mxu0 0.0
    %3069 = vmatpush1.xpose.msra.mxu0 0.0
    %3070 = vmatprep.subr.mxu0 0.0
    %3071 = vmatpush1.xpose.msra.mxu0 0.0
    %3072 = vmatprep.subr.mxu0 0.0
    %3073 = vmatpush1.xpose.msra.mxu0 0.0
    %3074 = vmatprep.subr.mxu0 0.0
    %3075 = vmatpush1.xpose.msra.mxu0 0.0
    %3076 = vmatprep.subr.mxu0 0.0
    %3077 = vmatpush1.xpose.msra.mxu0 0.0
    %3078 = vmatprep.mubr.f32.mxu0 0.0
    %3079 = vmatmul.mubr.f32.gmra.mrb[0].mxu0 %v2959
    %v3080 = vpop.f32.mrb[0].mxu0
    %v3081 = vadd.f32 0.0, %v3080
    %v3082 = vpop.f32.mrb[0].mxu0
    %3083 = vmatprep.mubr.f32.mxu0 0.0
    %3084 = vmatmul.mubr.f32.gmra.mrb[0].mxu0 %v2962
    %v3085 = vpop.f32.mrb[0].mxu0
    %v3086 = vadd.f32 0.0, %v3085
    %v3087 = vpop.f32.mrb[0].mxu0
    %3088 = vmatprep.mubr.f32.mxu0 0.0
    %3089 = vmatmul.mubr.f32.gmra.mrb[0].mxu0 %v2965
    %v3090 = vpop.f32.mrb[0].mxu0
    %v3091 = vadd.f32 0.0, %v3090
    %v3092 = vpop.f32.mrb[0].mxu0
    %3093 = vmatprep.mubr.f32.mxu0 0.0
    %3094 = vmatmul.mubr.f32.gmra.mrb[0].mxu0 %v2968
    %v3095 = vpop.f32.mrb[0].mxu0
    %v3096 = vadd.f32 0.0, %v3095
    %v3097 = vpop.f32.mrb[0].mxu0
    %3098 = vdwg.mxu0
    %3099 = vst [vmem:[#allocation2 + $0xa0] sm:$0xff] %v3081
    %3100 = vst [vmem:[#allocation2 + $0xa8] sm:$0xff] %v3086
    %3101 = vst [vmem:[#allocation2 + $0xb0] sm:$0xff] %v3091
    %3102 = vst [vmem:[#allocation2 + $0xb8] sm:$0xff] %v3096
    %s3103 = sld [smem:[#allocation3 + $0x180]]
    %v3104 = vstv %s3103
    %v3105 = vmul.f32 %v3104, %v1756
    %v3106 = vmul.f32 %v3104, %v1757
    %v3107 = vmul.f32 %v3104, %v1758
    %v3108 = vmul.f32 %v3104, %v1759
    %s3109 = sld [smem:[#allocation3 + $0x181]]
    %v3110 = vstv %s3109
    %v3111 = vmul.f32 %v3110, %v1761
    %v3112 = vmul.f32 %v3110, %v1762
    %v3113 = vmul.f32 %v3110, %v1763
    %v3114 = vmul.f32 %v3110, %v1764
    %v3115 = vadd.f32 %v3105, %v3111
    %v3116 = vadd.f32 %v3106, %v3112
    %v3117 = vadd.f32 %v3107, %v3113
    %v3118 = vadd.f32 %v3108, %v3114
    %s3119 = sld [smem:[#allocation3 + $0x182]]
    %v3120 = vstv %s3119
    %v3121 = vmul.f32 %v3120, %v1766
    %v3122 = vmul.f32 %v3120, %v1767
    %v3123 = vmul.f32 %v3120, %v1768
    %v3124 = vmul.f32 %v3120, %v1769
    %v3125 = vadd.f32 %v3115, %v3121
    %v3126 = vadd.f32 %v3116, %v3122
    %v3127 = vadd.f32 %v3117, %v3123
    %v3128 = vadd.f32 %v3118, %v3124
    %s3129 = sld [smem:[#allocation6 + $0x3]]
    %v3130 = vstv %s3129
    %v3131 = vadd.f32 %v3125, %v3130
    %v3132 = vadd.f32 %v3126, %v3130
    %v3133 = vadd.f32 %v3127, %v3130
    %v3134 = vadd.f32 %v3128, %v3130
    %v3135 = vmax.f32 %v3131, 0.0
    %v3136 = vmax.f32 %v3132, 0.0
    %v3137 = vmax.f32 %v3133, 0.0
    %v3138 = vmax.f32 %v3134, 0.0
    %3139 = vst [vmem:[#allocation2 + $0xc0] sm:$0xff] %v3135
    %3140 = vst [vmem:[#allocation2 + $0xc8] sm:$0xff] %v3136
    %3141 = vst [vmem:[#allocation2 + $0xd0] sm:$0xff] %v3137
    %3142 = vst [vmem:[#allocation2 + $0xd8] sm:$0xff] %v3138
    %v3143 = vld [vmem:[%s7] sm:$0xff]
    %v3144 = vld [vmem:[%s7 + $0x8] sm:$0xff]
    %v3145 = vld [vmem:[%s7 + $0x10] sm:$0xff]
    %v3146 = vld [vmem:[%s7 + $0x18] sm:$0xff]
    %v3147 = vld [vmem:[%s7 + $0x20] sm:$0xff]
    %v3148 = vld [vmem:[%s7 + $0x28] sm:$0xff]
    %v3149 = vld [vmem:[%s7 + $0x30] sm:$0xff]
    %v3150 = vld [vmem:[%s7 + $0x38] sm:$0xff]
    %v3151 = vld [vmem:[%s7 + $0x40] sm:$0xff]
    %v3152 = vld [vmem:[%s7 + $0x48] sm:$0xff]
    %v3153 = vld [vmem:[%s7 + $0x50] sm:$0xff]
    %v3154 = vld [vmem:[%s7 + $0x58] sm:$0xff]
    %v3155 = vld [vmem:[%s7 + $0x60] sm:$0xff]
    %v3156 = vld [vmem:[%s7 + $0x68] sm:$0xff]
    %v3157 = vld [vmem:[%s7 + $0x70] sm:$0xff]
    %v3158 = vld [vmem:[%s7 + $0x78] sm:$0xff]
    %v3159 = vld [vmem:[%s7 + $0x80] sm:$0xff]
    %v3160 = vld [vmem:[%s7 + $0x88] sm:$0xff]
    %v3161 = vld [vmem:[%s7 + $0x90] sm:$0xff]
    %v3162 = vld [vmem:[%s7 + $0x98] sm:$0xff]
    %v3163 = vld [vmem:[%s7 + $0xa0] sm:$0xff]
    %v3164 = vld [vmem:[%s7 + $0xa8] sm:$0xff]
    %v3165 = vld [vmem:[%s7 + $0xb0] sm:$0xff]
    %v3166 = vld [vmem:[%s7 + $0xb8] sm:$0xff]
    %v3167 = vld [vmem:[#allocation2] sm:$0xff]
    %v3168 = vld [vmem:[#allocation2 + $0x8] sm:$0xff]
    %v3169 = vld [vmem:[#allocation2 + $0x10] sm:$0xff]
    %v3170 = vld [vmem:[#allocation2 + $0x18] sm:$0xff]
    %v3171 = vld [vmem:[#allocation2 + $0x20] sm:$0xff]
    %v3172 = vld [vmem:[#allocation2 + $0x28] sm:$0xff]
    %v3173 = vld [vmem:[#allocation2 + $0x30] sm:$0xff]
    %v3174 = vld [vmem:[#allocation2 + $0x38] sm:$0xff]
    %v3175 = vld [vmem:[#allocation2 + $0x40] sm:$0xff]
    %v3176 = vld [vmem:[#allocation2 + $0x48] sm:$0xff]
    %v3177 = vld [vmem:[#allocation2 + $0x50] sm:$0xff]
    %v3178 = vld [vmem:[#allocation2 + $0x58] sm:$0xff]
    %v3179 = vld [vmem:[#allocation2 + $0x60] sm:$0xff]
    %v3180 = vld [vmem:[#allocation2 + $0x68] sm:$0xff]
    %v3181 = vld [vmem:[#allocation2 + $0x70] sm:$0xff]
    %v3182 = vld [vmem:[#allocation2 + $0x78] sm:$0xff]
    %v3183 = vld [vmem:[#allocation2 + $0x80] sm:$0xff]
    %v3184 = vld [vmem:[#allocation2 + $0x88] sm:$0xff]
    %v3185 = vld [vmem:[#allocation2 + $0x90] sm:$0xff]
    %v3186 = vld [vmem:[#allocation2 + $0x98] sm:$0xff]
    %v3187 = vld [vmem:[#allocation2 + $0xa0] sm:$0xff]
    %v3188 = vld [vmem:[#allocation2 + $0xa8] sm:$0xff]
    %v3189 = vld [vmem:[#allocation2 + $0xb0] sm:$0xff]
    %v3190 = vld [vmem:[#allocation2 + $0xb8] sm:$0xff]
    %v3191 = vld [vmem:[#allocation2 + $0xc0] sm:$0xff]
    %v3192 = vld [vmem:[#allocation2 + $0xc8] sm:$0xff]
    %v3193 = vld [vmem:[#allocation2 + $0xd0] sm:$0xff]
    %v3194 = vld [vmem:[#allocation2 + $0xd8] sm:$0xff]
    %v3195 = vld [vmem:[%s8] sm:$0xff]
    %v3196 = vld [vmem:[%s8 + $0x8] sm:$0xff]
    %v3197 = vld [vmem:[%s8 + $0x10] sm:$0xff]
    %v3198 = vld [vmem:[%s8 + $0x18] sm:$0xff]
    %v3199 = vld [vmem:[%s8 + $0x20] sm:$0xff]
    %v3200 = vld [vmem:[%s8 + $0x28] sm:$0xff]
    %v3201 = vld [vmem:[%s8 + $0x30] sm:$0xff]
    %v3202 = vld [vmem:[%s8 + $0x38] sm:$0xff]
    %v3203 = vld [vmem:[%s8 + $0x40] sm:$0xff]
    %v3204 = vld [vmem:[%s8 + $0x48] sm:$0xff]
    %v3205 = vld [vmem:[%s8 + $0x50] sm:$0xff]
    %v3206 = vld [vmem:[%s8 + $0x58] sm:$0xff]
    %3208 = vset.pattern.permute.xlu0 0
    %3209 = vperm.xlu0 %3208, %v3195
    %v3210 = vpop.permute.xlu0 %3209
    %3213 = vset.pattern.permute.xlu0 0
    %3214 = vperm.xlu0 %3213, %v3196
    %v3215 = vpop.permute.xlu0 %3214
    %3218 = vset.pattern.permute.xlu0 0
    %3219 = vperm.xlu0 %3218, %v3197
    %v3220 = vpop.permute.xlu0 %3219
    %3223 = vset.pattern.permute.xlu0 0
    %3224 = vperm.xlu0 %3223, %v3198
    %v3225 = vpop.permute.xlu0 %3224
    %3228 = vset.pattern.permute.xlu0 0
    %3229 = vperm.xlu0 %3228, %v3199
    %v3230 = vpop.permute.xlu0 %3229
    %3233 = vset.pattern.permute.xlu0 0
    %3234 = vperm.xlu0 %3233, %v3200
    %v3235 = vpop.permute.xlu0 %3234
    %3238 = vset.pattern.permute.xlu0 0
    %3239 = vperm.xlu0 %3238, %v3201
    %v3240 = vpop.permute.xlu0 %3239
    %3243 = vset.pattern.permute.xlu0 0
    %3244 = vperm.xlu0 %3243, %v3202
    %v3245 = vpop.permute.xlu0 %3244
    %3248 = vset.pattern.permute.xlu0 0
    %3249 = vperm.xlu0 %3248, %v3203
    %v3250 = vpop.permute.xlu0 %3249
    %3253 = vset.pattern.permute.xlu0 0
    %3254 = vperm.xlu0 %3253, %v3204
    %v3255 = vpop.permute.xlu0 %3254
    %3258 = vset.pattern.permute.xlu0 0
    %3259 = vperm.xlu0 %3258, %v3205
    %v3260 = vpop.permute.xlu0 %3259
    %3263 = vset.pattern.permute.xlu0 0
    %3264 = vperm.xlu0 %3263, %v3206
    %v3265 = vpop.permute.xlu0 %3264
    %v3268 = vsel %vm1581, %v3144, 0
    %v3271 = vsel %vm1581, %v3146, 0
    %v3274 = vsel %vm1581, %v3148, 0
    %v3277 = vsel %vm1581, %v3150, 0
    %v3280 = vsel %vm1581, %v3152, 0
    %v3283 = vsel %vm1581, %v3154, 0
    %v3286 = vsel %vm1581, %v3156, 0
    %v3289 = vsel %vm1581, %v3158, 0
    %v3292 = vsel %vm1581, %v3160, 0
    %v3295 = vsel %vm1581, %v3162, 0
    %v3298 = vsel %vm1581, %v3164, 0
    %v3301 = vsel %vm1581, %v3166, 0
    %3303 = vmatprep.subr.mxu0 0.0
    %3304 = vmatpush1.msra.mxu0 %v3167
    %3305 = vmatprep.subr.mxu0 0.0
    %3306 = vmatpush1.msra.mxu0 %v3168
    %3307 = vmatprep.subr.mxu0 0.0
    %3308 = vmatpush1.msra.mxu0 %v3169
    %3309 = vmatprep.subr.mxu0 0.0
    %3310 = vmatpush1.msra.mxu0 %v3170
    %3311 = vmatprep.subr.mxu0 0.0
    %3312 = vmatpush1.msra.mxu0 %v3171
    %3313 = vmatprep.subr.mxu0 0.0
    %3314 = vmatpush1.msra.mxu0 %v3172
    %3315 = vmatprep.subr.mxu0 0.0
    %3316 = vmatpush1.msra.mxu0 %v3173
    %3317 = vmatprep.subr.mxu0 0.0
    %3318 = vmatpush1.msra.mxu0 %v3174
    %3319 = vmatprep.subr.mxu0 0.0
    %3320 = vmatpush1.msra.mxu0 %v3175
    %3321 = vmatprep.subr.mxu0 0.0
    %3322 = vmatpush1.msra.mxu0 %v3176
    %3323 = vmatprep.subr.mxu0 0.0
    %3324 = vmatpush1.msra.mxu0 %v3177
    %3325 = vmatprep.subr.mxu0 0.0
    %3326 = vmatpush1.msra.mxu0 %v3178
    %3327 = vmatprep.subr.mxu0 0.0
    %3328 = vmatpush1.msra.mxu0 %v3179
    %3329 = vmatprep.subr.mxu0 0.0
    %3330 = vmatpush1.msra.mxu0 %v3180
    %3331 = vmatprep.subr.mxu0 0.0
    %3332 = vmatpush1.msra.mxu0 %v3181
    %3333 = vmatprep.subr.mxu0 0.0
    %3334 = vmatpush1.msra.mxu0 %v3182
    %3335 = vmatprep.subr.mxu0 0.0
    %3336 = vmatpush1.msra.mxu0 %v3183
    %3337 = vmatprep.subr.mxu0 0.0
    %3338 = vmatpush1.msra.mxu0 %v3184
    %3339 = vmatprep.subr.mxu0 0.0
    %3340 = vmatpush1.msra.mxu0 %v3185
    %3341 = vmatprep.subr.mxu0 0.0
    %3342 = vmatpush1.msra.mxu0 %v3186
    %3343 = vmatprep.subr.mxu0 0.0
    %3344 = vmatpush1.msra.mxu0 %v3187
    %3345 = vmatprep.subr.mxu0 0.0
    %3346 = vmatpush1.msra.mxu0 %v3188
    %3347 = vmatprep.subr.mxu0 0.0
    %3348 = vmatpush1.msra.mxu0 %v3189
    %3349 = vmatprep.subr.mxu0 0.0
    %3350 = vmatpush1.msra.mxu0 %v3190
    %3351 = vmatprep.subr.mxu0 0.0
    %3352 = vmatpush1.msra.mxu0 %v3191
    %3353 = vmatprep.subr.mxu0 0.0
    %3354 = vmatpush1.msra.mxu0 %v3192
    %3355 = vmatprep.subr.mxu0 0.0
    %3356 = vmatpush1.msra.mxu0 %v3193
    %3357 = vmatprep.subr.mxu0 0.0
    %3358 = vmatpush1.msra.mxu0 %v3194
    %3359 = vmatprep.subr.mxu0 0.0
    %3360 = vmatpush1.msra.mxu0 0.0
    %3361 = vmatprep.subr.mxu0 0.0
    %3362 = vmatpush1.msra.mxu0 0.0
    %3363 = vmatprep.subr.mxu0 0.0
    %3364 = vmatpush1.msra.mxu0 0.0
    %3365 = vmatprep.subr.mxu0 0.0
    %3366 = vmatpush1.msra.mxu0 0.0
    %3367 = vmatprep.mubr.f32.mxu0 %v3268
    %3368 = vmatmul.mubr.f32.gmra.mrb[0].mxu0 %v3143
    %v3369 = vpop.f32.mrb[0].mxu0
    %v3370 = vadd.f32 %v3210, %v3369
    %v3371 = vpop.f32.mrb[0].mxu0
    %3372 = vmatprep.mubr.f32.mxu0 %v3271
    %3373 = vmatmul.mubr.f32.gmra.mrb[0].mxu0 %v3145
    %v3374 = vpop.f32.mrb[0].mxu0
    %v3375 = vadd.f32 %v3215, %v3374
    %v3376 = vpop.f32.mrb[0].mxu0
    %3377 = vmatprep.mubr.f32.mxu0 %v3274
    %3378 = vmatmul.mubr.f32.gmra.mrb[0].mxu0 %v3147
    %v3379 = vpop.f32.mrb[0].mxu0
    %v3380 = vadd.f32 %v3220, %v3379
    %v3381 = vpop.f32.mrb[0].mxu0
    %3382 = vmatprep.mubr.f32.mxu0 %v3277
    %3383 = vmatmul.mubr.f32.gmra.mrb[0].mxu0 %v3149
    %v3384 = vpop.f32.mrb[0].mxu0
    %v3385 = vadd.f32 %v3225, %v3384
    %v3386 = vpop.f32.mrb[0].mxu0
    %3387 = vmatprep.mubr.f32.mxu0 %v3280
    %3388 = vmatmul.mubr.f32.gmra.mrb[0].mxu0 %v3151
    %v3389 = vpop.f32.mrb[0].mxu0
    %v3390 = vadd.f32 %v3230, %v3389
    %v3391 = vpop.f32.mrb[0].mxu0
    %3392 = vmatprep.mubr.f32.mxu0 %v3283
    %3393 = vmatmul.mubr.f32.gmra.mrb[0].mxu0 %v3153
    %v3394 = vpop.f32.mrb[0].mxu0
    %v3395 = vadd.f32 %v3235, %v3394
    %v3396 = vpop.f32.mrb[0].mxu0
    %3397 = vmatprep.mubr.f32.mxu0 %v3286
    %3398 = vmatmul.mubr.f32.gmra.mrb[0].mxu0 %v3155
    %v3399 = vpop.f32.mrb[0].mxu0
    %v3400 = vadd.f32 %v3240, %v3399
    %v3401 = vpop.f32.mrb[0].mxu0
    %3402 = vmatprep.mubr.f32.mxu0 %v3289
    %3403 = vmatmul.mubr.f32.gmra.mrb[0].mxu0 %v3157
    %v3404 = vpop.f32.mrb[0].mxu0
    %v3405 = vadd.f32 %v3245, %v3404
    %v3406 = vpop.f32.mrb[0].mxu0
    %3407 = vmatprep.mubr.f32.mxu0 %v3292
    %3408 = vmatmul.mubr.f32.gmra.mrb[0].mxu0 %v3159
    %v3409 = vpop.f32.mrb[0].mxu0
    %v3410 = vadd.f32 %v3250, %v3409
    %v3411 = vpop.f32.mrb[0].mxu0
    %3412 = vmatprep.mubr.f32.mxu0 %v3295
    %3413 = vmatmul.mubr.f32.gmra.mrb[0].mxu0 %v3161
    %v3414 = vpop.f32.mrb[0].mxu0
    %v3415 = vadd.f32 %v3255, %v3414
    %v3416 = vpop.f32.mrb[0].mxu0
    %3417 = vmatprep.mubr.f32.mxu0 %v3298
    %3418 = vmatmul.mubr.f32.gmra.mrb[0].mxu0 %v3163
    %v3419 = vpop.f32.mrb[0].mxu0
    %v3420 = vadd.f32 %v3260, %v3419
    %v3421 = vpop.f32.mrb[0].mxu0
    %3422 = vmatprep.mubr.f32.mxu0 %v3301
    %3423 = vmatmul.mubr.f32.gmra.mrb[0].mxu0 %v3165
    %v3424 = vpop.f32.mrb[0].mxu0
    %v3425 = vadd.f32 %v3265, %v3424
    %v3426 = vpop.f32.mrb[0].mxu0
    %3427 = vdwg.mxu0
    %s3428 = scalar_lea.vmem [#allocation8], 96
    %3429 = vst [vmem:[%s3428] sm:$0xff] %v3370
    %3430 = vst [vmem:[%s3428 + $0x8] sm:$0xff] %v3375
    %3431 = vst [vmem:[%s3428 + $0x10] sm:$0xff] %v3380
    %3432 = vst [vmem:[%s3428 + $0x18] sm:$0xff] %v3385
    %3433 = vst [vmem:[%s3428 + $0x20] sm:$0xff] %v3390
    %3434 = vst [vmem:[%s3428 + $0x28] sm:$0xff] %v3395
    %3435 = vst [vmem:[%s3428 + $0x30] sm:$0xff] %v3400
    %3436 = vst [vmem:[%s3428 + $0x38] sm:$0xff] %v3405
    %3437 = vst [vmem:[%s3428 + $0x40] sm:$0xff] %v3410
    %3438 = vst [vmem:[%s3428 + $0x48] sm:$0xff] %v3415
    %3439 = vst [vmem:[%s3428 + $0x50] sm:$0xff] %v3420
    %3440 = vst [vmem:[%s3428 + $0x58] sm:$0xff] %v3425
    // Predicated region
    $region54: #{tpu_custom_call.1} parent=1 // pred_check
      _
    $region55: #{tpu_custom_call.1} parent=1 // pred_check_branch
      %3442 = sbr.rel (0) target = $region57
    $region56: #{tpu_custom_call.1} parent=1 // pred_region
      %s3444 = ssub.s32 3072, 3072
      %3445 = vsyncadd [#allocation4], %s3444
      %s3446 = sshll.u32 [#allocation8], 4
      %s3447 = int_to_ptr.vmem [resolvable:$true] %s3446
      %3452 = dma.vmem_to_hbm [thread:$0]  %s3447, 3072, %s11, [#allocation4], 128, 128, 8
    $region57: #{tpu_custom_call.1} parent=1 // pred_fallthru
      _
    // Predicated region
    $region58: #{tpu_custom_call.1} parent=1 // pred_check
      _
    $region59: #{tpu_custom_call.1} parent=1 // pred_check_branch
      %3454 = sbr.rel (0) target = $region61
    $region60: #{tpu_custom_call.1} parent=1 // pred_region
      %3455 = dma.done [#allocation4], 3072
    $region61: #{tpu_custom_call.1} parent=1 // pred_fallthru
      _
    %3456 = vsyncpa [#allocation4], 1
    %3457 = vsyncpa [#allocation5], 1
    %3458 = vsyncpa [#allocation7], 1

</llo_original>
